<compile_context>
chip_gen: v7x
topology: tpu7x:2x2x1
jax: 0.10.0
libtpu: 0.0.40
codegen_flags: <defaults>
</compile_context>

<pallas_src>
from functools import partial

import jax
import jax.numpy as jnp
from jax.experimental import pallas as pl
from jax.experimental.pallas import tpu as pltpu

EPS = 1e-5  # nn.BatchNorm2d default


# ---------------------------------------------------------------------------
# Pass A: dilated convs (im2col matmul), GAP + 1x1 conv, per-image BN stats.
# ---------------------------------------------------------------------------
def conv_stats_kernel(xp_ref, w1_ref, b1_ref, w2_ref, b2_ref, wp_ref, bp_ref,
                      y1_ref, y2_ref, p_ref, st1_ref, st2_ref,
                      *, H, W, C, rates, maxpad):
    M = H * W
    xp = xp_ref[...][0]                      # (H+2P, W+2P, C), single padded copy

    def dilated(rate, w, b):
        off = maxpad - rate
        cols = []
        for kh in range(3):
            for kw in range(3):
                xs = xp[off + kh * rate: off + kh * rate + H,
                        off + kw * rate: off + kw * rate + W, :]
                cols.append(xs.reshape(M, C))
        slab = jnp.concatenate(cols, axis=-1)            # (M, 9C) im2col slab
        # single MXU matmul with K = 9*C instead of nine K = C dots
        return jnp.dot(slab, w, preferred_element_type=jnp.float32) + b

    y1 = dilated(rates[0], w1_ref[...], b1_ref[...])     # (M, C), pre-BN
    y2 = dilated(rates[1], w2_ref[...], b2_ref[...])     # (M, C), pre-BN
    y1_ref[...] = y1.reshape(1, H, W, C)
    y2_ref[...] = y2.reshape(1, H, W, C)

    # per-image sum / sum-of-squares for global (cross-batch) BN statistics
    st1_ref[...] = jnp.concatenate(
        [jnp.sum(y1, axis=0, keepdims=True),
         jnp.sum(y1 * y1, axis=0, keepdims=True)], axis=0)[None]
    st2_ref[...] = jnp.concatenate(
        [jnp.sum(y2, axis=0, keepdims=True),
         jnp.sum(y2 * y2, axis=0, keepdims=True)], axis=0)[None]

    # pooling branch: global average pool -> 1x1 conv (pre-BN)
    xc = xp[maxpad:maxpad + H, maxpad:maxpad + W, :].reshape(M, C)
    xm = jnp.mean(xc, axis=0, keepdims=True)             # (1, C)
    p = jnp.dot(xm, wp_ref[...], preferred_element_type=jnp.float32) + bp_ref[...]
    p_ref[...] = p[None]                                 # (1, 1, C)


# ---------------------------------------------------------------------------
# Pass B: fused BN(scale/shift) + ReLU, fused out_conv matmul, output stats.
# ---------------------------------------------------------------------------
def outconv_stats_kernel(y1_ref, y2_ref, pc_ref, ss1_ref, ss2_ref, wo_ref,
                         o_ref, sto_ref, *, H, W, C):
    M = H * W
    ss1 = ss1_ref[...]                                   # (2, C): scale, shift
    ss2 = ss2_ref[...]
    z1 = jnp.maximum(y1_ref[...].reshape(M, C) * ss1[0:1] + ss1[1:2], 0.0)
    z2 = jnp.maximum(y2_ref[...].reshape(M, C) * ss2[0:1] + ss2[1:2], 0.0)
    cat = jnp.concatenate([z1, z2], axis=-1)             # (M, 2C)
    o = jnp.dot(cat, wo_ref[...], preferred_element_type=jnp.float32)
    # pooling-branch term (constant over H*W) + conv bias, added as per-image bias
    o = o + pc_ref[...].reshape(1, C)
    o_ref[...] = o.reshape(1, H, W, C)
    sto_ref[...] = jnp.concatenate(
        [jnp.sum(o, axis=0, keepdims=True),
         jnp.sum(o * o, axis=0, keepdims=True)], axis=0)[None]


# ---------------------------------------------------------------------------
# Pass C: final BN normalize + ReLU, lane-dense (W*C on the lane axis).
# ---------------------------------------------------------------------------
def norm_relu_kernel(o_ref, sso_ref, out_ref):
    sso = sso_ref[...]                                   # (2, W*C): scale, shift
    out_ref[...] = jnp.maximum(o_ref[...] * sso[0:1][None] + sso[1:2][None], 0.0)


# ---------------------------------------------------------------------------
# JAX glue: fold batch statistics into per-channel scale/shift.
# ---------------------------------------------------------------------------
def _bn_fold(s, q, count, gamma, beta):
    mean = s / count
    var = jnp.maximum(q / count - mean * mean, 0.0)      # biased variance (one pass)
    scale = gamma * jax.lax.rsqrt(var + EPS)
    shift = beta - mean * scale
    return scale, shift


def aspp_forward(x_nchw, params, rates=(2, 4)):
    x = jnp.transpose(x_nchw, (0, 2, 3, 1)).astype(jnp.float32)   # NCHW -> NHWC
    N, H, W, C = x.shape
    P = max(rates)
    xp = jnp.pad(x, ((0, 0), (P, P), (P, P), (0, 0)))    # single padded copy
    Hp, Wp = H + 2 * P, W + 2 * P
    M = N * H * W

    # weight prep: (3,3,Cin,Cout) -> (9*Cin, Cout) to match the im2col slab
    w1r = params['w1'].reshape(9 * C, C)
    w2r = params['w2'].reshape(9 * C, C)
    b1 = params['b1'].reshape(1, C)
    b2 = params['b2'].reshape(1, C)
    bp = params['bp'].reshape(1, C)

    par = pltpu.CompilerParams(dimension_semantics=("parallel",))

    # ---- pass A -----------------------------------------------------------
    y1_raw, y2_raw, p_raw, st1, st2 = pl.pallas_call(
        partial(conv_stats_kernel, H=H, W=W, C=C, rates=rates, maxpad=P),
        grid=(N,),
        in_specs=[
            pl.BlockSpec((1, Hp, Wp, C), lambda n: (n, 0, 0, 0)),
            pl.BlockSpec((9 * C, C), lambda n: (0, 0)),
            pl.BlockSpec((1, C), lambda n: (0, 0)),
            pl.BlockSpec((9 * C, C), lambda n: (0, 0)),
            pl.BlockSpec((1, C), lambda n: (0, 0)),
            pl.BlockSpec((C, C), lambda n: (0, 0)),
            pl.BlockSpec((1, C), lambda n: (0, 0)),
        ],
        out_specs=[
            pl.BlockSpec((1, H, W, C), lambda n: (n, 0, 0, 0)),
            pl.BlockSpec((1, H, W, C), lambda n: (n, 0, 0, 0)),
            pl.BlockSpec((1, 1, C), lambda n: (n, 0, 0)),
            pl.BlockSpec((1, 2, C), lambda n: (n, 0, 0)),
            pl.BlockSpec((1, 2, C), lambda n: (n, 0, 0)),
        ],
        out_shape=[
            jax.ShapeDtypeStruct((N, H, W, C), jnp.float32),
            jax.ShapeDtypeStruct((N, H, W, C), jnp.float32),
            jax.ShapeDtypeStruct((N, 1, C), jnp.float32),
            jax.ShapeDtypeStruct((N, 2, C), jnp.float32),
            jax.ShapeDtypeStruct((N, 2, C), jnp.float32),
        ],
        compiler_params=par,
    )(xp, w1r, b1, w2r, b2, params['wp'], bp)

    # ---- glue 1: fold BN1/BN2 stats; pooling-branch BN + hoisted 1x1 conv --
    cnt = float(M)
    sc1, sh1 = _bn_fold(st1[:, 0, :].sum(0), st1[:, 1, :].sum(0), cnt,
                        params['g1'], params['be1'])
    sc2, sh2 = _bn_fold(st2[:, 0, :].sum(0), st2[:, 1, :].sum(0), cnt,
                        params['g2'], params['be2'])
    ss1 = jnp.stack([sc1, sh1])                          # (2, C)
    ss2 = jnp.stack([sc2, sh2])

    pooled = p_raw[:, 0, :]                              # (N, C)
    pmean = jnp.mean(pooled, axis=0)
    pvar = jnp.mean((pooled - pmean) ** 2, axis=0)       # biased, stats over N
    psc = params['gp'] * jax.lax.rsqrt(pvar + EPS)
    psh = params['bep'] - pmean * psc
    p_bn = pooled * psc + psh
    # bilinear upsample of a 1x1 map == broadcast, so ReLU + 1x1 conv commute
    # with it; fold the pooling-branch out_conv term (and bias bo) to (N, C).
    pc = (jnp.dot(jnp.maximum(p_bn, 0.0), params['wo'][2 * C:],
                  preferred_element_type=jnp.float32)
          + params['bo']).reshape(N, 1, C)

    # ---- pass B -----------------------------------------------------------
    o_raw, sto = pl.pallas_call(
        partial(outconv_stats_kernel, H=H, W=W, C=C),
        grid=(N,),
        in_specs=[
            pl.BlockSpec((1, H, W, C), lambda n: (n, 0, 0, 0)),
            pl.BlockSpec((1, H, W, C), lambda n: (n, 0, 0, 0)),
            pl.BlockSpec((1, 1, C), lambda n: (n, 0, 0)),
            pl.BlockSpec((2, C), lambda n: (0, 0)),
            pl.BlockSpec((2, C), lambda n: (0, 0)),
            pl.BlockSpec((2 * C, C), lambda n: (0, 0)),
        ],
        out_specs=[
            pl.BlockSpec((1, H, W, C), lambda n: (n, 0, 0, 0)),
            pl.BlockSpec((1, 2, C), lambda n: (n, 0, 0)),
        ],
        out_shape=[
            jax.ShapeDtypeStruct((N, H, W, C), jnp.float32),
            jax.ShapeDtypeStruct((N, 2, C), jnp.float32),
        ],
        compiler_params=par,
    )(y1_raw, y2_raw, pc, ss1, ss2, params['wo'][:2 * C])

    # ---- glue 2: fold final BN stats; lane-dense layout for pass C ---------
    sco, sho = _bn_fold(sto[:, 0, :].sum(0), sto[:, 1, :].sum(0), cnt,
                        params['go'], params['beo'])
    o_flat = o_raw.reshape(N, H, W * C)                  # free reshape (row-major)
    sso = jnp.stack([jnp.tile(sco, W), jnp.tile(sho, W)])  # (2, W*C)

    # ---- pass C -----------------------------------------------------------
    out = pl.pallas_call(
        norm_relu_kernel,
        grid=(N,),
        in_specs=[
            pl.BlockSpec((1, H, W * C), lambda n: (n, 0, 0)),
            pl.BlockSpec((2, W * C), lambda n: (0, 0)),
        ],
        out_specs=pl.BlockSpec((1, H, W * C), lambda n: (n, 0, 0)),
        out_shape=jax.ShapeDtypeStruct((N, H, W * C), jnp.float32),
        compiler_params=par,
    )(o_flat, sso)

    out = out.reshape(N, H, W, C)
    return jnp.transpose(out, (0, 3, 1, 2))              # NHWC -> NCHW


def init_params(key, C):
    ks = jax.random.split(key, 16)
    s = 0.1

    def n(k, shape):
        return s * jax.random.normal(k, shape, jnp.float32)

    return dict(
        # branch 1: Conv2d(C, C, 3, dilation=2) + BN
        w1=n(ks[0], (3, 3, C, C)), b1=n(ks[1], (C,)),
        g1=1.0 + n(ks[2], (C,)), be1=n(ks[3], (C,)),
        # branch 2: Conv2d(C, C, 3, dilation=4) + BN
        w2=n(ks[4], (3, 3, C, C)), b2=n(ks[5], (C,)),
        g2=1.0 + n(ks[6], (C,)), be2=n(ks[7], (C,)),
        # pooling branch: Conv2d(C, C, 1) + BN
        wp=n(ks[8], (C, C)), bp=n(ks[9], (C,)),
        gp=1.0 + n(ks[10], (C,)), bep=n(ks[11], (C,)),
        # out_conv: Conv2d(3C, C, 1) + BN
        wo=n(ks[12], (3 * C, C)), bo=n(ks[13], (C,)),
        go=1.0 + n(ks[14], (C,)), beo=n(ks[15], (C,)),
    )


if __name__ == "__main__":
    key = jax.random.PRNGKey(0)
    kx, kp = jax.random.split(key)

    B, C, H, W = 2, 8, 16, 16
    x = jax.random.normal(kx, (B, C, H, W), jnp.float32)   # PyTorch NCHW input
    params = init_params(kp, C)

    fwd = jax.jit(aspp_forward)
    y = fwd(x, params)
    y = jax.block_until_ready(y)

    assert y.shape == (B, C, H, W), y.shape
    assert y.dtype == jnp.float32
    assert bool(jnp.all(jnp.isfinite(y)))
    assert bool(jnp.all(y >= 0.0))  # final ReLU

    print("KERNEL_OK")
</pallas_src>

<mosaic_0001>
module attributes {stable_mosaic.version = 11 : i64} {
  func.func @conv_stats_kernel(%arg0: i32, %arg1: memref<1x24x24x8xf32, #tpu.memory_space<vmem>>, %arg2: memref<72x8xf32, #tpu.memory_space<vmem>>, %arg3: memref<1x8xf32, #tpu.memory_space<vmem>>, %arg4: memref<72x8xf32, #tpu.memory_space<vmem>>, %arg5: memref<1x8xf32, #tpu.memory_space<vmem>>, %arg6: memref<8x8xf32, #tpu.memory_space<vmem>>, %arg7: memref<1x8xf32, #tpu.memory_space<vmem>>, %arg8: memref<1x16x16x8xf32, #tpu.memory_space<vmem>>, %arg9: memref<1x16x16x8xf32, #tpu.memory_space<vmem>>, %arg10: memref<1x1x8xf32, #tpu.memory_space<vmem>>, %arg11: memref<1x2x8xf32, #tpu.memory_space<vmem>>, %arg12: memref<1x2x8xf32, #tpu.memory_space<vmem>>) attributes {dimension_semantics = [#tpu.dimension_semantics<parallel>], iteration_bounds = array<i64: 2>, scalar_prefetch = 0 : i64, scratch_operands = 0 : i64, tpu.core_type = #tpu.core_type<tc>, window_params = [{transform_indices = @transform_0, window_bounds = array<i64: 1, 24, 24, 8>}, {pipeline_mode = #tpu.pipeline_mode<synchronous>, transform_indices = @transform_1, window_bounds = array<i64: 72, 8>}, {pipeline_mode = #tpu.pipeline_mode<synchronous>, transform_indices = @transform_2, window_bounds = array<i64: 1, 8>}, {pipeline_mode = #tpu.pipeline_mode<synchronous>, transform_indices = @transform_3, window_bounds = array<i64: 72, 8>}, {pipeline_mode = #tpu.pipeline_mode<synchronous>, transform_indices = @transform_4, window_bounds = array<i64: 1, 8>}, {pipeline_mode = #tpu.pipeline_mode<synchronous>, transform_indices = @transform_5, window_bounds = array<i64: 8, 8>}, {pipeline_mode = #tpu.pipeline_mode<synchronous>, transform_indices = @transform_6, window_bounds = array<i64: 1, 8>}, {transform_indices = @transform_7, window_bounds = array<i64: 1, 16, 16, 8>}, {transform_indices = @transform_8, window_bounds = array<i64: 1, 16, 16, 8>}, {transform_indices = @transform_9, window_bounds = array<i64: 1, 1, 8>}, {transform_indices = @transform_10, window_bounds = array<i64: 1, 2, 8>}, {transform_indices = @transform_11, window_bounds = array<i64: 1, 2, 8>}]} {
    %c0 = arith.constant 0 : index
    %c0_0 = arith.constant 0 : index
    %c0_1 = arith.constant 0 : index
    %c0_2 = arith.constant 0 : index
    %0 = vector.load %arg1[%c0, %c0_0, %c0_1, %c0_2] : memref<1x24x24x8xf32, #tpu.memory_space<vmem>>, vector<1x24x24x8xf32>
    %1 = vector.shape_cast %0 : vector<1x24x24x8xf32> to vector<24x24x8xf32>
    %c0_3 = arith.constant 0 : index
    %c0_4 = arith.constant 0 : index
    %2 = vector.load %arg2[%c0_3, %c0_4] : memref<72x8xf32, #tpu.memory_space<vmem>>, vector<72x8xf32>
    %c0_5 = arith.constant 0 : index
    %c0_6 = arith.constant 0 : index
    %3 = vector.load %arg3[%c0_5, %c0_6] : memref<1x8xf32, #tpu.memory_space<vmem>>, vector<1x8xf32>
    %4 = vector.extract_strided_slice %1 {offsets = [2, 2, 0], sizes = [16, 16, 8], strides = [1, 1, 1]} : vector<24x24x8xf32> to vector<16x16x8xf32>
    %5 = vector.shape_cast %4 : vector<16x16x8xf32> to vector<256x8xf32>
    %6 = vector.extract_strided_slice %1 {offsets = [2, 4, 0], sizes = [16, 16, 8], strides = [1, 1, 1]} : vector<24x24x8xf32> to vector<16x16x8xf32>
    %7 = vector.shape_cast %6 : vector<16x16x8xf32> to vector<256x8xf32>
    %8 = vector.extract_strided_slice %1 {offsets = [2, 6, 0], sizes = [16, 16, 8], strides = [1, 1, 1]} : vector<24x24x8xf32> to vector<16x16x8xf32>
    %9 = vector.shape_cast %8 : vector<16x16x8xf32> to vector<256x8xf32>
    %10 = vector.extract_strided_slice %1 {offsets = [4, 2, 0], sizes = [16, 16, 8], strides = [1, 1, 1]} : vector<24x24x8xf32> to vector<16x16x8xf32>
    %11 = vector.shape_cast %10 : vector<16x16x8xf32> to vector<256x8xf32>
    %12 = vector.extract_strided_slice %1 {offsets = [4, 4, 0], sizes = [16, 16, 8], strides = [1, 1, 1]} : vector<24x24x8xf32> to vector<16x16x8xf32>
    %13 = vector.shape_cast %12 : vector<16x16x8xf32> to vector<256x8xf32>
    %14 = vector.extract_strided_slice %1 {offsets = [4, 6, 0], sizes = [16, 16, 8], strides = [1, 1, 1]} : vector<24x24x8xf32> to vector<16x16x8xf32>
    %15 = vector.shape_cast %14 : vector<16x16x8xf32> to vector<256x8xf32>
    %16 = vector.extract_strided_slice %1 {offsets = [6, 2, 0], sizes = [16, 16, 8], strides = [1, 1, 1]} : vector<24x24x8xf32> to vector<16x16x8xf32>
    %17 = vector.shape_cast %16 : vector<16x16x8xf32> to vector<256x8xf32>
    %18 = vector.extract_strided_slice %1 {offsets = [6, 4, 0], sizes = [16, 16, 8], strides = [1, 1, 1]} : vector<24x24x8xf32> to vector<16x16x8xf32>
    %19 = vector.shape_cast %18 : vector<16x16x8xf32> to vector<256x8xf32>
    %20 = vector.extract_strided_slice %1 {offsets = [6, 6, 0], sizes = [16, 16, 8], strides = [1, 1, 1]} : vector<24x24x8xf32> to vector<16x16x8xf32>
    %21 = vector.shape_cast %20 : vector<16x16x8xf32> to vector<256x8xf32>
    %22 = tpu.concatenate %5, %7, %9, %11, %13, %15, %17, %19, %21 in 1 : vector<256x8xf32>, vector<256x8xf32>, vector<256x8xf32>, vector<256x8xf32>, vector<256x8xf32>, vector<256x8xf32>, vector<256x8xf32>, vector<256x8xf32>, vector<256x8xf32> -> vector<256x72xf32>
    %cst = arith.constant dense<0.000000e+00> : vector<256x8xf32>
    %23 = tpu.matmul %22, %2, %cst {dimension_numbers = #tpu.dot_dimension_numbers<[1], [0], [0], [1], [0, 0, 1, 1], [], []>} : vector<256x72xf32>, vector<72x8xf32>, vector<256x8xf32> -> vector<256x8xf32>
    %24 = vector.broadcast %3 : vector<1x8xf32> to vector<256x8xf32>
    %25 = arith.addf %23, %24 : vector<256x8xf32>
    %c0_7 = arith.constant 0 : index
    %c0_8 = arith.constant 0 : index
    %26 = vector.load %arg4[%c0_7, %c0_8] : memref<72x8xf32, #tpu.memory_space<vmem>>, vector<72x8xf32>
    %c0_9 = arith.constant 0 : index
    %c0_10 = arith.constant 0 : index
    %27 = vector.load %arg5[%c0_9, %c0_10] : memref<1x8xf32, #tpu.memory_space<vmem>>, vector<1x8xf32>
    %28 = vector.extract_strided_slice %1 {offsets = [0, 0, 0], sizes = [16, 16, 8], strides = [1, 1, 1]} : vector<24x24x8xf32> to vector<16x16x8xf32>
    %29 = vector.shape_cast %28 : vector<16x16x8xf32> to vector<256x8xf32>
    %30 = vector.extract_strided_slice %1 {offsets = [0, 4, 0], sizes = [16, 16, 8], strides = [1, 1, 1]} : vector<24x24x8xf32> to vector<16x16x8xf32>
    %31 = vector.shape_cast %30 : vector<16x16x8xf32> to vector<256x8xf32>
    %32 = vector.extract_strided_slice %1 {offsets = [0, 8, 0], sizes = [16, 16, 8], strides = [1, 1, 1]} : vector<24x24x8xf32> to vector<16x16x8xf32>
    %33 = vector.shape_cast %32 : vector<16x16x8xf32> to vector<256x8xf32>
    %34 = vector.extract_strided_slice %1 {offsets = [4, 0, 0], sizes = [16, 16, 8], strides = [1, 1, 1]} : vector<24x24x8xf32> to vector<16x16x8xf32>
    %35 = vector.shape_cast %34 : vector<16x16x8xf32> to vector<256x8xf32>
    %36 = vector.extract_strided_slice %1 {offsets = [4, 4, 0], sizes = [16, 16, 8], strides = [1, 1, 1]} : vector<24x24x8xf32> to vector<16x16x8xf32>
    %37 = vector.shape_cast %36 : vector<16x16x8xf32> to vector<256x8xf32>
    %38 = vector.extract_strided_slice %1 {offsets = [4, 8, 0], sizes = [16, 16, 8], strides = [1, 1, 1]} : vector<24x24x8xf32> to vector<16x16x8xf32>
    %39 = vector.shape_cast %38 : vector<16x16x8xf32> to vector<256x8xf32>
    %40 = vector.extract_strided_slice %1 {offsets = [8, 0, 0], sizes = [16, 16, 8], strides = [1, 1, 1]} : vector<24x24x8xf32> to vector<16x16x8xf32>
    %41 = vector.shape_cast %40 : vector<16x16x8xf32> to vector<256x8xf32>
    %42 = vector.extract_strided_slice %1 {offsets = [8, 4, 0], sizes = [16, 16, 8], strides = [1, 1, 1]} : vector<24x24x8xf32> to vector<16x16x8xf32>
    %43 = vector.shape_cast %42 : vector<16x16x8xf32> to vector<256x8xf32>
    %44 = vector.extract_strided_slice %1 {offsets = [8, 8, 0], sizes = [16, 16, 8], strides = [1, 1, 1]} : vector<24x24x8xf32> to vector<16x16x8xf32>
    %45 = vector.shape_cast %44 : vector<16x16x8xf32> to vector<256x8xf32>
    %46 = tpu.concatenate %29, %31, %33, %35, %37, %39, %41, %43, %45 in 1 : vector<256x8xf32>, vector<256x8xf32>, vector<256x8xf32>, vector<256x8xf32>, vector<256x8xf32>, vector<256x8xf32>, vector<256x8xf32>, vector<256x8xf32>, vector<256x8xf32> -> vector<256x72xf32>
    %cst_11 = arith.constant dense<0.000000e+00> : vector<256x8xf32>
    %47 = tpu.matmul %46, %26, %cst_11 {dimension_numbers = #tpu.dot_dimension_numbers<[1], [0], [0], [1], [0, 0, 1, 1], [], []>} : vector<256x72xf32>, vector<72x8xf32>, vector<256x8xf32> -> vector<256x8xf32>
    %48 = vector.broadcast %27 : vector<1x8xf32> to vector<256x8xf32>
    %49 = arith.addf %47, %48 : vector<256x8xf32>
    %50 = vector.shape_cast %25 : vector<256x8xf32> to vector<1x16x16x8xf32>
    %c0_12 = arith.constant 0 : index
    %c0_13 = arith.constant 0 : index
    %c0_14 = arith.constant 0 : index
    %c0_15 = arith.constant 0 : index
    %51 = vector.load %arg8[%c0_12, %c0_13, %c0_14, %c0_15] : memref<1x16x16x8xf32, #tpu.memory_space<vmem>>, vector<1x16x16x8xf32>
    tpu.vector_store %arg8[%c0_12, %c0_13, %c0_14, %c0_15], %50 {strides = array<i32>} : memref<1x16x16x8xf32, #tpu.memory_space<vmem>>, vector<1x16x16x8xf32>,
    %52 = vector.shape_cast %49 : vector<256x8xf32> to vector<1x16x16x8xf32>
    %c0_16 = arith.constant 0 : index
    %c0_17 = arith.constant 0 : index
    %c0_18 = arith.constant 0 : index
    %c0_19 = arith.constant 0 : index
    %53 = vector.load %arg9[%c0_16, %c0_17, %c0_18, %c0_19] : memref<1x16x16x8xf32, #tpu.memory_space<vmem>>, vector<1x16x16x8xf32>
    tpu.vector_store %arg9[%c0_16, %c0_17, %c0_18, %c0_19], %52 {strides = array<i32>} : memref<1x16x16x8xf32, #tpu.memory_space<vmem>>, vector<1x16x16x8xf32>,
    %cst_20 = arith.constant dense<0.000000e+00> : vector<8xf32>
    %54 = vector.multi_reduction <add>, %25, %cst_20 [0] : vector<256x8xf32> to vector<8xf32>
    %55 = vector.shape_cast %54 : vector<8xf32> to vector<1x8xf32>
    %56 = arith.mulf %25, %25 : vector<256x8xf32>
    %cst_21 = arith.constant dense<0.000000e+00> : vector<8xf32>
    %57 = vector.multi_reduction <add>, %56, %cst_21 [0] : vector<256x8xf32> to vector<8xf32>
    %58 = vector.shape_cast %57 : vector<8xf32> to vector<1x8xf32>
    %59 = tpu.concatenate %55, %58 in 0 : vector<1x8xf32>, vector<1x8xf32> -> vector<2x8xf32>
    %60 = vector.shape_cast %59 : vector<2x8xf32> to vector<1x2x8xf32>
    %c0_22 = arith.constant 0 : index
    %c0_23 = arith.constant 0 : index
    %c0_24 = arith.constant 0 : index
    %61 = vector.load %arg11[%c0_22, %c0_23, %c0_24] : memref<1x2x8xf32, #tpu.memory_space<vmem>>, vector<1x2x8xf32>
    tpu.vector_store %arg11[%c0_22, %c0_23, %c0_24], %60 {strides = array<i32>} : memref<1x2x8xf32, #tpu.memory_space<vmem>>, vector<1x2x8xf32>,
    %cst_25 = arith.constant dense<0.000000e+00> : vector<8xf32>
    %62 = vector.multi_reduction <add>, %49, %cst_25 [0] : vector<256x8xf32> to vector<8xf32>
    %63 = vector.shape_cast %62 : vector<8xf32> to vector<1x8xf32>
    %64 = arith.mulf %49, %49 : vector<256x8xf32>
    %cst_26 = arith.constant dense<0.000000e+00> : vector<8xf32>
    %65 = vector.multi_reduction <add>, %64, %cst_26 [0] : vector<256x8xf32> to vector<8xf32>
    %66 = vector.shape_cast %65 : vector<8xf32> to vector<1x8xf32>
    %67 = tpu.concatenate %63, %66 in 0 : vector<1x8xf32>, vector<1x8xf32> -> vector<2x8xf32>
    %68 = vector.shape_cast %67 : vector<2x8xf32> to vector<1x2x8xf32>
    %c0_27 = arith.constant 0 : index
    %c0_28 = arith.constant 0 : index
    %c0_29 = arith.constant 0 : index
    %69 = vector.load %arg12[%c0_27, %c0_28, %c0_29] : memref<1x2x8xf32, #tpu.memory_space<vmem>>, vector<1x2x8xf32>
    tpu.vector_store %arg12[%c0_27, %c0_28, %c0_29], %68 {strides = array<i32>} : memref<1x2x8xf32, #tpu.memory_space<vmem>>, vector<1x2x8xf32>,
    %70 = vector.extract_strided_slice %1 {offsets = [4, 4, 0], sizes = [16, 16, 8], strides = [1, 1, 1]} : vector<24x24x8xf32> to vector<16x16x8xf32>
    %71 = vector.shape_cast %70 : vector<16x16x8xf32> to vector<256x8xf32>
    %cst_30 = arith.constant dense<0.000000e+00> : vector<8xf32>
    %72 = vector.multi_reduction <add>, %71, %cst_30 [0] : vector<256x8xf32> to vector<8xf32>
    %73 = vector.shape_cast %72 : vector<8xf32> to vector<1x8xf32>
    %cst_31 = arith.constant 2.560000e+02 : f32
    %74 = vector.broadcast %cst_31 : f32 to vector<1x8xf32>
    %75 = arith.divf %73, %74 : vector<1x8xf32>
    %c0_32 = arith.constant 0 : index
    %c0_33 = arith.constant 0 : index
    %76 = vector.load %arg6[%c0_32, %c0_33] : memref<8x8xf32, #tpu.memory_space<vmem>>, vector<8x8xf32>
    %cst_34 = arith.constant dense<0.000000e+00> : vector<1x8xf32>
    %77 = tpu.matmul %75, %76, %cst_34 {dimension_numbers = #tpu.dot_dimension_numbers<[1], [0], [0], [1], [0, 0, 1, 1], [], []>} : vector<1x8xf32>, vector<8x8xf32>, vector<1x8xf32> -> vector<1x8xf32>
    %c0_35 = arith.constant 0 : index
    %c0_36 = arith.constant 0 : index
    %78 = vector.load %arg7[%c0_35, %c0_36] : memref<1x8xf32, #tpu.memory_space<vmem>>, vector<1x8xf32>
    %79 = arith.addf %77, %78 : vector<1x8xf32>
    %80 = vector.shape_cast %79 : vector<1x8xf32> to vector<1x1x8xf32>
    %c0_37 = arith.constant 0 : index
    %c0_38 = arith.constant 0 : index
    %c0_39 = arith.constant 0 : index
    %81 = vector.load %arg10[%c0_37, %c0_38, %c0_39] : memref<1x1x8xf32, #tpu.memory_space<vmem>>, vector<1x1x8xf32>
    tpu.vector_store %arg10[%c0_37, %c0_38, %c0_39], %80 {strides = array<i32>} : memref<1x1x8xf32, #tpu.memory_space<vmem>>, vector<1x1x8xf32>,
    return
  }
  func.func @transform_0(%arg0: i32) -> (i32, i32, i32, i32) {
    %c0_i32 = arith.constant 0 : i32
    %c0_i32_0 = arith.constant 0 : i32
    %c0_i32_1 = arith.constant 0 : i32
    %c0_i32_2 = arith.constant 0 : i32
    return %arg0, %c0_i32, %c0_i32_0, %c0_i32_1 : i32, i32, i32, i32
  }
  func.func @transform_1(%arg0: i32) -> (i32, i32) {
    %c0_i32 = arith.constant 0 : i32
    %c0_i32_0 = arith.constant 0 : i32
    %c0_i32_1 = arith.constant 0 : i32
    return %c0_i32, %c0_i32_0 : i32, i32
  }
  func.func @transform_2(%arg0: i32) -> (i32, i32) {
    %c0_i32 = arith.constant 0 : i32
    %c0_i32_0 = arith.constant 0 : i32
    %c0_i32_1 = arith.constant 0 : i32
    return %c0_i32, %c0_i32_0 : i32, i32
  }
  func.func @transform_3(%arg0: i32) -> (i32, i32) {
    %c0_i32 = arith.constant 0 : i32
    %c0_i32_0 = arith.constant 0 : i32
    %c0_i32_1 = arith.constant 0 : i32
    return %c0_i32, %c0_i32_0 : i32, i32
  }
  func.func @transform_4(%arg0: i32) -> (i32, i32) {
    %c0_i32 = arith.constant 0 : i32
    %c0_i32_0 = arith.constant 0 : i32
    %c0_i32_1 = arith.constant 0 : i32
    return %c0_i32, %c0_i32_0 : i32, i32
  }
  func.func @transform_5(%arg0: i32) -> (i32, i32) {
    %c0_i32 = arith.constant 0 : i32
    %c0_i32_0 = arith.constant 0 : i32
    %c0_i32_1 = arith.constant 0 : i32
    return %c0_i32, %c0_i32_0 : i32, i32
  }
  func.func @transform_6(%arg0: i32) -> (i32, i32) {
    %c0_i32 = arith.constant 0 : i32
    %c0_i32_0 = arith.constant 0 : i32
    %c0_i32_1 = arith.constant 0 : i32
    return %c0_i32, %c0_i32_0 : i32, i32
  }
  func.func @transform_7(%arg0: i32) -> (i32, i32, i32, i32) {
    %c0_i32 = arith.constant 0 : i32
    %c0_i32_0 = arith.constant 0 : i32
    %c0_i32_1 = arith.constant 0 : i32
    %c0_i32_2 = arith.constant 0 : i32
    return %arg0, %c0_i32, %c0_i32_0, %c0_i32_1 : i32, i32, i32, i32
  }
  func.func @transform_8(%arg0: i32) -> (i32, i32, i32, i32) {
    %c0_i32 = arith.constant 0 : i32
    %c0_i32_0 = arith.constant 0 : i32
    %c0_i32_1 = arith.constant 0 : i32
    %c0_i32_2 = arith.constant 0 : i32
    return %arg0, %c0_i32, %c0_i32_0, %c0_i32_1 : i32, i32, i32, i32
  }
  func.func @transform_9(%arg0: i32) -> (i32, i32, i32) {
    %c0_i32 = arith.constant 0 : i32
    %c0_i32_0 = arith.constant 0 : i32
    %c0_i32_1 = arith.constant 0 : i32
    return %arg0, %c0_i32, %c0_i32_0 : i32, i32, i32
  }
  func.func @transform_10(%arg0: i32) -> (i32, i32, i32) {
    %c0_i32 = arith.constant 0 : i32
    %c0_i32_0 = arith.constant 0 : i32
    %c0_i32_1 = arith.constant 0 : i32
    return %arg0, %c0_i32, %c0_i32_0 : i32, i32, i32
  }
  func.func @transform_11(%arg0: i32) -> (i32, i32, i32) {
    %c0_i32 = arith.constant 0 : i32
    %c0_i32_0 = arith.constant 0 : i32
    %c0_i32_1 = arith.constant 0 : i32
    return %arg0, %c0_i32, %c0_i32_0 : i32, i32, i32
  }
}

module attributes {stable_mosaic.version = 11 : i64} {
  func.func @outconv_stats_kernel(%arg0: i32, %arg1: memref<1x16x16x8xf32, #tpu.memory_space<vmem>>, %arg2: memref<1x16x16x8xf32, #tpu.memory_space<vmem>>, %arg3: memref<1x1x8xf32, #tpu.memory_space<vmem>>, %arg4: memref<2x8xf32, #tpu.memory_space<vmem>>, %arg5: memref<2x8xf32, #tpu.memory_space<vmem>>, %arg6: memref<16x8xf32, #tpu.memory_space<vmem>>, %arg7: memref<1x16x16x8xf32, #tpu.memory_space<vmem>>, %arg8: memref<1x2x8xf32, #tpu.memory_space<vmem>>) attributes {dimension_semantics = [#tpu.dimension_semantics<parallel>], iteration_bounds = array<i64: 2>, scalar_prefetch = 0 : i64, scratch_operands = 0 : i64, tpu.core_type = #tpu.core_type<tc>, window_params = [{transform_indices = @transform_0, window_bounds = array<i64: 1, 16, 16, 8>}, {transform_indices = @transform_1, window_bounds = array<i64: 1, 16, 16, 8>}, {transform_indices = @transform_2, window_bounds = array<i64: 1, 1, 8>}, {pipeline_mode = #tpu.pipeline_mode<synchronous>, transform_indices = @transform_3, window_bounds = array<i64: 2, 8>}, {pipeline_mode = #tpu.pipeline_mode<synchronous>, transform_indices = @transform_4, window_bounds = array<i64: 2, 8>}, {pipeline_mode = #tpu.pipeline_mode<synchronous>, transform_indices = @transform_5, window_bounds = array<i64: 16, 8>}, {transform_indices = @transform_6, window_bounds = array<i64: 1, 16, 16, 8>}, {transform_indices = @transform_7, window_bounds = array<i64: 1, 2, 8>}]} {
    %c0 = arith.constant 0 : index
    %c0_0 = arith.constant 0 : index
    %0 = vector.load %arg4[%c0, %c0_0] : memref<2x8xf32, #tpu.memory_space<vmem>>, vector<2x8xf32>
    %c0_1 = arith.constant 0 : index
    %c0_2 = arith.constant 0 : index
    %1 = vector.load %arg5[%c0_1, %c0_2] : memref<2x8xf32, #tpu.memory_space<vmem>>, vector<2x8xf32>
    %c0_3 = arith.constant 0 : index
    %c0_4 = arith.constant 0 : index
    %c0_5 = arith.constant 0 : index
    %c0_6 = arith.constant 0 : index
    %2 = vector.load %arg1[%c0_3, %c0_4, %c0_5, %c0_6] : memref<1x16x16x8xf32, #tpu.memory_space<vmem>>, vector<1x16x16x8xf32>
    %3 = vector.shape_cast %2 : vector<1x16x16x8xf32> to vector<256x8xf32>
    %4 = vector.extract_strided_slice %0 {offsets = [0, 0], sizes = [1, 8], strides = [1, 1]} : vector<2x8xf32> to vector<1x8xf32>
    %5 = vector.broadcast %4 : vector<1x8xf32> to vector<256x8xf32>
    %6 = arith.mulf %3, %5 : vector<256x8xf32>
    %7 = vector.extract_strided_slice %0 {offsets = [1, 0], sizes = [1, 8], strides = [1, 1]} : vector<2x8xf32> to vector<1x8xf32>
    %8 = vector.broadcast %7 : vector<1x8xf32> to vector<256x8xf32>
    %9 = arith.addf %6, %8 : vector<256x8xf32>
    %cst = arith.constant 0.000000e+00 : f32
    %10 = vector.broadcast %cst : f32 to vector<256x8xf32>
    %11 = arith.maximumf %9, %10 : vector<256x8xf32>
    %c0_7 = arith.constant 0 : index
    %c0_8 = arith.constant 0 : index
    %c0_9 = arith.constant 0 : index
    %c0_10 = arith.constant 0 : index
    %12 = vector.load %arg2[%c0_7, %c0_8, %c0_9, %c0_10] : memref<1x16x16x8xf32, #tpu.memory_space<vmem>>, vector<1x16x16x8xf32>
    %13 = vector.shape_cast %12 : vector<1x16x16x8xf32> to vector<256x8xf32>
    %14 = vector.extract_strided_slice %1 {offsets = [0, 0], sizes = [1, 8], strides = [1, 1]} : vector<2x8xf32> to vector<1x8xf32>
    %15 = vector.broadcast %14 : vector<1x8xf32> to vector<256x8xf32>
    %16 = arith.mulf %13, %15 : vector<256x8xf32>
    %17 = vector.extract_strided_slice %1 {offsets = [1, 0], sizes = [1, 8], strides = [1, 1]} : vector<2x8xf32> to vector<1x8xf32>
    %18 = vector.broadcast %17 : vector<1x8xf32> to vector<256x8xf32>
    %19 = arith.addf %16, %18 : vector<256x8xf32>
    %cst_11 = arith.constant 0.000000e+00 : f32
    %20 = vector.broadcast %cst_11 : f32 to vector<256x8xf32>
    %21 = arith.maximumf %19, %20 : vector<256x8xf32>
    %22 = tpu.concatenate %11, %21 in 1 : vector<256x8xf32>, vector<256x8xf32> -> vector<256x16xf32>
    %c0_12 = arith.constant 0 : index
    %c0_13 = arith.constant 0 : index
    %23 = vector.load %arg6[%c0_12, %c0_13] : memref<16x8xf32, #tpu.memory_space<vmem>>, vector<16x8xf32>
    %cst_14 = arith.constant dense<0.000000e+00> : vector<256x8xf32>
    %24 = tpu.matmul %22, %23, %cst_14 {dimension_numbers = #tpu.dot_dimension_numbers<[1], [0], [0], [1], [0, 0, 1, 1], [], []>} : vector<256x16xf32>, vector<16x8xf32>, vector<256x8xf32> -> vector<256x8xf32>
    %c0_15 = arith.constant 0 : index
    %c0_16 = arith.constant 0 : index
    %c0_17 = arith.constant 0 : index
    %25 = vector.load %arg3[%c0_15, %c0_16, %c0_17] : memref<1x1x8xf32, #tpu.memory_space<vmem>>, vector<1x1x8xf32>
    %26 = vector.shape_cast %25 : vector<1x1x8xf32> to vector<1x8xf32>
    %27 = vector.broadcast %26 : vector<1x8xf32> to vector<256x8xf32>
    %28 = arith.addf %24, %27 : vector<256x8xf32>
    %29 = vector.shape_cast %28 : vector<256x8xf32> to vector<1x16x16x8xf32>
    %c0_18 = arith.constant 0 : index
    %c0_19 = arith.constant 0 : index
    %c0_20 = arith.constant 0 : index
    %c0_21 = arith.constant 0 : index
    %30 = vector.load %arg7[%c0_18, %c0_19, %c0_20, %c0_21] : memref<1x16x16x8xf32, #tpu.memory_space<vmem>>, vector<1x16x16x8xf32>
    tpu.vector_store %arg7[%c0_18, %c0_19, %c0_20, %c0_21], %29 {strides = array<i32>} : memref<1x16x16x8xf32, #tpu.memory_space<vmem>>, vector<1x16x16x8xf32>,
    %cst_22 = arith.constant dense<0.000000e+00> : vector<8xf32>
    %31 = vector.multi_reduction <add>, %28, %cst_22 [0] : vector<256x8xf32> to vector<8xf32>
    %32 = vector.shape_cast %31 : vector<8xf32> to vector<1x8xf32>
    %33 = arith.mulf %28, %28 : vector<256x8xf32>
    %cst_23 = arith.constant dense<0.000000e+00> : vector<8xf32>
    %34 = vector.multi_reduction <add>, %33, %cst_23 [0] : vector<256x8xf32> to vector<8xf32>
    %35 = vector.shape_cast %34 : vector<8xf32> to vector<1x8xf32>
    %36 = tpu.concatenate %32, %35 in 0 : vector<1x8xf32>, vector<1x8xf32> -> vector<2x8xf32>
    %37 = vector.shape_cast %36 : vector<2x8xf32> to vector<1x2x8xf32>
    %c0_24 = arith.constant 0 : index
    %c0_25 = arith.constant 0 : index
    %c0_26 = arith.constant 0 : index
    %38 = vector.load %arg8[%c0_24, %c0_25, %c0_26] : memref<1x2x8xf32, #tpu.memory_space<vmem>>, vector<1x2x8xf32>
    tpu.vector_store %arg8[%c0_24, %c0_25, %c0_26], %37 {strides = array<i32>} : memref<1x2x8xf32, #tpu.memory_space<vmem>>, vector<1x2x8xf32>,
    return
  }
  func.func @transform_0(%arg0: i32) -> (i32, i32, i32, i32) {
    %c0_i32 = arith.constant 0 : i32
    %c0_i32_0 = arith.constant 0 : i32
    %c0_i32_1 = arith.constant 0 : i32
    %c0_i32_2 = arith.constant 0 : i32
    return %arg0, %c0_i32, %c0_i32_0, %c0_i32_1 : i32, i32, i32, i32
  }
  func.func @transform_1(%arg0: i32) -> (i32, i32, i32, i32) {
    %c0_i32 = arith.constant 0 : i32
    %c0_i32_0 = arith.constant 0 : i32
    %c0_i32_1 = arith.constant 0 : i32
    %c0_i32_2 = arith.constant 0 : i32
    return %arg0, %c0_i32, %c0_i32_0, %c0_i32_1 : i32, i32, i32, i32
  }
  func.func @transform_2(%arg0: i32) -> (i32, i32, i32) {
    %c0_i32 = arith.constant 0 : i32
    %c0_i32_0 = arith.constant 0 : i32
    %c0_i32_1 = arith.constant 0 : i32
    return %arg0, %c0_i32, %c0_i32_0 : i32, i32, i32
  }
  func.func @transform_3(%arg0: i32) -> (i32, i32) {
    %c0_i32 = arith.constant 0 : i32
    %c0_i32_0 = arith.constant 0 : i32
    %c0_i32_1 = arith.constant 0 : i32
    return %c0_i32, %c0_i32_0 : i32, i32
  }
  func.func @transform_4(%arg0: i32) -> (i32, i32) {
    %c0_i32 = arith.constant 0 : i32
    %c0_i32_0 = arith.constant 0 : i32
    %c0_i32_1 = arith.constant 0 : i32
    return %c0_i32, %c0_i32_0 : i32, i32
  }
  func.func @transform_5(%arg0: i32) -> (i32, i32) {
    %c0_i32 = arith.constant 0 : i32
    %c0_i32_0 = arith.constant 0 : i32
    %c0_i32_1 = arith.constant 0 : i32
    return %c0_i32, %c0_i32_0 : i32, i32
  }
  func.func @transform_6(%arg0: i32) -> (i32, i32, i32, i32) {
    %c0_i32 = arith.constant 0 : i32
    %c0_i32_0 = arith.constant 0 : i32
    %c0_i32_1 = arith.constant 0 : i32
    %c0_i32_2 = arith.constant 0 : i32
    return %arg0, %c0_i32, %c0_i32_0, %c0_i32_1 : i32, i32, i32, i32
  }
  func.func @transform_7(%arg0: i32) -> (i32, i32, i32) {
    %c0_i32 = arith.constant 0 : i32
    %c0_i32_0 = arith.constant 0 : i32
    %c0_i32_1 = arith.constant 0 : i32
    return %arg0, %c0_i32, %c0_i32_0 : i32, i32, i32
  }
}

module attributes {stable_mosaic.version = 11 : i64} {
  func.func @norm_relu_kernel(%arg0: i32, %arg1: memref<1x16x128xf32, #tpu.memory_space<vmem>>, %arg2: memref<2x128xf32, #tpu.memory_space<vmem>>, %arg3: memref<1x16x128xf32, #tpu.memory_space<vmem>>) attributes {dimension_semantics = [#tpu.dimension_semantics<parallel>], iteration_bounds = array<i64: 2>, scalar_prefetch = 0 : i64, scratch_operands = 0 : i64, tpu.core_type = #tpu.core_type<tc>, window_params = [{transform_indices = @transform_0, window_bounds = array<i64: 1, 16, 128>}, {pipeline_mode = #tpu.pipeline_mode<synchronous>, transform_indices = @transform_1, window_bounds = array<i64: 2, 128>}, {transform_indices = @transform_2, window_bounds = array<i64: 1, 16, 128>}]} {
    %c0 = arith.constant 0 : index
    %c0_0 = arith.constant 0 : index
    %0 = vector.load %arg2[%c0, %c0_0] : memref<2x128xf32, #tpu.memory_space<vmem>>, vector<2x128xf32>
    %c0_1 = arith.constant 0 : index
    %c0_2 = arith.constant 0 : index
    %c0_3 = arith.constant 0 : index
    %1 = vector.load %arg1[%c0_1, %c0_2, %c0_3] : memref<1x16x128xf32, #tpu.memory_space<vmem>>, vector<1x16x128xf32>
    %2 = vector.extract_strided_slice %0 {offsets = [0, 0], sizes = [1, 128], strides = [1, 1]} : vector<2x128xf32> to vector<1x128xf32>
    %3 = vector.shape_cast %2 : vector<1x128xf32> to vector<1x1x128xf32>
    %4 = vector.broadcast %3 : vector<1x1x128xf32> to vector<1x16x128xf32>
    %5 = arith.mulf %1, %4 : vector<1x16x128xf32>
    %6 = vector.extract_strided_slice %0 {offsets = [1, 0], sizes = [1, 128], strides = [1, 1]} : vector<2x128xf32> to vector<1x128xf32>
    %7 = vector.shape_cast %6 : vector<1x128xf32> to vector<1x1x128xf32>
    %8 = vector.broadcast %7 : vector<1x1x128xf32> to vector<1x16x128xf32>
    %9 = arith.addf %5, %8 : vector<1x16x128xf32>
    %cst = arith.constant 0.000000e+00 : f32
    %10 = vector.broadcast %cst : f32 to vector<1x16x128xf32>
    %11 = arith.maximumf %9, %10 : vector<1x16x128xf32>
    %c0_4 = arith.constant 0 : index
    %c0_5 = arith.constant 0 : index
    %c0_6 = arith.constant 0 : index
    %12 = vector.load %arg3[%c0_4, %c0_5, %c0_6] : memref<1x16x128xf32, #tpu.memory_space<vmem>>, vector<1x16x128xf32>
    tpu.vector_store %arg3[%c0_4, %c0_5, %c0_6], %11 {strides = array<i32>} : memref<1x16x128xf32, #tpu.memory_space<vmem>>, vector<1x16x128xf32>,
    return
  }
  func.func @transform_0(%arg0: i32) -> (i32, i32, i32) {
    %c0_i32 = arith.constant 0 : i32
    %c0_i32_0 = arith.constant 0 : i32
    %c0_i32_1 = arith.constant 0 : i32
    return %arg0, %c0_i32, %c0_i32_0 : i32, i32, i32
  }
  func.func @transform_1(%arg0: i32) -> (i32, i32) {
    %c0_i32 = arith.constant 0 : i32
    %c0_i32_0 = arith.constant 0 : i32
    %c0_i32_1 = arith.constant 0 : i32
    return %c0_i32, %c0_i32_0 : i32, i32
  }
  func.func @transform_2(%arg0: i32) -> (i32, i32, i32) {
    %c0_i32 = arith.constant 0 : i32
    %c0_i32_0 = arith.constant 0 : i32
    %c0_i32_1 = arith.constant 0 : i32
    return %arg0, %c0_i32, %c0_i32_0 : i32, i32, i32
  }
}

</mosaic_0001>

<llo_original>
// kernel: tile.13
$region0: #{tile.13}
  #allocation0 [shape = 's32[1]{0}', space=sflag, size = 0x4, scoped, tag = 'scoped memory for tile.13']
  %s0 = inlined_call_operand.vmem [shape: f32[8], index: 0, kind: input, shape index: {}]
  %s1 = inlined_call_operand.vmem [shape: f32[16,8], index: 1, kind: output, shape index: {}]
  // Predicated region
  $region2: #{tile.13} parent=0 // pred_check
    _
  $region3: #{tile.13} parent=0 // pred_check_branch
    %3 = sbr.rel (0) target = $region5
  $region4: #{tile.13} parent=0 // pred_region
    _
  $region5: #{tile.13} parent=0 // pred_fallthru
    _
  %v4 = vld [vmem:[%s0] ss:$0 sm:$0xff]
  %5 = vst [vmem:[%s1] sm:$0xff] %v4
  %s6 = scalar_lea.vmem %s1, 8
  %7 = vst [vmem:[%s6] sm:$0xff] %v4

// kernel: tile.18
$region0: #{tile.18}
  %s0 = inlined_call_operand.vmem [shape: f32[16,8], index: 0, kind: input, shape index: {}]
  %s1 = inlined_call_operand.vmem [shape: f32[1,128], index: 1, kind: output, shape index: {}]
  $region1: #{tile.18} parent=0
    #allocation0 [shape = 'u8[4096]{0}', space=vmem, size = 0x1000, scoped, tag = 'scoped mem for output reshape']
    %v2 = vld [vmem:[%s0] sm:$0x1]
    %vm3 = vcmask 64512
    %4 = vst.msk [vmem:[#allocation0] sm:$0x1] %vm3, %v2
    %s5 = scalar_lea.vmem %s0, 15
    %v6 = vld [vmem:[%s5] sm:$0x1]
    %7 = vrot.lane.b32.xlu0 %v6, 120
    %v8 = vpop.permute.xlu0 %7
    %vm9 = vcmask 1048512
    %10 = vst.msk [vmem:[#allocation0] sm:$0x1] %vm9, %v8
    %s11 = scalar_lea.vmem %s0, 14
    %v12 = vld [vmem:[%s11] sm:$0x1]
    %13 = vrot.lane.b32.xlu0 %v12, 112
    %v14 = vpop.permute.xlu0 %13
    %vm15 = vcmask 982912
    %16 = vst.msk [vmem:[#allocation0] sm:$0x1] %vm15, %v14
    %s17 = scalar_lea.vmem %s0, 13
    %v18 = vld [vmem:[%s17] sm:$0x1]
    %19 = vrot.lane.b32.xlu0 %v18, 104
    %v20 = vpop.permute.xlu0 %19
    %vm21 = vcmask 917312
    %22 = vst.msk [vmem:[#allocation0] sm:$0x1] %vm21, %v20
    %s23 = scalar_lea.vmem %s0, 12
    %v24 = vld [vmem:[%s23] sm:$0x1]
    %25 = vrot.lane.b32.xlu0 %v24, 96
    %v26 = vpop.permute.xlu0 %25
    %vm27 = vcmask 851712
    %28 = vst.msk [vmem:[#allocation0] sm:$0x1] %vm27, %v26
    %s29 = scalar_lea.vmem %s0, 11
    %v30 = vld [vmem:[%s29] sm:$0x1]
    %31 = vrot.lane.b32.xlu0 %v30, 88
    %v32 = vpop.permute.xlu0 %31
    %vm33 = vcmask 786112
    %34 = vst.msk [vmem:[#allocation0] sm:$0x1] %vm33, %v32
    %s35 = scalar_lea.vmem %s0, 10
    %v36 = vld [vmem:[%s35] sm:$0x1]
    %37 = vrot.lane.b32.xlu0 %v36, 80
    %v38 = vpop.permute.xlu0 %37
    %vm39 = vcmask 720512
    %40 = vst.msk [vmem:[#allocation0] sm:$0x1] %vm39, %v38
    %s41 = scalar_lea.vmem %s0, 9
    %v42 = vld [vmem:[%s41] sm:$0x1]
    %43 = vrot.lane.b32.xlu0 %v42, 72
    %v44 = vpop.permute.xlu0 %43
    %vm45 = vcmask 654912
    %46 = vst.msk [vmem:[#allocation0] sm:$0x1] %vm45, %v44
    %s47 = scalar_lea.vmem %s0, 8
    %v48 = vld [vmem:[%s47] sm:$0x1]
    %49 = vrot.lane.b32.xlu0 %v48, 64
    %v50 = vpop.permute.xlu0 %49
    %vm51 = vcmask 589312
    %52 = vst.msk [vmem:[#allocation0] sm:$0x1] %vm51, %v50
    %s53 = scalar_lea.vmem %s0, 7
    %v54 = vld [vmem:[%s53] sm:$0x1]
    %55 = vrot.lane.b32.xlu0 %v54, 56
    %v56 = vpop.permute.xlu0 %55
    %vm57 = vcmask 523712
    %58 = vst.msk [vmem:[#allocation0] sm:$0x1] %vm57, %v56
    %s59 = scalar_lea.vmem %s0, 6
    %v60 = vld [vmem:[%s59] sm:$0x1]
    %61 = vrot.lane.b32.xlu0 %v60, 48
    %v62 = vpop.permute.xlu0 %61
    %vm63 = vcmask 458112
    %64 = vst.msk [vmem:[#allocation0] sm:$0x1] %vm63, %v62
    %s65 = scalar_lea.vmem %s0, 5
    %v66 = vld [vmem:[%s65] sm:$0x1]
    %67 = vrot.lane.b32.xlu0 %v66, 40
    %v68 = vpop.permute.xlu0 %67
    %vm69 = vcmask 392512
    %70 = vst.msk [vmem:[#allocation0] sm:$0x1] %vm69, %v68
    %s71 = scalar_lea.vmem %s0, 4
    %v72 = vld [vmem:[%s71] sm:$0x1]
    %73 = vrot.lane.b32.xlu0 %v72, 32
    %v74 = vpop.permute.xlu0 %73
    %vm75 = vcmask 326912
    %76 = vst.msk [vmem:[#allocation0] sm:$0x1] %vm75, %v74
    %s77 = scalar_lea.vmem %s0, 3
    %v78 = vld [vmem:[%s77] sm:$0x1]
    %79 = vrot.lane.b32.xlu0 %v78, 24
    %v80 = vpop.permute.xlu0 %79
    %vm81 = vcmask 261312
    %82 = vst.msk [vmem:[#allocation0] sm:$0x1] %vm81, %v80
    %s83 = scalar_lea.vmem %s0, 2
    %v84 = vld [vmem:[%s83] sm:$0x1]
    %85 = vrot.lane.b32.xlu0 %v84, 16
    %v86 = vpop.permute.xlu0 %85
    %vm87 = vcmask 195712
    %88 = vst.msk [vmem:[#allocation0] sm:$0x1] %vm87, %v86
    %s89 = scalar_lea.vmem %s0, 1
    %v90 = vld [vmem:[%s89] sm:$0x1]
    %91 = vrot.lane.b32.xlu0 %v90, 8
    %v92 = vpop.permute.xlu0 %91
    %vm93 = vcmask 130112
    %94 = vst.msk [vmem:[#allocation0] sm:$0x1] %vm93, %v92
    %s96 = sshllo.u32 0, 1
    %v98 = vld [vmem:[#allocation0] sm:%s96]
    %s99 = sshllo.u32 0, 1
    %100 = vst [vmem:[%s1] sm:%s99] %v98

// kernel: aspp_forward.5
$region0: #{aspp_forward.5}
  #allocation0 [shape = 'u32[]', space=smem, size = 0x4, offset = 0x4, fixed_abs, tag = 'smem constant byte address 0x4 - core index']
  #allocation1 [shape = 'u32[144,128]{1,0:T(1,128)}', space=vmem, size = 0x12000, scoped, tag = 'internal scratch']
  %s0 = inlined_call_operand.vmem [shape: f32[2,16,128], index: 0, kind: input, shape index: {}]
  %s1 = inlined_call_operand.vmem [shape: f32[2,128], index: 1, kind: input, shape index: {}]
  %s2 = inlined_call_operand.vmem [shape: f32[2,16,128], index: 2, kind: output, shape index: {}]
  %s3 = sld [smem:[#allocation0]]
  $region41: #{aspp_forward.5} parent=0
    _
  %s5 = ssub.s32 1, %s3
  %s6 = scalar_select 0, %s5, %s3
  loop: start=0, step=1, limit=4
  $region2: #{aspp_forward.5} parent=0 // loop_pre_header
    _
  $region3: #{aspp_forward.5} parent=0 // loop_header
    %s8 = sphi 0, %s12
    %p9 = scmp.ge.s32.totalorder %s8, 4
    %s18 = sphi 0, %s20
    %s21 = sphi 0, %s18
    %s22 = sphi 0, %s21
    %s38 = sphi 0, %s22
    %s42 = sphi 0, %s42
    %s44 = sphi 0, %s42
    %s45 = sphi 0, %s44
    %s59 = sphi 0, %s45
    %s65 = sphi 0, %s67
    %s68 = sphi 0, %s65
    %s69 = sphi 0, %s68
    %s85 = sphi 0, %s69
  $region4: #{aspp_forward.5} parent=0 // loop_header_branch
    %11 = sbr.rel (%p9) target = $region8
  $region5: #{aspp_forward.5} parent=0 // loop_body
    %s13 = ssub.s32 %s8, 1
    %s14 = ssub.s32 %s8, 2
    %s15 = sadd.s32 %s8, 1
    %s16 = ssub.s32 %s8, %s15
    %p17 = scmp.eq.s32.totalorder %s16, 0
    %s19 = sadd.s32 %s18, 1
    %s20 = scalar_select %p17, %s18, %s19
    %p23 = pneg %p17
    %p24 = scmp.eq.s32.totalorder %s8, 1
    %p25 = por %p23, %p24
    %p26 = scmp.ne.s32.totalorder %s18, %s21
    %p27 = scmp.eq.s32.totalorder %s8, 0
    %p28 = por %p26, %p27
    %p29 = scmp.ne.s32.totalorder %s18, %s21
    %p30 = scmp.eq.s32.totalorder %s13, 1
    %p31 = por %p29, %p30
    %p32 = scmp.ne.s32.totalorder %s21, %s22
    %p33 = scmp.eq.s32.totalorder %s13, 0
    %p34 = por %p32, %p33
    %p35 = scmp.ne.s32.totalorder %s21, %s22
    %p36 = scmp.eq.s32.totalorder %s14, 1
    %p37 = por %p35, %p36
    %p39 = scmp.ne.s32.totalorder %s22, %s38
    %p40 = scmp.eq.s32.totalorder %s14, 0
    %p41 = por %p39, %p40
    %s43 = sadd.s32 %s42, 1
    %p46 = scmp.eq.s32.totalorder %s8, 1
    %p47 = scmp.ne.s32.totalorder %s42, %s44
    %p48 = scmp.eq.s32.totalorder %s8, 0
    %p49 = por %p47, %p48
    %p50 = scmp.ne.s32.totalorder %s42, %s44
    %p51 = scmp.eq.s32.totalorder %s13, 1
    %p52 = por %p50, %p51
    %p53 = scmp.ne.s32.totalorder %s44, %s45
    %p54 = scmp.eq.s32.totalorder %s13, 0
    %p55 = por %p53, %p54
    %p56 = scmp.ne.s32.totalorder %s44, %s45
    %p57 = scmp.eq.s32.totalorder %s14, 1
    %p58 = por %p56, %p57
    %p60 = scmp.ne.s32.totalorder %s45, %s59
    %p61 = scmp.eq.s32.totalorder %s14, 0
    %p62 = por %p60, %p61
    %s63 = ssub.s32 %s8, %s15
    %p64 = scmp.eq.s32.totalorder %s63, 0
    %s66 = sadd.s32 %s65, 1
    %s67 = scalar_select %p64, %s65, %s66
    %p70 = pneg %p64
    %p71 = scmp.eq.s32.totalorder %s8, 1
    %p72 = por %p70, %p71
    %p73 = scmp.ne.s32.totalorder %s65, %s68
    %p74 = scmp.eq.s32.totalorder %s8, 0
    %p75 = por %p73, %p74
    %p76 = scmp.ne.s32.totalorder %s65, %s68
    %p77 = scmp.eq.s32.totalorder %s13, 1
    %p78 = por %p76, %p77
    %p79 = scmp.ne.s32.totalorder %s68, %s69
    %p80 = scmp.eq.s32.totalorder %s13, 0
    %p81 = por %p79, %p80
    %p82 = scmp.ne.s32.totalorder %s68, %s69
    %p83 = scmp.eq.s32.totalorder %s14, 1
    %p84 = por %p82, %p83
    %p86 = scmp.ne.s32.totalorder %s69, %s85
    %p87 = scmp.eq.s32.totalorder %s14, 0
    %p88 = por %p86, %p87
    %p89 = scmp.le.s32.totalorder 1, %s8
    %p90 = scmp.lt.s32.totalorder %s8, 3
    %p91 = pnand %p89, %p90
    %p92 = pneg %p91
    // Predicated region
    $region9: #{aspp_forward.5} parent=5 // pred_check
      _
    $region10: #{aspp_forward.5} parent=5 // pred_check_branch
      %94 = sbr.rel (%p91) target = $region12
    $region11: #{aspp_forward.5} parent=5 // pred_region
      %s95 = ssub.s32 %s8, 1
      // Predicated region
      $region13: #{aspp_forward.5} parent=11 // pred_check
        %p96 = pneg %p55
      $region14: #{aspp_forward.5} parent=11 // pred_check_branch
        %98 = sbr.rel (%p96) target = $region16
      $region15: #{aspp_forward.5} parent=11 // pred_region
        _
      $region16: #{aspp_forward.5} parent=11 // pred_fallthru
        _
    $region12: #{aspp_forward.5} parent=5 // pred_fallthru
      _
    %p99 = scmp.lt.s32.totalorder %s8, 2
    // Predicated region
    $region17: #{aspp_forward.5} parent=5 // pred_check
      %p100 = pneg %p99
    $region18: #{aspp_forward.5} parent=5 // pred_check_branch
      %102 = sbr.rel (%p100) target = $region20
    $region19: #{aspp_forward.5} parent=5 // pred_region
      // Predicated region
      $region21: #{aspp_forward.5} parent=19 // pred_check
        %p103 = pneg %p28
      $region22: #{aspp_forward.5} parent=19 // pred_check_branch
        %105 = sbr.rel (%p103) target = $region24
      $region23: #{aspp_forward.5} parent=19 // pred_region
        %p106 = scmp.lt.s32.totalorder %s8, 1
        %s107 = scalar_select %p106, %s8, 1
        %s108 = smul.addr %s107, 2
        %s109 = smul.addr %s108, 8
        %s110 = scalar_lea.vmem %s0, %s109
      $region24: #{aspp_forward.5} parent=19 // pred_fallthru
        _
    $region20: #{aspp_forward.5} parent=5 // pred_fallthru
      _
    %p111 = scmp.le.s32.totalorder 1, %s8
    %p112 = scmp.lt.s32.totalorder %s8, 3
    %p113 = pnand %p111, %p112
    %p114 = pneg %p113
    // Predicated region
    $region25: #{aspp_forward.5} parent=5 // pred_check
      _
    $region26: #{aspp_forward.5} parent=5 // pred_check_branch
      %116 = sbr.rel (%p113) target = $region28
    $region27: #{aspp_forward.5} parent=5 // pred_region
      %s117 = ssub.s32 %s8, 1
      %p118 = scmp.lt.s32.totalorder %s13, 1
      %s119 = scalar_select %p118, %s13, 1
      %s120 = smul.addr %s119, 2
      %s121 = smul.addr %s120, 8
      %s122 = scalar_lea.vmem %s0, %s121
      %p123 = pneg %p34
      %p124 = pneg %p31
      %p125 = pneg %p55
      %p126 = pneg %p52
      %p127 = pneg %p81
      %p128 = pneg %p78
      %p129 = scmp.lt.s32.totalorder %s13, 1
      %s130 = scalar_select %p129, %s13, 1
      %s131 = smul.addr %s130, 2
      %s132 = smul.addr %s131, 8
      %s133 = scalar_lea.vmem %s2, %s132
      %p134 = scmp.lt.s32.totalorder %s13, 1
      %s135 = scalar_select %p134, %s13, 1
      %s136 = smul.addr %s135, 2
      %s137 = smul.addr %s136, 8
      %s138 = scalar_lea.vmem %s0, %s137
      %p139 = scmp.lt.s32.totalorder %s13, 1
      %s140 = scalar_select %p139, %s13, 1
      %s141 = smul.addr %s140, 2
      %s142 = smul.addr %s141, 8
      %s143 = scalar_lea.vmem %s2, %s142
      %v144 = vld [vmem:[%s1] sm:$0x3]
      %v145 = vld [vmem:[%s138] sm:$0xff]
      %v146 = vld [vmem:[%s138 + $0x8] sm:$0xff]
      %v147 = vlaneseq
      %v148 = vshrl.u32 %v147, 7
      %v149 = vsub.s32 0, %v148
      %v150 = vrot.slane %v144, %v149
      %v151 = vmul.f32 %v145, %v150
      %v152 = vmul.f32 %v146, %v150
      %v153 = vlaneseq
      %v154 = vshrl.u32 %v153, 7
      %v155 = vsub.s32 1, %v154
      %v156 = vrot.slane %v144, %v155
      %v157 = vadd.f32 %v151, %v156
      %v158 = vadd.f32 %v152, %v156
      %v159 = vmax.f32 %v157, 0.0
      %v160 = vmax.f32 %v158, 0.0
      %161 = vst [vmem:[%s143] sm:$0xff] %v159
      %162 = vst [vmem:[%s143 + $0x8] sm:$0xff] %v160
      %p163 = scmp.lt.s32.totalorder %s13, 1
      %s164 = scalar_select %p163, %s13, 1
      %s165 = smul.addr %s164, 2
      %s166 = smul.addr %s165, 8
      %s167 = scalar_lea.vmem %s2, %s166
      // Predicated region
      $region29: #{aspp_forward.5} parent=27 // pred_check
        %p168 = pneg %p78
      $region30: #{aspp_forward.5} parent=27 // pred_check_branch
        %170 = sbr.rel (%p168) target = $region32
      $region31: #{aspp_forward.5} parent=27 // pred_region
        _
      $region32: #{aspp_forward.5} parent=27 // pred_fallthru
        _
    $region28: #{aspp_forward.5} parent=5 // pred_fallthru
      _
    %p171 = scmp.le.s32.totalorder 2, %s8
    // Predicated region
    $region33: #{aspp_forward.5} parent=5 // pred_check
      %p172 = pneg %p171
    $region34: #{aspp_forward.5} parent=5 // pred_check_branch
      %174 = sbr.rel (%p172) target = $region36
    $region35: #{aspp_forward.5} parent=5 // pred_region
      %s175 = ssub.s32 %s8, 2
      // Predicated region
      $region37: #{aspp_forward.5} parent=35 // pred_check
        %p176 = pneg %p84
      $region38: #{aspp_forward.5} parent=35 // pred_check_branch
        %178 = sbr.rel (%p176) target = $region40
      $region39: #{aspp_forward.5} parent=35 // pred_region
        %p179 = scmp.lt.s32.totalorder %s14, 1
        %s180 = scalar_select %p179, %s14, 1
        %s181 = smul.addr %s180, 2
        %s182 = smul.addr %s181, 8
        %s183 = scalar_lea.vmem %s2, %s182
      $region40: #{aspp_forward.5} parent=35 // pred_fallthru
        _
    $region36: #{aspp_forward.5} parent=5 // pred_fallthru
      _
  $region6: #{aspp_forward.5} parent=0 // loop_footer
    %s12 = sadd.s32 1, %s8
  $region7: #{aspp_forward.5} parent=0 // loop_footer_branch
    %7 = sbr.rel target = $region3
  $region8: #{aspp_forward.5} parent=0 // loop_exit
    _

// kernel: aspp_forward.4
$region0: #{aspp_forward.4}
  #allocation0 [shape = 'u32[]', space=smem, size = 0x4, offset = 0x4, fixed_abs, tag = 'smem constant byte address 0x4 - core index']
  #allocation1 [shape = 'u32[144,128]{1,0:T(1,128)}', space=vmem, size = 0x12000, scoped, tag = 'internal scratch']
  %s0 = inlined_call_operand.vmem [shape: f32[2,16,16,8], index: 0, kind: input, shape index: {}]
  %s1 = inlined_call_operand.vmem [shape: f32[2,16,16,8], index: 1, kind: input, shape index: {}]
  %s2 = inlined_call_operand.vmem [shape: f32[2,1,8], index: 2, kind: input, shape index: {}]
  %s3 = inlined_call_operand.vmem [shape: f32[2,8], index: 3, kind: input, shape index: {}]
  %s4 = inlined_call_operand.vmem [shape: f32[2,8], index: 4, kind: input, shape index: {}]
  %s5 = inlined_call_operand.vmem [shape: f32[16,8], index: 5, kind: input, shape index: {}]
  %s6 = inlined_call_operand.vmem [shape: f32[2,16,16,8], index: 6, kind: output, shape index: {0}]
  %s7 = inlined_call_operand.vmem [shape: f32[2,2,8], index: 7, kind: output, shape index: {1}]
  %8 = xla_tuple %s6, %s7
  %s9 = sld [smem:[#allocation0]]
  $region65: #{aspp_forward.4} parent=0
    _
  %s11 = ssub.s32 1, %s9
  %s12 = scalar_select 0, %s11, %s9
  loop: start=0, step=1, limit=4
  $region2: #{aspp_forward.4} parent=0 // loop_pre_header
    _
  $region3: #{aspp_forward.4} parent=0 // loop_header
    %s14 = sphi 0, %s18
    %p15 = scmp.ge.s32.totalorder %s14, 4
    %s24 = sphi 0, %s26
    %s27 = sphi 0, %s24
    %s28 = sphi 0, %s27
    %s44 = sphi 0, %s28
    %s50 = sphi 0, %s52
    %s53 = sphi 0, %s50
    %s54 = sphi 0, %s53
    %s70 = sphi 0, %s54
    %s76 = sphi 0, %s78
    %s79 = sphi 0, %s76
    %s80 = sphi 0, %s79
    %s96 = sphi 0, %s80
    %s100 = sphi 0, %s100
    %s102 = sphi 0, %s100
    %s103 = sphi 0, %s102
    %s117 = sphi 0, %s103
    %s121 = sphi 0, %s121
    %s123 = sphi 0, %s121
    %s124 = sphi 0, %s123
    %s138 = sphi 0, %s124
    %s142 = sphi 0, %s142
    %s144 = sphi 0, %s142
    %s145 = sphi 0, %s144
    %s159 = sphi 0, %s145
    %s165 = sphi 0, %s167
    %s168 = sphi 0, %s165
    %s169 = sphi 0, %s168
    %s185 = sphi 0, %s169
    %s191 = sphi 0, %s193
    %s194 = sphi 0, %s191
    %s195 = sphi 0, %s194
    %s211 = sphi 0, %s195
  $region4: #{aspp_forward.4} parent=0 // loop_header_branch
    %17 = sbr.rel (%p15) target = $region8
  $region5: #{aspp_forward.4} parent=0 // loop_body
    %s19 = ssub.s32 %s14, 1
    %s20 = ssub.s32 %s14, 2
    %s21 = sadd.s32 %s14, 1
    %s22 = ssub.s32 %s14, %s21
    %p23 = scmp.eq.s32.totalorder %s22, 0
    %s25 = sadd.s32 %s24, 1
    %s26 = scalar_select %p23, %s24, %s25
    %p29 = pneg %p23
    %p30 = scmp.eq.s32.totalorder %s14, 1
    %p31 = por %p29, %p30
    %p32 = scmp.ne.s32.totalorder %s24, %s27
    %p33 = scmp.eq.s32.totalorder %s14, 0
    %p34 = por %p32, %p33
    %p35 = scmp.ne.s32.totalorder %s24, %s27
    %p36 = scmp.eq.s32.totalorder %s19, 1
    %p37 = por %p35, %p36
    %p38 = scmp.ne.s32.totalorder %s27, %s28
    %p39 = scmp.eq.s32.totalorder %s19, 0
    %p40 = por %p38, %p39
    %p41 = scmp.ne.s32.totalorder %s27, %s28
    %p42 = scmp.eq.s32.totalorder %s20, 1
    %p43 = por %p41, %p42
    %p45 = scmp.ne.s32.totalorder %s28, %s44
    %p46 = scmp.eq.s32.totalorder %s20, 0
    %p47 = por %p45, %p46
    %s48 = ssub.s32 %s14, %s21
    %p49 = scmp.eq.s32.totalorder %s48, 0
    %s51 = sadd.s32 %s50, 1
    %s52 = scalar_select %p49, %s50, %s51
    %p55 = pneg %p49
    %p56 = scmp.eq.s32.totalorder %s14, 1
    %p57 = por %p55, %p56
    %p58 = scmp.ne.s32.totalorder %s50, %s53
    %p59 = scmp.eq.s32.totalorder %s14, 0
    %p60 = por %p58, %p59
    %p61 = scmp.ne.s32.totalorder %s50, %s53
    %p62 = scmp.eq.s32.totalorder %s19, 1
    %p63 = por %p61, %p62
    %p64 = scmp.ne.s32.totalorder %s53, %s54
    %p65 = scmp.eq.s32.totalorder %s19, 0
    %p66 = por %p64, %p65
    %p67 = scmp.ne.s32.totalorder %s53, %s54
    %p68 = scmp.eq.s32.totalorder %s20, 1
    %p69 = por %p67, %p68
    %p71 = scmp.ne.s32.totalorder %s54, %s70
    %p72 = scmp.eq.s32.totalorder %s20, 0
    %p73 = por %p71, %p72
    %s74 = ssub.s32 %s14, %s21
    %p75 = scmp.eq.s32.totalorder %s74, 0
    %s77 = sadd.s32 %s76, 1
    %s78 = scalar_select %p75, %s76, %s77
    %p81 = pneg %p75
    %p82 = scmp.eq.s32.totalorder %s14, 1
    %p83 = por %p81, %p82
    %p84 = scmp.ne.s32.totalorder %s76, %s79
    %p85 = scmp.eq.s32.totalorder %s14, 0
    %p86 = por %p84, %p85
    %p87 = scmp.ne.s32.totalorder %s76, %s79
    %p88 = scmp.eq.s32.totalorder %s19, 1
    %p89 = por %p87, %p88
    %p90 = scmp.ne.s32.totalorder %s79, %s80
    %p91 = scmp.eq.s32.totalorder %s19, 0
    %p92 = por %p90, %p91
    %p93 = scmp.ne.s32.totalorder %s79, %s80
    %p94 = scmp.eq.s32.totalorder %s20, 1
    %p95 = por %p93, %p94
    %p97 = scmp.ne.s32.totalorder %s80, %s96
    %p98 = scmp.eq.s32.totalorder %s20, 0
    %p99 = por %p97, %p98
    %s101 = sadd.s32 %s100, 1
    %p104 = scmp.eq.s32.totalorder %s14, 1
    %p105 = scmp.ne.s32.totalorder %s100, %s102
    %p106 = scmp.eq.s32.totalorder %s14, 0
    %p107 = por %p105, %p106
    %p108 = scmp.ne.s32.totalorder %s100, %s102
    %p109 = scmp.eq.s32.totalorder %s19, 1
    %p110 = por %p108, %p109
    %p111 = scmp.ne.s32.totalorder %s102, %s103
    %p112 = scmp.eq.s32.totalorder %s19, 0
    %p113 = por %p111, %p112
    %p114 = scmp.ne.s32.totalorder %s102, %s103
    %p115 = scmp.eq.s32.totalorder %s20, 1
    %p116 = por %p114, %p115
    %p118 = scmp.ne.s32.totalorder %s103, %s117
    %p119 = scmp.eq.s32.totalorder %s20, 0
    %p120 = por %p118, %p119
    %s122 = sadd.s32 %s121, 1
    %p125 = scmp.eq.s32.totalorder %s14, 1
    %p126 = scmp.ne.s32.totalorder %s121, %s123
    %p127 = scmp.eq.s32.totalorder %s14, 0
    %p128 = por %p126, %p127
    %p129 = scmp.ne.s32.totalorder %s121, %s123
    %p130 = scmp.eq.s32.totalorder %s19, 1
    %p131 = por %p129, %p130
    %p132 = scmp.ne.s32.totalorder %s123, %s124
    %p133 = scmp.eq.s32.totalorder %s19, 0
    %p134 = por %p132, %p133
    %p135 = scmp.ne.s32.totalorder %s123, %s124
    %p136 = scmp.eq.s32.totalorder %s20, 1
    %p137 = por %p135, %p136
    %p139 = scmp.ne.s32.totalorder %s124, %s138
    %p140 = scmp.eq.s32.totalorder %s20, 0
    %p141 = por %p139, %p140
    %s143 = sadd.s32 %s142, 1
    %p146 = scmp.eq.s32.totalorder %s14, 1
    %p147 = scmp.ne.s32.totalorder %s142, %s144
    %p148 = scmp.eq.s32.totalorder %s14, 0
    %p149 = por %p147, %p148
    %p150 = scmp.ne.s32.totalorder %s142, %s144
    %p151 = scmp.eq.s32.totalorder %s19, 1
    %p152 = por %p150, %p151
    %p153 = scmp.ne.s32.totalorder %s144, %s145
    %p154 = scmp.eq.s32.totalorder %s19, 0
    %p155 = por %p153, %p154
    %p156 = scmp.ne.s32.totalorder %s144, %s145
    %p157 = scmp.eq.s32.totalorder %s20, 1
    %p158 = por %p156, %p157
    %p160 = scmp.ne.s32.totalorder %s145, %s159
    %p161 = scmp.eq.s32.totalorder %s20, 0
    %p162 = por %p160, %p161
    %s163 = ssub.s32 %s14, %s21
    %p164 = scmp.eq.s32.totalorder %s163, 0
    %s166 = sadd.s32 %s165, 1
    %s167 = scalar_select %p164, %s165, %s166
    %p170 = pneg %p164
    %p171 = scmp.eq.s32.totalorder %s14, 1
    %p172 = por %p170, %p171
    %p173 = scmp.ne.s32.totalorder %s165, %s168
    %p174 = scmp.eq.s32.totalorder %s14, 0
    %p175 = por %p173, %p174
    %p176 = scmp.ne.s32.totalorder %s165, %s168
    %p177 = scmp.eq.s32.totalorder %s19, 1
    %p178 = por %p176, %p177
    %p179 = scmp.ne.s32.totalorder %s168, %s169
    %p180 = scmp.eq.s32.totalorder %s19, 0
    %p181 = por %p179, %p180
    %p182 = scmp.ne.s32.totalorder %s168, %s169
    %p183 = scmp.eq.s32.totalorder %s20, 1
    %p184 = por %p182, %p183
    %p186 = scmp.ne.s32.totalorder %s169, %s185
    %p187 = scmp.eq.s32.totalorder %s20, 0
    %p188 = por %p186, %p187
    %s189 = ssub.s32 %s14, %s21
    %p190 = scmp.eq.s32.totalorder %s189, 0
    %s192 = sadd.s32 %s191, 1
    %s193 = scalar_select %p190, %s191, %s192
    %p196 = pneg %p190
    %p197 = scmp.eq.s32.totalorder %s14, 1
    %p198 = por %p196, %p197
    %p199 = scmp.ne.s32.totalorder %s191, %s194
    %p200 = scmp.eq.s32.totalorder %s14, 0
    %p201 = por %p199, %p200
    %p202 = scmp.ne.s32.totalorder %s191, %s194
    %p203 = scmp.eq.s32.totalorder %s19, 1
    %p204 = por %p202, %p203
    %p205 = scmp.ne.s32.totalorder %s194, %s195
    %p206 = scmp.eq.s32.totalorder %s19, 0
    %p207 = por %p205, %p206
    %p208 = scmp.ne.s32.totalorder %s194, %s195
    %p209 = scmp.eq.s32.totalorder %s20, 1
    %p210 = por %p208, %p209
    %p212 = scmp.ne.s32.totalorder %s195, %s211
    %p213 = scmp.eq.s32.totalorder %s20, 0
    %p214 = por %p212, %p213
    %p215 = scmp.le.s32.totalorder 1, %s14
    %p216 = scmp.lt.s32.totalorder %s14, 3
    %p217 = pnand %p215, %p216
    %p218 = pneg %p217
    // Predicated region
    $region9: #{aspp_forward.4} parent=5 // pred_check
      _
    $region10: #{aspp_forward.4} parent=5 // pred_check_branch
      %220 = sbr.rel (%p217) target = $region12
    $region11: #{aspp_forward.4} parent=5 // pred_region
      %s221 = ssub.s32 %s14, 1
      // Predicated region
      $region13: #{aspp_forward.4} parent=11 // pred_check
        %p222 = pneg %p113
      $region14: #{aspp_forward.4} parent=11 // pred_check_branch
        %224 = sbr.rel (%p222) target = $region16
      $region15: #{aspp_forward.4} parent=11 // pred_region
        _
      $region16: #{aspp_forward.4} parent=11 // pred_fallthru
        _
      // Predicated region
      $region17: #{aspp_forward.4} parent=11 // pred_check
        %p225 = pneg %p134
      $region18: #{aspp_forward.4} parent=11 // pred_check_branch
        %227 = sbr.rel (%p225) target = $region20
      $region19: #{aspp_forward.4} parent=11 // pred_region
        _
      $region20: #{aspp_forward.4} parent=11 // pred_fallthru
        _
      // Predicated region
      $region21: #{aspp_forward.4} parent=11 // pred_check
        %p228 = pneg %p155
      $region22: #{aspp_forward.4} parent=11 // pred_check_branch
        %230 = sbr.rel (%p228) target = $region24
      $region23: #{aspp_forward.4} parent=11 // pred_region
        _
      $region24: #{aspp_forward.4} parent=11 // pred_fallthru
        _
    $region12: #{aspp_forward.4} parent=5 // pred_fallthru
      _
    %p231 = scmp.lt.s32.totalorder %s14, 2
    // Predicated region
    $region25: #{aspp_forward.4} parent=5 // pred_check
      %p232 = pneg %p231
    $region26: #{aspp_forward.4} parent=5 // pred_check_branch
      %234 = sbr.rel (%p232) target = $region28
    $region27: #{aspp_forward.4} parent=5 // pred_region
      // Predicated region
      $region29: #{aspp_forward.4} parent=27 // pred_check
        %p235 = pneg %p34
      $region30: #{aspp_forward.4} parent=27 // pred_check_branch
        %237 = sbr.rel (%p235) target = $region32
      $region31: #{aspp_forward.4} parent=27 // pred_region
        %p238 = scmp.lt.s32.totalorder %s14, 1
        %s239 = scalar_select %p238, %s14, 1
        %s240 = smul.addr %s239, 32
        %s241 = smul.addr %s240, 8
        %s242 = scalar_lea.vmem %s0, %s241
      $region32: #{aspp_forward.4} parent=27 // pred_fallthru
        _
      // Predicated region
      $region33: #{aspp_forward.4} parent=27 // pred_check
        %p243 = pneg %p60
      $region34: #{aspp_forward.4} parent=27 // pred_check_branch
        %245 = sbr.rel (%p243) target = $region36
      $region35: #{aspp_forward.4} parent=27 // pred_region
        %p246 = scmp.lt.s32.totalorder %s14, 1
        %s247 = scalar_select %p246, %s14, 1
        %s248 = smul.addr %s247, 32
        %s249 = smul.addr %s248, 8
        %s250 = scalar_lea.vmem %s1, %s249
      $region36: #{aspp_forward.4} parent=27 // pred_fallthru
        _
      // Predicated region
      $region37: #{aspp_forward.4} parent=27 // pred_check
        %p251 = pneg %p86
      $region38: #{aspp_forward.4} parent=27 // pred_check_branch
        %253 = sbr.rel (%p251) target = $region40
      $region39: #{aspp_forward.4} parent=27 // pred_region
        %p254 = scmp.lt.s32.totalorder %s14, 1
        %s255 = scalar_select %p254, %s14, 1
        %s256 = scalar_lea.vmem %s2, %s255
      $region40: #{aspp_forward.4} parent=27 // pred_fallthru
        _
    $region28: #{aspp_forward.4} parent=5 // pred_fallthru
      _
    %p257 = scmp.le.s32.totalorder 1, %s14
    %p258 = scmp.lt.s32.totalorder %s14, 3
    %p259 = pnand %p257, %p258
    %p260 = pneg %p259
    // Predicated region
    $region41: #{aspp_forward.4} parent=5 // pred_check
      _
    $region42: #{aspp_forward.4} parent=5 // pred_check_branch
      %262 = sbr.rel (%p259) target = $region44
    $region43: #{aspp_forward.4} parent=5 // pred_region
      %s263 = ssub.s32 %s14, 1
      %p264 = scmp.lt.s32.totalorder %s19, 1
      %s265 = scalar_select %p264, %s19, 1
      %s266 = smul.addr %s265, 32
      %s267 = smul.addr %s266, 8
      %s268 = scalar_lea.vmem %s0, %s267
      %p269 = pneg %p40
      %p270 = pneg %p37
      %p271 = scmp.lt.s32.totalorder %s19, 1
      %s272 = scalar_select %p271, %s19, 1
      %s273 = smul.addr %s272, 32
      %s274 = smul.addr %s273, 8
      %s275 = scalar_lea.vmem %s1, %s274
      %p276 = pneg %p66
      %p277 = pneg %p63
      %p278 = scmp.lt.s32.totalorder %s19, 1
      %s279 = scalar_select %p278, %s19, 1
      %s280 = scalar_lea.vmem %s2, %s279
      %p281 = pneg %p92
      %p282 = pneg %p89
      %p283 = pneg %p113
      %p284 = pneg %p110
      %p285 = pneg %p134
      %p286 = pneg %p131
      %p287 = pneg %p155
      %p288 = pneg %p152
      %p289 = pneg %p181
      %p290 = pneg %p178
      %p291 = scmp.lt.s32.totalorder %s19, 1
      %s292 = scalar_select %p291, %s19, 1
      %s293 = smul.addr %s292, 32
      %s294 = smul.addr %s293, 8
      %s295 = scalar_lea.vmem %s6, %s294
      %p296 = pneg %p207
      %p297 = pneg %p204
      %p298 = scmp.lt.s32.totalorder %s19, 1
      %s299 = scalar_select %p298, %s19, 1
      %s300 = smul.addr %s299, 2
      %s301 = scalar_lea.vmem %s7, %s300
      %p302 = scmp.lt.s32.totalorder %s19, 1
      %s303 = scalar_select %p302, %s19, 1
      %s304 = smul.addr %s303, 32
      %s305 = smul.addr %s304, 8
      %s306 = scalar_lea.vmem %s0, %s305
      %p307 = scmp.lt.s32.totalorder %s19, 1
      %s308 = scalar_select %p307, %s19, 1
      %s309 = smul.addr %s308, 32
      %s310 = smul.addr %s309, 8
      %s311 = scalar_lea.vmem %s1, %s310
      %p312 = scmp.lt.s32.totalorder %s19, 1
      %s313 = scalar_select %p312, %s19, 1
      %s314 = scalar_lea.vmem %s2, %s313
      %p315 = scmp.lt.s32.totalorder %s19, 1
      %s316 = scalar_select %p315, %s19, 1
      %s317 = smul.addr %s316, 32
      %s318 = smul.addr %s317, 8
      %s319 = scalar_lea.vmem %s6, %s318
      %p320 = scmp.lt.s32.totalorder %s19, 1
      %s321 = scalar_select %p320, %s19, 1
      %s322 = smul.addr %s321, 2
      %s323 = scalar_lea.vmem %s7, %s322
      %v324 = vld [vmem:[%s3] sm:$0x3]
      %v325 = vld [vmem:[%s4] sm:$0x3]
      %v326 = vld [vmem:[%s306] sm:$0xff]
      %v327 = vld [vmem:[%s306 + $0x8] sm:$0xff]
      %v328 = vld [vmem:[%s306 + $0x10] sm:$0xff]
      %v329 = vld [vmem:[%s306 + $0x18] sm:$0xff]
      %v330 = vld [vmem:[%s306 + $0x20] sm:$0xff]
      %v331 = vld [vmem:[%s306 + $0x28] sm:$0xff]
      %v332 = vld [vmem:[%s306 + $0x30] sm:$0xff]
      %v333 = vld [vmem:[%s306 + $0x38] sm:$0xff]
      %v334 = vld [vmem:[%s306 + $0x40] sm:$0xff]
      %v335 = vld [vmem:[%s306 + $0x48] sm:$0xff]
      %v336 = vld [vmem:[%s306 + $0x50] sm:$0xff]
      %v337 = vld [vmem:[%s306 + $0x58] sm:$0xff]
      %v338 = vld [vmem:[%s306 + $0x60] sm:$0xff]
      %v339 = vld [vmem:[%s306 + $0x68] sm:$0xff]
      %v340 = vld [vmem:[%s306 + $0x70] sm:$0xff]
      %v341 = vld [vmem:[%s306 + $0x78] sm:$0xff]
      %v342 = vld [vmem:[%s306 + $0x80] sm:$0xff]
      %v343 = vld [vmem:[%s306 + $0x88] sm:$0xff]
      %v344 = vld [vmem:[%s306 + $0x90] sm:$0xff]
      %v345 = vld [vmem:[%s306 + $0x98] sm:$0xff]
      %v346 = vld [vmem:[%s306 + $0xa0] sm:$0xff]
      %v347 = vld [vmem:[%s306 + $0xa8] sm:$0xff]
      %v348 = vld [vmem:[%s306 + $0xb0] sm:$0xff]
      %v349 = vld [vmem:[%s306 + $0xb8] sm:$0xff]
      %v350 = vld [vmem:[%s306 + $0xc0] sm:$0xff]
      %v351 = vld [vmem:[%s306 + $0xc8] sm:$0xff]
      %v352 = vld [vmem:[%s306 + $0xd0] sm:$0xff]
      %v353 = vld [vmem:[%s306 + $0xd8] sm:$0xff]
      %v354 = vld [vmem:[%s306 + $0xe0] sm:$0xff]
      %v355 = vld [vmem:[%s306 + $0xe8] sm:$0xff]
      %v356 = vld [vmem:[%s306 + $0xf0] sm:$0xff]
      %v357 = vld [vmem:[%s306 + $0xf8] sm:$0xff]
      %v358 = vlaneseq
      %v359 = vshrl.u32 %v358, 7
      %v360 = vsub.s32 0, %v359
      %v361 = vrot.slane %v324, %v360
      %v362 = vmul.f32 %v326, %v361
      %v363 = vmul.f32 %v327, %v361
      %v364 = vmul.f32 %v328, %v361
      %v365 = vmul.f32 %v329, %v361
      %v366 = vmul.f32 %v330, %v361
      %v367 = vmul.f32 %v331, %v361
      %v368 = vmul.f32 %v332, %v361
      %v369 = vmul.f32 %v333, %v361
      %v370 = vmul.f32 %v334, %v361
      %v371 = vmul.f32 %v335, %v361
      %v372 = vmul.f32 %v336, %v361
      %v373 = vmul.f32 %v337, %v361
      %v374 = vmul.f32 %v338, %v361
      %v375 = vmul.f32 %v339, %v361
      %v376 = vmul.f32 %v340, %v361
      %v377 = vmul.f32 %v341, %v361
      %v378 = vmul.f32 %v342, %v361
      %v379 = vmul.f32 %v343, %v361
      %v380 = vmul.f32 %v344, %v361
      %v381 = vmul.f32 %v345, %v361
      %v382 = vmul.f32 %v346, %v361
      %v383 = vmul.f32 %v347, %v361
      %v384 = vmul.f32 %v348, %v361
      %v385 = vmul.f32 %v349, %v361
      %v386 = vmul.f32 %v350, %v361
      %v387 = vmul.f32 %v351, %v361
      %v388 = vmul.f32 %v352, %v361
      %v389 = vmul.f32 %v353, %v361
      %v390 = vmul.f32 %v354, %v361
      %v391 = vmul.f32 %v355, %v361
      %v392 = vmul.f32 %v356, %v361
      %v393 = vmul.f32 %v357, %v361
      %v394 = vlaneseq
      %v395 = vshrl.u32 %v394, 7
      %v396 = vsub.s32 1, %v395
      %v397 = vrot.slane %v324, %v396
      %v398 = vadd.f32 %v362, %v397
      %v399 = vadd.f32 %v363, %v397
      %v400 = vadd.f32 %v364, %v397
      %v401 = vadd.f32 %v365, %v397
      %v402 = vadd.f32 %v366, %v397
      %v403 = vadd.f32 %v367, %v397
      %v404 = vadd.f32 %v368, %v397
      %v405 = vadd.f32 %v369, %v397
      %v406 = vadd.f32 %v370, %v397
      %v407 = vadd.f32 %v371, %v397
      %v408 = vadd.f32 %v372, %v397
      %v409 = vadd.f32 %v373, %v397
      %v410 = vadd.f32 %v374, %v397
      %v411 = vadd.f32 %v375, %v397
      %v412 = vadd.f32 %v376, %v397
      %v413 = vadd.f32 %v377, %v397
      %v414 = vadd.f32 %v378, %v397
      %v415 = vadd.f32 %v379, %v397
      %v416 = vadd.f32 %v380, %v397
      %v417 = vadd.f32 %v381, %v397
      %v418 = vadd.f32 %v382, %v397
      %v419 = vadd.f32 %v383, %v397
      %v420 = vadd.f32 %v384, %v397
      %v421 = vadd.f32 %v385, %v397
      %v422 = vadd.f32 %v386, %v397
      %v423 = vadd.f32 %v387, %v397
      %v424 = vadd.f32 %v388, %v397
      %v425 = vadd.f32 %v389, %v397
      %v426 = vadd.f32 %v390, %v397
      %v427 = vadd.f32 %v391, %v397
      %v428 = vadd.f32 %v392, %v397
      %v429 = vadd.f32 %v393, %v397
      %v430 = vmax.f32 %v398, 0.0
      %v431 = vmax.f32 %v399, 0.0
      %v432 = vmax.f32 %v400, 0.0
      %v433 = vmax.f32 %v401, 0.0
      %v434 = vmax.f32 %v402, 0.0
      %v435 = vmax.f32 %v403, 0.0
      %v436 = vmax.f32 %v404, 0.0
      %v437 = vmax.f32 %v405, 0.0
      %v438 = vmax.f32 %v406, 0.0
      %v439 = vmax.f32 %v407, 0.0
      %v440 = vmax.f32 %v408, 0.0
      %v441 = vmax.f32 %v409, 0.0
      %v442 = vmax.f32 %v410, 0.0
      %v443 = vmax.f32 %v411, 0.0
      %v444 = vmax.f32 %v412, 0.0
      %v445 = vmax.f32 %v413, 0.0
      %v446 = vmax.f32 %v414, 0.0
      %v447 = vmax.f32 %v415, 0.0
      %v448 = vmax.f32 %v416, 0.0
      %v449 = vmax.f32 %v417, 0.0
      %v450 = vmax.f32 %v418, 0.0
      %v451 = vmax.f32 %v419, 0.0
      %v452 = vmax.f32 %v420, 0.0
      %v453 = vmax.f32 %v421, 0.0
      %v454 = vmax.f32 %v422, 0.0
      %v455 = vmax.f32 %v423, 0.0
      %v456 = vmax.f32 %v424, 0.0
      %v457 = vmax.f32 %v425, 0.0
      %v458 = vmax.f32 %v426, 0.0
      %v459 = vmax.f32 %v427, 0.0
      %v460 = vmax.f32 %v428, 0.0
      %v461 = vmax.f32 %v429, 0.0
      %v462 = vld [vmem:[%s311] sm:$0xff]
      %v463 = vld [vmem:[%s311 + $0x8] sm:$0xff]
      %v464 = vld [vmem:[%s311 + $0x10] sm:$0xff]
      %v465 = vld [vmem:[%s311 + $0x18] sm:$0xff]
      %v466 = vld [vmem:[%s311 + $0x20] sm:$0xff]
      %v467 = vld [vmem:[%s311 + $0x28] sm:$0xff]
      %v468 = vld [vmem:[%s311 + $0x30] sm:$0xff]
      %v469 = vld [vmem:[%s311 + $0x38] sm:$0xff]
      %v470 = vld [vmem:[%s311 + $0x40] sm:$0xff]
      %v471 = vld [vmem:[%s311 + $0x48] sm:$0xff]
      %v472 = vld [vmem:[%s311 + $0x50] sm:$0xff]
      %v473 = vld [vmem:[%s311 + $0x58] sm:$0xff]
      %v474 = vld [vmem:[%s311 + $0x60] sm:$0xff]
      %v475 = vld [vmem:[%s311 + $0x68] sm:$0xff]
      %v476 = vld [vmem:[%s311 + $0x70] sm:$0xff]
      %v477 = vld [vmem:[%s311 + $0x78] sm:$0xff]
      %v478 = vld [vmem:[%s311 + $0x80] sm:$0xff]
      %v479 = vld [vmem:[%s311 + $0x88] sm:$0xff]
      %v480 = vld [vmem:[%s311 + $0x90] sm:$0xff]
      %v481 = vld [vmem:[%s311 + $0x98] sm:$0xff]
      %v482 = vld [vmem:[%s311 + $0xa0] sm:$0xff]
      %v483 = vld [vmem:[%s311 + $0xa8] sm:$0xff]
      %v484 = vld [vmem:[%s311 + $0xb0] sm:$0xff]
      %v485 = vld [vmem:[%s311 + $0xb8] sm:$0xff]
      %v486 = vld [vmem:[%s311 + $0xc0] sm:$0xff]
      %v487 = vld [vmem:[%s311 + $0xc8] sm:$0xff]
      %v488 = vld [vmem:[%s311 + $0xd0] sm:$0xff]
      %v489 = vld [vmem:[%s311 + $0xd8] sm:$0xff]
      %v490 = vld [vmem:[%s311 + $0xe0] sm:$0xff]
      %v491 = vld [vmem:[%s311 + $0xe8] sm:$0xff]
      %v492 = vld [vmem:[%s311 + $0xf0] sm:$0xff]
      %v493 = vld [vmem:[%s311 + $0xf8] sm:$0xff]
      %v494 = vlaneseq
      %v495 = vshrl.u32 %v494, 7
      %v496 = vsub.s32 0, %v495
      %v497 = vrot.slane %v325, %v496
      %v498 = vmul.f32 %v462, %v497
      %v499 = vmul.f32 %v463, %v497
      %v500 = vmul.f32 %v464, %v497
      %v501 = vmul.f32 %v465, %v497
      %v502 = vmul.f32 %v466, %v497
      %v503 = vmul.f32 %v467, %v497
      %v504 = vmul.f32 %v468, %v497
      %v505 = vmul.f32 %v469, %v497
      %v506 = vmul.f32 %v470, %v497
      %v507 = vmul.f32 %v471, %v497
      %v508 = vmul.f32 %v472, %v497
      %v509 = vmul.f32 %v473, %v497
      %v510 = vmul.f32 %v474, %v497
      %v511 = vmul.f32 %v475, %v497
      %v512 = vmul.f32 %v476, %v497
      %v513 = vmul.f32 %v477, %v497
      %v514 = vmul.f32 %v478, %v497
      %v515 = vmul.f32 %v479, %v497
      %v516 = vmul.f32 %v480, %v497
      %v517 = vmul.f32 %v481, %v497
      %v518 = vmul.f32 %v482, %v497
      %v519 = vmul.f32 %v483, %v497
      %v520 = vmul.f32 %v484, %v497
      %v521 = vmul.f32 %v485, %v497
      %v522 = vmul.f32 %v486, %v497
      %v523 = vmul.f32 %v487, %v497
      %v524 = vmul.f32 %v488, %v497
      %v525 = vmul.f32 %v489, %v497
      %v526 = vmul.f32 %v490, %v497
      %v527 = vmul.f32 %v491, %v497
      %v528 = vmul.f32 %v492, %v497
      %v529 = vmul.f32 %v493, %v497
      %v530 = vlaneseq
      %v531 = vshrl.u32 %v530, 7
      %v532 = vsub.s32 1, %v531
      %v533 = vrot.slane %v325, %v532
      %v534 = vadd.f32 %v498, %v533
      %v535 = vadd.f32 %v499, %v533
      %v536 = vadd.f32 %v500, %v533
      %v537 = vadd.f32 %v501, %v533
      %v538 = vadd.f32 %v502, %v533
      %v539 = vadd.f32 %v503, %v533
      %v540 = vadd.f32 %v504, %v533
      %v541 = vadd.f32 %v505, %v533
      %v542 = vadd.f32 %v506, %v533
      %v543 = vadd.f32 %v507, %v533
      %v544 = vadd.f32 %v508, %v533
      %v545 = vadd.f32 %v509, %v533
      %v546 = vadd.f32 %v510, %v533
      %v547 = vadd.f32 %v511, %v533
      %v548 = vadd.f32 %v512, %v533
      %v549 = vadd.f32 %v513, %v533
      %v550 = vadd.f32 %v514, %v533
      %v551 = vadd.f32 %v515, %v533
      %v552 = vadd.f32 %v516, %v533
      %v553 = vadd.f32 %v517, %v533
      %v554 = vadd.f32 %v518, %v533
      %v555 = vadd.f32 %v519, %v533
      %v556 = vadd.f32 %v520, %v533
      %v557 = vadd.f32 %v521, %v533
      %v558 = vadd.f32 %v522, %v533
      %v559 = vadd.f32 %v523, %v533
      %v560 = vadd.f32 %v524, %v533
      %v561 = vadd.f32 %v525, %v533
      %v562 = vadd.f32 %v526, %v533
      %v563 = vadd.f32 %v527, %v533
      %v564 = vadd.f32 %v528, %v533
      %v565 = vadd.f32 %v529, %v533
      %v566 = vmax.f32 %v534, 0.0
      %v567 = vmax.f32 %v535, 0.0
      %v568 = vmax.f32 %v536, 0.0
      %v569 = vmax.f32 %v537, 0.0
      %v570 = vmax.f32 %v538, 0.0
      %v571 = vmax.f32 %v539, 0.0
      %v572 = vmax.f32 %v540, 0.0
      %v573 = vmax.f32 %v541, 0.0
      %v574 = vmax.f32 %v542, 0.0
      %v575 = vmax.f32 %v543, 0.0
      %v576 = vmax.f32 %v544, 0.0
      %v577 = vmax.f32 %v545, 0.0
      %v578 = vmax.f32 %v546, 0.0
      %v579 = vmax.f32 %v547, 0.0
      %v580 = vmax.f32 %v548, 0.0
      %v581 = vmax.f32 %v549, 0.0
      %v582 = vmax.f32 %v550, 0.0
      %v583 = vmax.f32 %v551, 0.0
      %v584 = vmax.f32 %v552, 0.0
      %v585 = vmax.f32 %v553, 0.0
      %v586 = vmax.f32 %v554, 0.0
      %v587 = vmax.f32 %v555, 0.0
      %v588 = vmax.f32 %v556, 0.0
      %v589 = vmax.f32 %v557, 0.0
      %v590 = vmax.f32 %v558, 0.0
      %v591 = vmax.f32 %v559, 0.0
      %v592 = vmax.f32 %v560, 0.0
      %v593 = vmax.f32 %v561, 0.0
      %v594 = vmax.f32 %v562, 0.0
      %v595 = vmax.f32 %v563, 0.0
      %v596 = vmax.f32 %v564, 0.0
      %v597 = vmax.f32 %v565, 0.0
      %630 = vrot.lane.b32.xlu0 %v566, 8
      %v631 = vpop.permute.xlu0 %630
      %632 = vrot.lane.b32.xlu0 %v567, 8
      %v633 = vpop.permute.xlu0 %632
      %634 = vrot.lane.b32.xlu0 %v568, 8
      %v635 = vpop.permute.xlu0 %634
      %636 = vrot.lane.b32.xlu0 %v569, 8
      %v637 = vpop.permute.xlu0 %636
      %638 = vrot.lane.b32.xlu0 %v570, 8
      %v639 = vpop.permute.xlu0 %638
      %640 = vrot.lane.b32.xlu0 %v571, 8
      %v641 = vpop.permute.xlu0 %640
      %642 = vrot.lane.b32.xlu0 %v572, 8
      %v643 = vpop.permute.xlu0 %642
      %644 = vrot.lane.b32.xlu0 %v573, 8
      %v645 = vpop.permute.xlu0 %644
      %646 = vrot.lane.b32.xlu0 %v574, 8
      %v647 = vpop.permute.xlu0 %646
      %648 = vrot.lane.b32.xlu0 %v575, 8
      %v649 = vpop.permute.xlu0 %648
      %650 = vrot.lane.b32.xlu0 %v576, 8
      %v651 = vpop.permute.xlu0 %650
      %652 = vrot.lane.b32.xlu0 %v577, 8
      %v653 = vpop.permute.xlu0 %652
      %654 = vrot.lane.b32.xlu0 %v578, 8
      %v655 = vpop.permute.xlu0 %654
      %656 = vrot.lane.b32.xlu0 %v579, 8
      %v657 = vpop.permute.xlu0 %656
      %658 = vrot.lane.b32.xlu0 %v580, 8
      %v659 = vpop.permute.xlu0 %658
      %660 = vrot.lane.b32.xlu0 %v581, 8
      %v661 = vpop.permute.xlu0 %660
      %662 = vrot.lane.b32.xlu0 %v582, 8
      %v663 = vpop.permute.xlu0 %662
      %664 = vrot.lane.b32.xlu0 %v583, 8
      %v665 = vpop.permute.xlu0 %664
      %666 = vrot.lane.b32.xlu0 %v584, 8
      %v667 = vpop.permute.xlu0 %666
      %668 = vrot.lane.b32.xlu0 %v585, 8
      %v669 = vpop.permute.xlu0 %668
      %670 = vrot.lane.b32.xlu0 %v586, 8
      %v671 = vpop.permute.xlu0 %670
      %672 = vrot.lane.b32.xlu0 %v587, 8
      %v673 = vpop.permute.xlu0 %672
      %674 = vrot.lane.b32.xlu0 %v588, 8
      %v675 = vpop.permute.xlu0 %674
      %676 = vrot.lane.b32.xlu0 %v589, 8
      %v677 = vpop.permute.xlu0 %676
      %678 = vrot.lane.b32.xlu0 %v590, 8
      %v679 = vpop.permute.xlu0 %678
      %680 = vrot.lane.b32.xlu0 %v591, 8
      %v681 = vpop.permute.xlu0 %680
      %682 = vrot.lane.b32.xlu0 %v592, 8
      %v683 = vpop.permute.xlu0 %682
      %684 = vrot.lane.b32.xlu0 %v593, 8
      %v685 = vpop.permute.xlu0 %684
      %686 = vrot.lane.b32.xlu0 %v594, 8
      %v687 = vpop.permute.xlu0 %686
      %688 = vrot.lane.b32.xlu0 %v595, 8
      %v689 = vpop.permute.xlu0 %688
      %690 = vrot.lane.b32.xlu0 %v596, 8
      %v691 = vpop.permute.xlu0 %690
      %692 = vrot.lane.b32.xlu0 %v597, 8
      %v693 = vpop.permute.xlu0 %692
      %vm726 = vcmask 64512
      %v727 = vsel %vm726, %v430, %v631
      %v728 = vsel %vm726, %v431, %v633
      %v729 = vsel %vm726, %v432, %v635
      %v730 = vsel %vm726, %v433, %v637
      %v731 = vsel %vm726, %v434, %v639
      %v732 = vsel %vm726, %v435, %v641
      %v733 = vsel %vm726, %v436, %v643
      %v734 = vsel %vm726, %v437, %v645
      %v735 = vsel %vm726, %v438, %v647
      %v736 = vsel %vm726, %v439, %v649
      %v737 = vsel %vm726, %v440, %v651
      %v738 = vsel %vm726, %v441, %v653
      %v739 = vsel %vm726, %v442, %v655
      %v740 = vsel %vm726, %v443, %v657
      %v741 = vsel %vm726, %v444, %v659
      %v742 = vsel %vm726, %v445, %v661
      %v743 = vsel %vm726, %v446, %v663
      %v744 = vsel %vm726, %v447, %v665
      %v745 = vsel %vm726, %v448, %v667
      %v746 = vsel %vm726, %v449, %v669
      %v747 = vsel %vm726, %v450, %v671
      %v748 = vsel %vm726, %v451, %v673
      %v749 = vsel %vm726, %v452, %v675
      %v750 = vsel %vm726, %v453, %v677
      %v751 = vsel %vm726, %v454, %v679
      %v752 = vsel %vm726, %v455, %v681
      %v753 = vsel %vm726, %v456, %v683
      %v754 = vsel %vm726, %v457, %v685
      %v755 = vsel %vm726, %v458, %v687
      %v756 = vsel %vm726, %v459, %v689
      %v757 = vsel %vm726, %v460, %v691
      %v758 = vsel %vm726, %v461, %v693
      %v759 = vld [vmem:[%s5] sm:$0xff]
      %v760 = vld [vmem:[%s5 + $0x8] sm:$0xff]
      %v761 = vld [vmem:[%s314] sm:$0x1]
      %v763 = vlaneseq
      %v764 = vshrl.u32 %v763, 7
      %v765 = vsub.s32 0, %v764
      %v766 = vrot.slane %v761, %v765
      %vm768 = vcmask 130048
      %v770 = vsel %vm768, %v727, 0
      %v773 = vsel %vm768, %v728, 0
      %v776 = vsel %vm768, %v729, 0
      %v779 = vsel %vm768, %v730, 0
      %v782 = vsel %vm768, %v731, 0
      %v785 = vsel %vm768, %v732, 0
      %v788 = vsel %vm768, %v733, 0
      %v791 = vsel %vm768, %v734, 0
      %v794 = vsel %vm768, %v735, 0
      %v797 = vsel %vm768, %v736, 0
      %v800 = vsel %vm768, %v737, 0
      %v803 = vsel %vm768, %v738, 0
      %v806 = vsel %vm768, %v739, 0
      %v809 = vsel %vm768, %v740, 0
      %v812 = vsel %vm768, %v741, 0
      %v815 = vsel %vm768, %v742, 0
      %v818 = vsel %vm768, %v743, 0
      %v821 = vsel %vm768, %v744, 0
      %v824 = vsel %vm768, %v745, 0
      %v827 = vsel %vm768, %v746, 0
      %v830 = vsel %vm768, %v747, 0
      %v833 = vsel %vm768, %v748, 0
      %v836 = vsel %vm768, %v749, 0
      %v839 = vsel %vm768, %v750, 0
      %v842 = vsel %vm768, %v751, 0
      %v845 = vsel %vm768, %v752, 0
      %v848 = vsel %vm768, %v753, 0
      %v851 = vsel %vm768, %v754, 0
      %v854 = vsel %vm768, %v755, 0
      %v857 = vsel %vm768, %v756, 0
      %v860 = vsel %vm768, %v757, 0
      %v863 = vsel %vm768, %v758, 0
      %865 = vmatprep.subr.mxu0 0.0
      %866 = vmatpush1.msra.mxu0 %v759
      %867 = vmatprep.subr.mxu0 0.0
      %868 = vmatpush1.msra.mxu0 %v760
      %869 = vmatprep.subr.mxu0 0.0
      %870 = vmatpush1.msra.mxu0 0.0
      %871 = vmatprep.subr.mxu0 0.0
      %872 = vmatpush1.msra.mxu0 0.0
      %873 = vmatprep.subr.mxu0 0.0
      %874 = vmatpush1.msra.mxu0 0.0
      %875 = vmatprep.subr.mxu0 0.0
      %876 = vmatpush1.msra.mxu0 0.0
      %877 = vmatprep.subr.mxu0 0.0
      %878 = vmatpush1.msra.mxu0 0.0
      %879 = vmatprep.subr.mxu0 0.0
      %880 = vmatpush1.msra.mxu0 0.0
      %881 = vmatprep.subr.mxu0 0.0
      %882 = vmatpush1.msra.mxu0 0.0
      %883 = vmatprep.subr.mxu0 0.0
      %884 = vmatpush1.msra.mxu0 0.0
      %885 = vmatprep.subr.mxu0 0.0
      %886 = vmatpush1.msra.mxu0 0.0
      %887 = vmatprep.subr.mxu0 0.0
      %888 = vmatpush1.msra.mxu0 0.0
      %889 = vmatprep.subr.mxu0 0.0
      %890 = vmatpush1.msra.mxu0 0.0
      %891 = vmatprep.subr.mxu0 0.0
      %892 = vmatpush1.msra.mxu0 0.0
      %893 = vmatprep.subr.mxu0 0.0
      %894 = vmatpush1.msra.mxu0 0.0
      %895 = vmatprep.subr.mxu0 0.0
      %896 = vmatpush1.msra.mxu0 0.0
      %897 = vmatprep.subr.mxu0 0.0
      %898 = vmatpush1.msra.mxu0 0.0
      %899 = vmatprep.subr.mxu0 0.0
      %900 = vmatpush1.msra.mxu0 0.0
      %901 = vmatprep.subr.mxu0 0.0
      %902 = vmatpush1.msra.mxu0 0.0
      %903 = vmatprep.subr.mxu0 0.0
      %904 = vmatpush1.msra.mxu0 0.0
      %905 = vmatprep.subr.mxu0 0.0
      %906 = vmatpush1.msra.mxu0 0.0
      %907 = vmatprep.subr.mxu0 0.0
      %908 = vmatpush1.msra.mxu0 0.0
      %909 = vmatprep.subr.mxu0 0.0
      %910 = vmatpush1.msra.mxu0 0.0
      %911 = vmatprep.subr.mxu0 0.0
      %912 = vmatpush1.msra.mxu0 0.0
      %913 = vmatprep.subr.mxu0 0.0
      %914 = vmatpush1.msra.mxu0 0.0
      %915 = vmatprep.subr.mxu0 0.0
      %916 = vmatpush1.msra.mxu0 0.0
      %917 = vmatprep.subr.mxu0 0.0
      %918 = vmatpush1.msra.mxu0 0.0
      %919 = vmatprep.subr.mxu0 0.0
      %920 = vmatpush1.msra.mxu0 0.0
      %921 = vmatprep.subr.mxu0 0.0
      %922 = vmatpush1.msra.mxu0 0.0
      %923 = vmatprep.subr.mxu0 0.0
      %924 = vmatpush1.msra.mxu0 0.0
      %925 = vmatprep.subr.mxu0 0.0
      %926 = vmatpush1.msra.mxu0 0.0
      %927 = vmatprep.subr.mxu0 0.0
      %928 = vmatpush1.msra.mxu0 0.0
      %929 = vmatprep.mubr.f32.mxu0 0.0
      %930 = vmatmul.mubr.f32.gmra.mrb[0].mxu0 %v770
      %v931 = vpop.f32.mrb[0].mxu0
      %v932 = vadd.f32 %v766, %v931
      %v933 = vpop.f32.mrb[0].mxu0
      %934 = vmatprep.mubr.f32.mxu0 0.0
      %935 = vmatmul.mubr.f32.gmra.mrb[0].mxu0 %v773
      %v936 = vpop.f32.mrb[0].mxu0
      %v937 = vadd.f32 %v766, %v936
      %v938 = vpop.f32.mrb[0].mxu0
      %939 = vmatprep.mubr.f32.mxu0 0.0
      %940 = vmatmul.mubr.f32.gmra.mrb[0].mxu0 %v776
      %v941 = vpop.f32.mrb[0].mxu0
      %v942 = vadd.f32 %v766, %v941
      %v943 = vpop.f32.mrb[0].mxu0
      %944 = vmatprep.mubr.f32.mxu0 0.0
      %945 = vmatmul.mubr.f32.gmra.mrb[0].mxu0 %v779
      %v946 = vpop.f32.mrb[0].mxu0
      %v947 = vadd.f32 %v766, %v946
      %v948 = vpop.f32.mrb[0].mxu0
      %949 = vmatprep.mubr.f32.mxu0 0.0
      %950 = vmatmul.mubr.f32.gmra.mrb[0].mxu0 %v782
      %v951 = vpop.f32.mrb[0].mxu0
      %v952 = vadd.f32 %v766, %v951
      %v953 = vpop.f32.mrb[0].mxu0
      %954 = vmatprep.mubr.f32.mxu0 0.0
      %955 = vmatmul.mubr.f32.gmra.mrb[0].mxu0 %v785
      %v956 = vpop.f32.mrb[0].mxu0
      %v957 = vadd.f32 %v766, %v956
      %v958 = vpop.f32.mrb[0].mxu0
      %959 = vmatprep.mubr.f32.mxu0 0.0
      %960 = vmatmul.mubr.f32.gmra.mrb[0].mxu0 %v788
      %v961 = vpop.f32.mrb[0].mxu0
      %v962 = vadd.f32 %v766, %v961
      %v963 = vpop.f32.mrb[0].mxu0
      %964 = vmatprep.mubr.f32.mxu0 0.0
      %965 = vmatmul.mubr.f32.gmra.mrb[0].mxu0 %v791
      %v966 = vpop.f32.mrb[0].mxu0
      %v967 = vadd.f32 %v766, %v966
      %v968 = vpop.f32.mrb[0].mxu0
      %969 = vmatprep.mubr.f32.mxu0 0.0
      %970 = vmatmul.mubr.f32.gmra.mrb[0].mxu0 %v794
      %v971 = vpop.f32.mrb[0].mxu0
      %v972 = vadd.f32 %v766, %v971
      %v973 = vpop.f32.mrb[0].mxu0
      %974 = vmatprep.mubr.f32.mxu0 0.0
      %975 = vmatmul.mubr.f32.gmra.mrb[0].mxu0 %v797
      %v976 = vpop.f32.mrb[0].mxu0
      %v977 = vadd.f32 %v766, %v976
      %v978 = vpop.f32.mrb[0].mxu0
      %979 = vmatprep.mubr.f32.mxu0 0.0
      %980 = vmatmul.mubr.f32.gmra.mrb[0].mxu0 %v800
      %v981 = vpop.f32.mrb[0].mxu0
      %v982 = vadd.f32 %v766, %v981
      %v983 = vpop.f32.mrb[0].mxu0
      %984 = vmatprep.mubr.f32.mxu0 0.0
      %985 = vmatmul.mubr.f32.gmra.mrb[0].mxu0 %v803
      %v986 = vpop.f32.mrb[0].mxu0
      %v987 = vadd.f32 %v766, %v986
      %v988 = vpop.f32.mrb[0].mxu0
      %989 = vmatprep.mubr.f32.mxu0 0.0
      %990 = vmatmul.mubr.f32.gmra.mrb[0].mxu0 %v806
      %v991 = vpop.f32.mrb[0].mxu0
      %v992 = vadd.f32 %v766, %v991
      %v993 = vpop.f32.mrb[0].mxu0
      %994 = vmatprep.mubr.f32.mxu0 0.0
      %995 = vmatmul.mubr.f32.gmra.mrb[0].mxu0 %v809
      %v996 = vpop.f32.mrb[0].mxu0
      %v997 = vadd.f32 %v766, %v996
      %v998 = vpop.f32.mrb[0].mxu0
      %999 = vmatprep.mubr.f32.mxu0 0.0
      %1000 = vmatmul.mubr.f32.gmra.mrb[0].mxu0 %v812
      %v1001 = vpop.f32.mrb[0].mxu0
      %v1002 = vadd.f32 %v766, %v1001
      %v1003 = vpop.f32.mrb[0].mxu0
      %1004 = vmatprep.mubr.f32.mxu0 0.0
      %1005 = vmatmul.mubr.f32.gmra.mrb[0].mxu0 %v815
      %v1006 = vpop.f32.mrb[0].mxu0
      %v1007 = vadd.f32 %v766, %v1006
      %v1008 = vpop.f32.mrb[0].mxu0
      %1009 = vmatprep.mubr.f32.mxu0 0.0
      %1010 = vmatmul.mubr.f32.gmra.mrb[0].mxu0 %v818
      %v1011 = vpop.f32.mrb[0].mxu0
      %v1012 = vadd.f32 %v766, %v1011
      %v1013 = vpop.f32.mrb[0].mxu0
      %1014 = vmatprep.mubr.f32.mxu0 0.0
      %1015 = vmatmul.mubr.f32.gmra.mrb[0].mxu0 %v821
      %v1016 = vpop.f32.mrb[0].mxu0
      %v1017 = vadd.f32 %v766, %v1016
      %v1018 = vpop.f32.mrb[0].mxu0
      %1019 = vmatprep.mubr.f32.mxu0 0.0
      %1020 = vmatmul.mubr.f32.gmra.mrb[0].mxu0 %v824
      %v1021 = vpop.f32.mrb[0].mxu0
      %v1022 = vadd.f32 %v766, %v1021
      %v1023 = vpop.f32.mrb[0].mxu0
      %1024 = vmatprep.mubr.f32.mxu0 0.0
      %1025 = vmatmul.mubr.f32.gmra.mrb[0].mxu0 %v827
      %v1026 = vpop.f32.mrb[0].mxu0
      %v1027 = vadd.f32 %v766, %v1026
      %v1028 = vpop.f32.mrb[0].mxu0
      %1029 = vmatprep.mubr.f32.mxu0 0.0
      %1030 = vmatmul.mubr.f32.gmra.mrb[0].mxu0 %v830
      %v1031 = vpop.f32.mrb[0].mxu0
      %v1032 = vadd.f32 %v766, %v1031
      %v1033 = vpop.f32.mrb[0].mxu0
      %1034 = vmatprep.mubr.f32.mxu0 0.0
      %1035 = vmatmul.mubr.f32.gmra.mrb[0].mxu0 %v833
      %v1036 = vpop.f32.mrb[0].mxu0
      %v1037 = vadd.f32 %v766, %v1036
      %v1038 = vpop.f32.mrb[0].mxu0
      %1039 = vmatprep.mubr.f32.mxu0 0.0
      %1040 = vmatmul.mubr.f32.gmra.mrb[0].mxu0 %v836
      %v1041 = vpop.f32.mrb[0].mxu0
      %v1042 = vadd.f32 %v766, %v1041
      %v1043 = vpop.f32.mrb[0].mxu0
      %1044 = vmatprep.mubr.f32.mxu0 0.0
      %1045 = vmatmul.mubr.f32.gmra.mrb[0].mxu0 %v839
      %v1046 = vpop.f32.mrb[0].mxu0
      %v1047 = vadd.f32 %v766, %v1046
      %v1048 = vpop.f32.mrb[0].mxu0
      %1049 = vmatprep.mubr.f32.mxu0 0.0
      %1050 = vmatmul.mubr.f32.gmra.mrb[0].mxu0 %v842
      %v1051 = vpop.f32.mrb[0].mxu0
      %v1052 = vadd.f32 %v766, %v1051
      %v1053 = vpop.f32.mrb[0].mxu0
      %1054 = vmatprep.mubr.f32.mxu0 0.0
      %1055 = vmatmul.mubr.f32.gmra.mrb[0].mxu0 %v845
      %v1056 = vpop.f32.mrb[0].mxu0
      %v1057 = vadd.f32 %v766, %v1056
      %v1058 = vpop.f32.mrb[0].mxu0
      %1059 = vmatprep.mubr.f32.mxu0 0.0
      %1060 = vmatmul.mubr.f32.gmra.mrb[0].mxu0 %v848
      %v1061 = vpop.f32.mrb[0].mxu0
      %v1062 = vadd.f32 %v766, %v1061
      %v1063 = vpop.f32.mrb[0].mxu0
      %1064 = vmatprep.mubr.f32.mxu0 0.0
      %1065 = vmatmul.mubr.f32.gmra.mrb[0].mxu0 %v851
      %v1066 = vpop.f32.mrb[0].mxu0
      %v1067 = vadd.f32 %v766, %v1066
      %v1068 = vpop.f32.mrb[0].mxu0
      %1069 = vmatprep.mubr.f32.mxu0 0.0
      %1070 = vmatmul.mubr.f32.gmra.mrb[0].mxu0 %v854
      %v1071 = vpop.f32.mrb[0].mxu0
      %v1072 = vadd.f32 %v766, %v1071
      %v1073 = vpop.f32.mrb[0].mxu0
      %1074 = vmatprep.mubr.f32.mxu0 0.0
      %1075 = vmatmul.mubr.f32.gmra.mrb[0].mxu0 %v857
      %v1076 = vpop.f32.mrb[0].mxu0
      %v1077 = vadd.f32 %v766, %v1076
      %v1078 = vpop.f32.mrb[0].mxu0
      %1079 = vmatprep.mubr.f32.mxu0 0.0
      %1080 = vmatmul.mubr.f32.gmra.mrb[0].mxu0 %v860
      %v1081 = vpop.f32.mrb[0].mxu0
      %v1082 = vadd.f32 %v766, %v1081
      %v1083 = vpop.f32.mrb[0].mxu0
      %1084 = vmatprep.mubr.f32.mxu0 0.0
      %1085 = vmatmul.mubr.f32.gmra.mrb[0].mxu0 %v863
      %v1086 = vpop.f32.mrb[0].mxu0
      %v1087 = vadd.f32 %v766, %v1086
      %v1088 = vpop.f32.mrb[0].mxu0
      %1089 = vdwg.mxu0
      %1090 = vst.msk [vmem:[%s319] sm:$0xff] %vm726, %v932
      %1091 = vst.msk [vmem:[%s319 + $0x8] sm:$0xff] %vm726, %v937
      %1092 = vst.msk [vmem:[%s319 + $0x10] sm:$0xff] %vm726, %v942
      %1093 = vst.msk [vmem:[%s319 + $0x18] sm:$0xff] %vm726, %v947
      %1094 = vst.msk [vmem:[%s319 + $0x20] sm:$0xff] %vm726, %v952
      %1095 = vst.msk [vmem:[%s319 + $0x28] sm:$0xff] %vm726, %v957
      %1096 = vst.msk [vmem:[%s319 + $0x30] sm:$0xff] %vm726, %v962
      %1097 = vst.msk [vmem:[%s319 + $0x38] sm:$0xff] %vm726, %v967
      %1098 = vst.msk [vmem:[%s319 + $0x40] sm:$0xff] %vm726, %v972
      %1099 = vst.msk [vmem:[%s319 + $0x48] sm:$0xff] %vm726, %v977
      %1100 = vst.msk [vmem:[%s319 + $0x50] sm:$0xff] %vm726, %v982
      %1101 = vst.msk [vmem:[%s319 + $0x58] sm:$0xff] %vm726, %v987
      %1102 = vst.msk [vmem:[%s319 + $0x60] sm:$0xff] %vm726, %v992
      %1103 = vst.msk [vmem:[%s319 + $0x68] sm:$0xff] %vm726, %v997
      %1104 = vst.msk [vmem:[%s319 + $0x70] sm:$0xff] %vm726, %v1002
      %1105 = vst.msk [vmem:[%s319 + $0x78] sm:$0xff] %vm726, %v1007
      %1106 = vst.msk [vmem:[%s319 + $0x80] sm:$0xff] %vm726, %v1012
      %1107 = vst.msk [vmem:[%s319 + $0x88] sm:$0xff] %vm726, %v1017
      %1108 = vst.msk [vmem:[%s319 + $0x90] sm:$0xff] %vm726, %v1022
      %1109 = vst.msk [vmem:[%s319 + $0x98] sm:$0xff] %vm726, %v1027
      %1110 = vst.msk [vmem:[%s319 + $0xa0] sm:$0xff] %vm726, %v1032
      %1111 = vst.msk [vmem:[%s319 + $0xa8] sm:$0xff] %vm726, %v1037
      %1112 = vst.msk [vmem:[%s319 + $0xb0] sm:$0xff] %vm726, %v1042
      %1113 = vst.msk [vmem:[%s319 + $0xb8] sm:$0xff] %vm726, %v1047
      %1114 = vst.msk [vmem:[%s319 + $0xc0] sm:$0xff] %vm726, %v1052
      %1115 = vst.msk [vmem:[%s319 + $0xc8] sm:$0xff] %vm726, %v1057
      %1116 = vst.msk [vmem:[%s319 + $0xd0] sm:$0xff] %vm726, %v1062
      %1117 = vst.msk [vmem:[%s319 + $0xd8] sm:$0xff] %vm726, %v1067
      %1118 = vst.msk [vmem:[%s319 + $0xe0] sm:$0xff] %vm726, %v1072
      %1119 = vst.msk [vmem:[%s319 + $0xe8] sm:$0xff] %vm726, %v1077
      %1120 = vst.msk [vmem:[%s319 + $0xf0] sm:$0xff] %vm726, %v1082
      %1121 = vst.msk [vmem:[%s319 + $0xf8] sm:$0xff] %vm726, %v1087
      %v1122 = vsel %vm726, %v932, 0.0
      %v1123 = vsel %vm726, %v937, 0.0
      %v1124 = vadd.f32 %v1122, %v1123
      %v1125 = vsel %vm726, %v942, 0.0
      %v1126 = vadd.f32 %v1124, %v1125
      %v1127 = vsel %vm726, %v947, 0.0
      %v1128 = vadd.f32 %v1126, %v1127
      %v1129 = vsel %vm726, %v952, 0.0
      %v1130 = vadd.f32 %v1128, %v1129
      %v1131 = vsel %vm726, %v957, 0.0
      %v1132 = vadd.f32 %v1130, %v1131
      %v1133 = vsel %vm726, %v962, 0.0
      %v1134 = vadd.f32 %v1132, %v1133
      %v1135 = vsel %vm726, %v967, 0.0
      %v1136 = vadd.f32 %v1134, %v1135
      %v1137 = vsel %vm726, %v972, 0.0
      %v1138 = vadd.f32 %v1136, %v1137
      %v1139 = vsel %vm726, %v977, 0.0
      %v1140 = vadd.f32 %v1138, %v1139
      %v1141 = vsel %vm726, %v982, 0.0
      %v1142 = vadd.f32 %v1140, %v1141
      %v1143 = vsel %vm726, %v987, 0.0
      %v1144 = vadd.f32 %v1142, %v1143
      %v1145 = vsel %vm726, %v992, 0.0
      %v1146 = vadd.f32 %v1144, %v1145
      %v1147 = vsel %vm726, %v997, 0.0
      %v1148 = vadd.f32 %v1146, %v1147
      %v1149 = vsel %vm726, %v1002, 0.0
      %v1150 = vadd.f32 %v1148, %v1149
      %v1151 = vsel %vm726, %v1007, 0.0
      %v1152 = vadd.f32 %v1150, %v1151
      %v1153 = vsel %vm726, %v1012, 0.0
      %v1154 = vadd.f32 %v1152, %v1153
      %v1155 = vsel %vm726, %v1017, 0.0
      %v1156 = vadd.f32 %v1154, %v1155
      %v1157 = vsel %vm726, %v1022, 0.0
      %v1158 = vadd.f32 %v1156, %v1157
      %v1159 = vsel %vm726, %v1027, 0.0
      %v1160 = vadd.f32 %v1158, %v1159
      %v1161 = vsel %vm726, %v1032, 0.0
      %v1162 = vadd.f32 %v1160, %v1161
      %v1163 = vsel %vm726, %v1037, 0.0
      %v1164 = vadd.f32 %v1162, %v1163
      %v1165 = vsel %vm726, %v1042, 0.0
      %v1166 = vadd.f32 %v1164, %v1165
      %v1167 = vsel %vm726, %v1047, 0.0
      %v1168 = vadd.f32 %v1166, %v1167
      %v1169 = vsel %vm726, %v1052, 0.0
      %v1170 = vadd.f32 %v1168, %v1169
      %v1171 = vsel %vm726, %v1057, 0.0
      %v1172 = vadd.f32 %v1170, %v1171
      %v1173 = vsel %vm726, %v1062, 0.0
      %v1174 = vadd.f32 %v1172, %v1173
      %v1175 = vsel %vm726, %v1067, 0.0
      %v1176 = vadd.f32 %v1174, %v1175
      %v1177 = vsel %vm726, %v1072, 0.0
      %v1178 = vadd.f32 %v1176, %v1177
      %v1179 = vsel %vm726, %v1077, 0.0
      %v1180 = vadd.f32 %v1178, %v1179
      %v1181 = vsel %vm726, %v1082, 0.0
      %v1182 = vadd.f32 %v1180, %v1181
      %v1183 = vsel %vm726, %v1087, 0.0
      %v1184 = vadd.f32 %v1182, %v1183
      %v1185 = vrot.slane %v1184, 4
      %v1186 = vadd.f32 %v1184, %v1185
      %v1187 = vrot.slane %v1186, 2
      %v1188 = vadd.f32 %v1186, %v1187
      %v1189 = vrot.slane %v1188, 1
      %v1190 = vadd.f32 %v1188, %v1189
      %v1191 = vmul.f32 %v932, %v932
      %v1192 = vmul.f32 %v937, %v937
      %v1193 = vmul.f32 %v942, %v942
      %v1194 = vmul.f32 %v947, %v947
      %v1195 = vmul.f32 %v952, %v952
      %v1196 = vmul.f32 %v957, %v957
      %v1197 = vmul.f32 %v962, %v962
      %v1198 = vmul.f32 %v967, %v967
      %v1199 = vmul.f32 %v972, %v972
      %v1200 = vmul.f32 %v977, %v977
      %v1201 = vmul.f32 %v982, %v982
      %v1202 = vmul.f32 %v987, %v987
      %v1203 = vmul.f32 %v992, %v992
      %v1204 = vmul.f32 %v997, %v997
      %v1205 = vmul.f32 %v1002, %v1002
      %v1206 = vmul.f32 %v1007, %v1007
      %v1207 = vmul.f32 %v1012, %v1012
      %v1208 = vmul.f32 %v1017, %v1017
      %v1209 = vmul.f32 %v1022, %v1022
      %v1210 = vmul.f32 %v1027, %v1027
      %v1211 = vmul.f32 %v1032, %v1032
      %v1212 = vmul.f32 %v1037, %v1037
      %v1213 = vmul.f32 %v1042, %v1042
      %v1214 = vmul.f32 %v1047, %v1047
      %v1215 = vmul.f32 %v1052, %v1052
      %v1216 = vmul.f32 %v1057, %v1057
      %v1217 = vmul.f32 %v1062, %v1062
      %v1218 = vmul.f32 %v1067, %v1067
      %v1219 = vmul.f32 %v1072, %v1072
      %v1220 = vmul.f32 %v1077, %v1077
      %v1221 = vmul.f32 %v1082, %v1082
      %v1222 = vmul.f32 %v1087, %v1087
      %v1223 = vsel %vm726, %v1191, 0.0
      %v1224 = vsel %vm726, %v1192, 0.0
      %v1225 = vadd.f32 %v1223, %v1224
      %v1226 = vsel %vm726, %v1193, 0.0
      %v1227 = vadd.f32 %v1225, %v1226
      %v1228 = vsel %vm726, %v1194, 0.0
      %v1229 = vadd.f32 %v1227, %v1228
      %v1230 = vsel %vm726, %v1195, 0.0
      %v1231 = vadd.f32 %v1229, %v1230
      %v1232 = vsel %vm726, %v1196, 0.0
      %v1233 = vadd.f32 %v1231, %v1232
      %v1234 = vsel %vm726, %v1197, 0.0
      %v1235 = vadd.f32 %v1233, %v1234
      %v1236 = vsel %vm726, %v1198, 0.0
      %v1237 = vadd.f32 %v1235, %v1236
      %v1238 = vsel %vm726, %v1199, 0.0
      %v1239 = vadd.f32 %v1237, %v1238
      %v1240 = vsel %vm726, %v1200, 0.0
      %v1241 = vadd.f32 %v1239, %v1240
      %v1242 = vsel %vm726, %v1201, 0.0
      %v1243 = vadd.f32 %v1241, %v1242
      %v1244 = vsel %vm726, %v1202, 0.0
      %v1245 = vadd.f32 %v1243, %v1244
      %v1246 = vsel %vm726, %v1203, 0.0
      %v1247 = vadd.f32 %v1245, %v1246
      %v1248 = vsel %vm726, %v1204, 0.0
      %v1249 = vadd.f32 %v1247, %v1248
      %v1250 = vsel %vm726, %v1205, 0.0
      %v1251 = vadd.f32 %v1249, %v1250
      %v1252 = vsel %vm726, %v1206, 0.0
      %v1253 = vadd.f32 %v1251, %v1252
      %v1254 = vsel %vm726, %v1207, 0.0
      %v1255 = vadd.f32 %v1253, %v1254
      %v1256 = vsel %vm726, %v1208, 0.0
      %v1257 = vadd.f32 %v1255, %v1256
      %v1258 = vsel %vm726, %v1209, 0.0
      %v1259 = vadd.f32 %v1257, %v1258
      %v1260 = vsel %vm726, %v1210, 0.0
      %v1261 = vadd.f32 %v1259, %v1260
      %v1262 = vsel %vm726, %v1211, 0.0
      %v1263 = vadd.f32 %v1261, %v1262
      %v1264 = vsel %vm726, %v1212, 0.0
      %v1265 = vadd.f32 %v1263, %v1264
      %v1266 = vsel %vm726, %v1213, 0.0
      %v1267 = vadd.f32 %v1265, %v1266
      %v1268 = vsel %vm726, %v1214, 0.0
      %v1269 = vadd.f32 %v1267, %v1268
      %v1270 = vsel %vm726, %v1215, 0.0
      %v1271 = vadd.f32 %v1269, %v1270
      %v1272 = vsel %vm726, %v1216, 0.0
      %v1273 = vadd.f32 %v1271, %v1272
      %v1274 = vsel %vm726, %v1217, 0.0
      %v1275 = vadd.f32 %v1273, %v1274
      %v1276 = vsel %vm726, %v1218, 0.0
      %v1277 = vadd.f32 %v1275, %v1276
      %v1278 = vsel %vm726, %v1219, 0.0
      %v1279 = vadd.f32 %v1277, %v1278
      %v1280 = vsel %vm726, %v1220, 0.0
      %v1281 = vadd.f32 %v1279, %v1280
      %v1282 = vsel %vm726, %v1221, 0.0
      %v1283 = vadd.f32 %v1281, %v1282
      %v1284 = vsel %vm726, %v1222, 0.0
      %v1285 = vadd.f32 %v1283, %v1284
      %v1286 = vrot.slane %v1285, 4
      %v1287 = vadd.f32 %v1285, %v1286
      %v1288 = vrot.slane %v1287, 2
      %v1289 = vadd.f32 %v1287, %v1288
      %v1290 = vrot.slane %v1289, 1
      %v1291 = vadd.f32 %v1289, %v1290
      %vm1292 = vcmask 1040384
      %v1293 = vsel %vm1292, %v1190, %v1291
      %vm1294 = vcmask 58368
      %1295 = vst.msk [vmem:[%s323] sm:$0x3] %vm1294, %v1293
      %p1296 = scmp.lt.s32.totalorder %s19, 1
      %s1297 = scalar_select %p1296, %s19, 1
      %s1298 = smul.addr %s1297, 32
      %s1299 = smul.addr %s1298, 8
      %s1300 = scalar_lea.vmem %s6, %s1299
      %p1301 = scmp.lt.s32.totalorder %s19, 1
      %s1302 = scalar_select %p1301, %s19, 1
      %s1303 = smul.addr %s1302, 2
      %s1304 = scalar_lea.vmem %s7, %s1303
      // Predicated region
      $region45: #{aspp_forward.4} parent=43 // pred_check
        %p1305 = pneg %p178
      $region46: #{aspp_forward.4} parent=43 // pred_check_branch
        %1307 = sbr.rel (%p1305) target = $region48
      $region47: #{aspp_forward.4} parent=43 // pred_region
        _
      $region48: #{aspp_forward.4} parent=43 // pred_fallthru
        _
      // Predicated region
      $region49: #{aspp_forward.4} parent=43 // pred_check
        %p1308 = pneg %p204
      $region50: #{aspp_forward.4} parent=43 // pred_check_branch
        %1310 = sbr.rel (%p1308) target = $region52
      $region51: #{aspp_forward.4} parent=43 // pred_region
        _
      $region52: #{aspp_forward.4} parent=43 // pred_fallthru
        _
    $region44: #{aspp_forward.4} parent=5 // pred_fallthru
      _
    %p1311 = scmp.le.s32.totalorder 2, %s14
    // Predicated region
    $region53: #{aspp_forward.4} parent=5 // pred_check
      %p1312 = pneg %p1311
    $region54: #{aspp_forward.4} parent=5 // pred_check_branch
      %1314 = sbr.rel (%p1312) target = $region56
    $region55: #{aspp_forward.4} parent=5 // pred_region
      %s1315 = ssub.s32 %s14, 2
      // Predicated region
      $region57: #{aspp_forward.4} parent=55 // pred_check
        %p1316 = pneg %p184
      $region58: #{aspp_forward.4} parent=55 // pred_check_branch
        %1318 = sbr.rel (%p1316) target = $region60
      $region59: #{aspp_forward.4} parent=55 // pred_region
        %p1319 = scmp.lt.s32.totalorder %s20, 1
        %s1320 = scalar_select %p1319, %s20, 1
        %s1321 = smul.addr %s1320, 32
        %s1322 = smul.addr %s1321, 8
        %s1323 = scalar_lea.vmem %s6, %s1322
      $region60: #{aspp_forward.4} parent=55 // pred_fallthru
        _
      // Predicated region
      $region61: #{aspp_forward.4} parent=55 // pred_check
        %p1324 = pneg %p210
      $region62: #{aspp_forward.4} parent=55 // pred_check_branch
        %1326 = sbr.rel (%p1324) target = $region64
      $region63: #{aspp_forward.4} parent=55 // pred_region
        %p1327 = scmp.lt.s32.totalorder %s20, 1
        %s1328 = scalar_select %p1327, %s20, 1
        %s1329 = smul.addr %s1328, 2
        %s1330 = scalar_lea.vmem %s7, %s1329
      $region64: #{aspp_forward.4} parent=55 // pred_fallthru
        _
    $region56: #{aspp_forward.4} parent=5 // pred_fallthru
      _
  $region6: #{aspp_forward.4} parent=0 // loop_footer
    %s18 = sadd.s32 1, %s14
  $region7: #{aspp_forward.4} parent=0 // loop_footer_branch
    %13 = sbr.rel target = $region3
  $region8: #{aspp_forward.4} parent=0 // loop_exit
    _

// kernel: aspp_forward.3
$region0: #{aspp_forward.3}
  #allocation0 [shape = 'u32[]', space=smem, size = 0x4, offset = 0x4, fixed_abs, tag = 'smem constant byte address 0x4 - core index']
  #allocation1 [shape = 'u32[144,128]{1,0:T(1,128)}', space=vmem, size = 0x12000, scoped, tag = 'internal scratch']
  %s0 = inlined_call_operand.vmem [shape: f32[2,24,24,8], index: 0, kind: input, shape index: {}]
  %s1 = inlined_call_operand.vmem [shape: f32[72,8], index: 1, kind: input, shape index: {}]
  %s2 = inlined_call_operand.vmem [shape: f32[1,8], index: 2, kind: input, shape index: {}]
  %s3 = inlined_call_operand.vmem [shape: f32[72,8], index: 3, kind: input, shape index: {}]
  %s4 = inlined_call_operand.vmem [shape: f32[1,8], index: 4, kind: input, shape index: {}]
  %s5 = inlined_call_operand.vmem [shape: f32[8,8], index: 5, kind: input, shape index: {}]
  %s6 = inlined_call_operand.vmem [shape: f32[1,8], index: 6, kind: input, shape index: {}]
  %s7 = inlined_call_operand.vmem [shape: f32[2,16,16,8], index: 7, kind: output, shape index: {0}]
  %s8 = inlined_call_operand.vmem [shape: f32[2,16,16,8], index: 8, kind: output, shape index: {1}]
  %s9 = inlined_call_operand.vmem [shape: f32[2,1,8], index: 9, kind: output, shape index: {2}]
  %s10 = inlined_call_operand.vmem [shape: f32[2,2,8], index: 10, kind: output, shape index: {3}]
  %s11 = inlined_call_operand.vmem [shape: f32[2,2,8], index: 11, kind: output, shape index: {4}]
  %12 = xla_tuple %s7, %s8, %s9, %s10, %s11
  %s13 = sld [smem:[#allocation0]]
  $region93: #{aspp_forward.3} parent=0
    _
  %s15 = ssub.s32 1, %s13
  %s16 = scalar_select 0, %s15, %s13
  loop: start=0, step=1, limit=4
  $region2: #{aspp_forward.3} parent=0 // loop_pre_header
    _
  $region3: #{aspp_forward.3} parent=0 // loop_header
    %s18 = sphi 0, %s22
    %p19 = scmp.ge.s32.totalorder %s18, 4
    %s28 = sphi 0, %s30
    %s31 = sphi 0, %s28
    %s32 = sphi 0, %s31
    %s48 = sphi 0, %s32
    %s52 = sphi 0, %s52
    %s54 = sphi 0, %s52
    %s55 = sphi 0, %s54
    %s69 = sphi 0, %s55
    %s73 = sphi 0, %s73
    %s75 = sphi 0, %s73
    %s76 = sphi 0, %s75
    %s90 = sphi 0, %s76
    %s94 = sphi 0, %s94
    %s96 = sphi 0, %s94
    %s97 = sphi 0, %s96
    %s111 = sphi 0, %s97
    %s115 = sphi 0, %s115
    %s117 = sphi 0, %s115
    %s118 = sphi 0, %s117
    %s132 = sphi 0, %s118
    %s136 = sphi 0, %s136
    %s138 = sphi 0, %s136
    %s139 = sphi 0, %s138
    %s153 = sphi 0, %s139
    %s157 = sphi 0, %s157
    %s159 = sphi 0, %s157
    %s160 = sphi 0, %s159
    %s174 = sphi 0, %s160
    %s180 = sphi 0, %s182
    %s183 = sphi 0, %s180
    %s184 = sphi 0, %s183
    %s200 = sphi 0, %s184
    %s206 = sphi 0, %s208
    %s209 = sphi 0, %s206
    %s210 = sphi 0, %s209
    %s226 = sphi 0, %s210
    %s232 = sphi 0, %s234
    %s235 = sphi 0, %s232
    %s236 = sphi 0, %s235
    %s252 = sphi 0, %s236
    %s258 = sphi 0, %s260
    %s261 = sphi 0, %s258
    %s262 = sphi 0, %s261
    %s278 = sphi 0, %s262
    %s284 = sphi 0, %s286
    %s287 = sphi 0, %s284
    %s288 = sphi 0, %s287
    %s304 = sphi 0, %s288
  $region4: #{aspp_forward.3} parent=0 // loop_header_branch
    %21 = sbr.rel (%p19) target = $region8
  $region5: #{aspp_forward.3} parent=0 // loop_body
    %s23 = ssub.s32 %s18, 1
    %s24 = ssub.s32 %s18, 2
    %s25 = sadd.s32 %s18, 1
    %s26 = ssub.s32 %s18, %s25
    %p27 = scmp.eq.s32.totalorder %s26, 0
    %s29 = sadd.s32 %s28, 1
    %s30 = scalar_select %p27, %s28, %s29
    %p33 = pneg %p27
    %p34 = scmp.eq.s32.totalorder %s18, 1
    %p35 = por %p33, %p34
    %p36 = scmp.ne.s32.totalorder %s28, %s31
    %p37 = scmp.eq.s32.totalorder %s18, 0
    %p38 = por %p36, %p37
    %p39 = scmp.ne.s32.totalorder %s28, %s31
    %p40 = scmp.eq.s32.totalorder %s23, 1
    %p41 = por %p39, %p40
    %p42 = scmp.ne.s32.totalorder %s31, %s32
    %p43 = scmp.eq.s32.totalorder %s23, 0
    %p44 = por %p42, %p43
    %p45 = scmp.ne.s32.totalorder %s31, %s32
    %p46 = scmp.eq.s32.totalorder %s24, 1
    %p47 = por %p45, %p46
    %p49 = scmp.ne.s32.totalorder %s32, %s48
    %p50 = scmp.eq.s32.totalorder %s24, 0
    %p51 = por %p49, %p50
    %s53 = sadd.s32 %s52, 1
    %p56 = scmp.eq.s32.totalorder %s18, 1
    %p57 = scmp.ne.s32.totalorder %s52, %s54
    %p58 = scmp.eq.s32.totalorder %s18, 0
    %p59 = por %p57, %p58
    %p60 = scmp.ne.s32.totalorder %s52, %s54
    %p61 = scmp.eq.s32.totalorder %s23, 1
    %p62 = por %p60, %p61
    %p63 = scmp.ne.s32.totalorder %s54, %s55
    %p64 = scmp.eq.s32.totalorder %s23, 0
    %p65 = por %p63, %p64
    %p66 = scmp.ne.s32.totalorder %s54, %s55
    %p67 = scmp.eq.s32.totalorder %s24, 1
    %p68 = por %p66, %p67
    %p70 = scmp.ne.s32.totalorder %s55, %s69
    %p71 = scmp.eq.s32.totalorder %s24, 0
    %p72 = por %p70, %p71
    %s74 = sadd.s32 %s73, 1
    %p77 = scmp.eq.s32.totalorder %s18, 1
    %p78 = scmp.ne.s32.totalorder %s73, %s75
    %p79 = scmp.eq.s32.totalorder %s18, 0
    %p80 = por %p78, %p79
    %p81 = scmp.ne.s32.totalorder %s73, %s75
    %p82 = scmp.eq.s32.totalorder %s23, 1
    %p83 = por %p81, %p82
    %p84 = scmp.ne.s32.totalorder %s75, %s76
    %p85 = scmp.eq.s32.totalorder %s23, 0
    %p86 = por %p84, %p85
    %p87 = scmp.ne.s32.totalorder %s75, %s76
    %p88 = scmp.eq.s32.totalorder %s24, 1
    %p89 = por %p87, %p88
    %p91 = scmp.ne.s32.totalorder %s76, %s90
    %p92 = scmp.eq.s32.totalorder %s24, 0
    %p93 = por %p91, %p92
    %s95 = sadd.s32 %s94, 1
    %p98 = scmp.eq.s32.totalorder %s18, 1
    %p99 = scmp.ne.s32.totalorder %s94, %s96
    %p100 = scmp.eq.s32.totalorder %s18, 0
    %p101 = por %p99, %p100
    %p102 = scmp.ne.s32.totalorder %s94, %s96
    %p103 = scmp.eq.s32.totalorder %s23, 1
    %p104 = por %p102, %p103
    %p105 = scmp.ne.s32.totalorder %s96, %s97
    %p106 = scmp.eq.s32.totalorder %s23, 0
    %p107 = por %p105, %p106
    %p108 = scmp.ne.s32.totalorder %s96, %s97
    %p109 = scmp.eq.s32.totalorder %s24, 1
    %p110 = por %p108, %p109
    %p112 = scmp.ne.s32.totalorder %s97, %s111
    %p113 = scmp.eq.s32.totalorder %s24, 0
    %p114 = por %p112, %p113
    %s116 = sadd.s32 %s115, 1
    %p119 = scmp.eq.s32.totalorder %s18, 1
    %p120 = scmp.ne.s32.totalorder %s115, %s117
    %p121 = scmp.eq.s32.totalorder %s18, 0
    %p122 = por %p120, %p121
    %p123 = scmp.ne.s32.totalorder %s115, %s117
    %p124 = scmp.eq.s32.totalorder %s23, 1
    %p125 = por %p123, %p124
    %p126 = scmp.ne.s32.totalorder %s117, %s118
    %p127 = scmp.eq.s32.totalorder %s23, 0
    %p128 = por %p126, %p127
    %p129 = scmp.ne.s32.totalorder %s117, %s118
    %p130 = scmp.eq.s32.totalorder %s24, 1
    %p131 = por %p129, %p130
    %p133 = scmp.ne.s32.totalorder %s118, %s132
    %p134 = scmp.eq.s32.totalorder %s24, 0
    %p135 = por %p133, %p134
    %s137 = sadd.s32 %s136, 1
    %p140 = scmp.eq.s32.totalorder %s18, 1
    %p141 = scmp.ne.s32.totalorder %s136, %s138
    %p142 = scmp.eq.s32.totalorder %s18, 0
    %p143 = por %p141, %p142
    %p144 = scmp.ne.s32.totalorder %s136, %s138
    %p145 = scmp.eq.s32.totalorder %s23, 1
    %p146 = por %p144, %p145
    %p147 = scmp.ne.s32.totalorder %s138, %s139
    %p148 = scmp.eq.s32.totalorder %s23, 0
    %p149 = por %p147, %p148
    %p150 = scmp.ne.s32.totalorder %s138, %s139
    %p151 = scmp.eq.s32.totalorder %s24, 1
    %p152 = por %p150, %p151
    %p154 = scmp.ne.s32.totalorder %s139, %s153
    %p155 = scmp.eq.s32.totalorder %s24, 0
    %p156 = por %p154, %p155
    %s158 = sadd.s32 %s157, 1
    %p161 = scmp.eq.s32.totalorder %s18, 1
    %p162 = scmp.ne.s32.totalorder %s157, %s159
    %p163 = scmp.eq.s32.totalorder %s18, 0
    %p164 = por %p162, %p163
    %p165 = scmp.ne.s32.totalorder %s157, %s159
    %p166 = scmp.eq.s32.totalorder %s23, 1
    %p167 = por %p165, %p166
    %p168 = scmp.ne.s32.totalorder %s159, %s160
    %p169 = scmp.eq.s32.totalorder %s23, 0
    %p170 = por %p168, %p169
    %p171 = scmp.ne.s32.totalorder %s159, %s160
    %p172 = scmp.eq.s32.totalorder %s24, 1
    %p173 = por %p171, %p172
    %p175 = scmp.ne.s32.totalorder %s160, %s174
    %p176 = scmp.eq.s32.totalorder %s24, 0
    %p177 = por %p175, %p176
    %s178 = ssub.s32 %s18, %s25
    %p179 = scmp.eq.s32.totalorder %s178, 0
    %s181 = sadd.s32 %s180, 1
    %s182 = scalar_select %p179, %s180, %s181
    %p185 = pneg %p179
    %p186 = scmp.eq.s32.totalorder %s18, 1
    %p187 = por %p185, %p186
    %p188 = scmp.ne.s32.totalorder %s180, %s183
    %p189 = scmp.eq.s32.totalorder %s18, 0
    %p190 = por %p188, %p189
    %p191 = scmp.ne.s32.totalorder %s180, %s183
    %p192 = scmp.eq.s32.totalorder %s23, 1
    %p193 = por %p191, %p192
    %p194 = scmp.ne.s32.totalorder %s183, %s184
    %p195 = scmp.eq.s32.totalorder %s23, 0
    %p196 = por %p194, %p195
    %p197 = scmp.ne.s32.totalorder %s183, %s184
    %p198 = scmp.eq.s32.totalorder %s24, 1
    %p199 = por %p197, %p198
    %p201 = scmp.ne.s32.totalorder %s184, %s200
    %p202 = scmp.eq.s32.totalorder %s24, 0
    %p203 = por %p201, %p202
    %s204 = ssub.s32 %s18, %s25
    %p205 = scmp.eq.s32.totalorder %s204, 0
    %s207 = sadd.s32 %s206, 1
    %s208 = scalar_select %p205, %s206, %s207
    %p211 = pneg %p205
    %p212 = scmp.eq.s32.totalorder %s18, 1
    %p213 = por %p211, %p212
    %p214 = scmp.ne.s32.totalorder %s206, %s209
    %p215 = scmp.eq.s32.totalorder %s18, 0
    %p216 = por %p214, %p215
    %p217 = scmp.ne.s32.totalorder %s206, %s209
    %p218 = scmp.eq.s32.totalorder %s23, 1
    %p219 = por %p217, %p218
    %p220 = scmp.ne.s32.totalorder %s209, %s210
    %p221 = scmp.eq.s32.totalorder %s23, 0
    %p222 = por %p220, %p221
    %p223 = scmp.ne.s32.totalorder %s209, %s210
    %p224 = scmp.eq.s32.totalorder %s24, 1
    %p225 = por %p223, %p224
    %p227 = scmp.ne.s32.totalorder %s210, %s226
    %p228 = scmp.eq.s32.totalorder %s24, 0
    %p229 = por %p227, %p228
    %s230 = ssub.s32 %s18, %s25
    %p231 = scmp.eq.s32.totalorder %s230, 0
    %s233 = sadd.s32 %s232, 1
    %s234 = scalar_select %p231, %s232, %s233
    %p237 = pneg %p231
    %p238 = scmp.eq.s32.totalorder %s18, 1
    %p239 = por %p237, %p238
    %p240 = scmp.ne.s32.totalorder %s232, %s235
    %p241 = scmp.eq.s32.totalorder %s18, 0
    %p242 = por %p240, %p241
    %p243 = scmp.ne.s32.totalorder %s232, %s235
    %p244 = scmp.eq.s32.totalorder %s23, 1
    %p245 = por %p243, %p244
    %p246 = scmp.ne.s32.totalorder %s235, %s236
    %p247 = scmp.eq.s32.totalorder %s23, 0
    %p248 = por %p246, %p247
    %p249 = scmp.ne.s32.totalorder %s235, %s236
    %p250 = scmp.eq.s32.totalorder %s24, 1
    %p251 = por %p249, %p250
    %p253 = scmp.ne.s32.totalorder %s236, %s252
    %p254 = scmp.eq.s32.totalorder %s24, 0
    %p255 = por %p253, %p254
    %s256 = ssub.s32 %s18, %s25
    %p257 = scmp.eq.s32.totalorder %s256, 0
    %s259 = sadd.s32 %s258, 1
    %s260 = scalar_select %p257, %s258, %s259
    %p263 = pneg %p257
    %p264 = scmp.eq.s32.totalorder %s18, 1
    %p265 = por %p263, %p264
    %p266 = scmp.ne.s32.totalorder %s258, %s261
    %p267 = scmp.eq.s32.totalorder %s18, 0
    %p268 = por %p266, %p267
    %p269 = scmp.ne.s32.totalorder %s258, %s261
    %p270 = scmp.eq.s32.totalorder %s23, 1
    %p271 = por %p269, %p270
    %p272 = scmp.ne.s32.totalorder %s261, %s262
    %p273 = scmp.eq.s32.totalorder %s23, 0
    %p274 = por %p272, %p273
    %p275 = scmp.ne.s32.totalorder %s261, %s262
    %p276 = scmp.eq.s32.totalorder %s24, 1
    %p277 = por %p275, %p276
    %p279 = scmp.ne.s32.totalorder %s262, %s278
    %p280 = scmp.eq.s32.totalorder %s24, 0
    %p281 = por %p279, %p280
    %s282 = ssub.s32 %s18, %s25
    %p283 = scmp.eq.s32.totalorder %s282, 0
    %s285 = sadd.s32 %s284, 1
    %s286 = scalar_select %p283, %s284, %s285
    %p289 = pneg %p283
    %p290 = scmp.eq.s32.totalorder %s18, 1
    %p291 = por %p289, %p290
    %p292 = scmp.ne.s32.totalorder %s284, %s287
    %p293 = scmp.eq.s32.totalorder %s18, 0
    %p294 = por %p292, %p293
    %p295 = scmp.ne.s32.totalorder %s284, %s287
    %p296 = scmp.eq.s32.totalorder %s23, 1
    %p297 = por %p295, %p296
    %p298 = scmp.ne.s32.totalorder %s287, %s288
    %p299 = scmp.eq.s32.totalorder %s23, 0
    %p300 = por %p298, %p299
    %p301 = scmp.ne.s32.totalorder %s287, %s288
    %p302 = scmp.eq.s32.totalorder %s24, 1
    %p303 = por %p301, %p302
    %p305 = scmp.ne.s32.totalorder %s288, %s304
    %p306 = scmp.eq.s32.totalorder %s24, 0
    %p307 = por %p305, %p306
    %p308 = scmp.le.s32.totalorder 1, %s18
    %p309 = scmp.lt.s32.totalorder %s18, 3
    %p310 = pnand %p308, %p309
    %p311 = pneg %p310
    // Predicated region
    $region9: #{aspp_forward.3} parent=5 // pred_check
      _
    $region10: #{aspp_forward.3} parent=5 // pred_check_branch
      %313 = sbr.rel (%p310) target = $region12
    $region11: #{aspp_forward.3} parent=5 // pred_region
      %s314 = ssub.s32 %s18, 1
      // Predicated region
      $region13: #{aspp_forward.3} parent=11 // pred_check
        %p315 = pneg %p65
      $region14: #{aspp_forward.3} parent=11 // pred_check_branch
        %317 = sbr.rel (%p315) target = $region16
      $region15: #{aspp_forward.3} parent=11 // pred_region
        _
      $region16: #{aspp_forward.3} parent=11 // pred_fallthru
        _
      // Predicated region
      $region17: #{aspp_forward.3} parent=11 // pred_check
        %p318 = pneg %p86
      $region18: #{aspp_forward.3} parent=11 // pred_check_branch
        %320 = sbr.rel (%p318) target = $region20
      $region19: #{aspp_forward.3} parent=11 // pred_region
        _
      $region20: #{aspp_forward.3} parent=11 // pred_fallthru
        _
      // Predicated region
      $region21: #{aspp_forward.3} parent=11 // pred_check
        %p321 = pneg %p107
      $region22: #{aspp_forward.3} parent=11 // pred_check_branch
        %323 = sbr.rel (%p321) target = $region24
      $region23: #{aspp_forward.3} parent=11 // pred_region
        _
      $region24: #{aspp_forward.3} parent=11 // pred_fallthru
        _
      // Predicated region
      $region25: #{aspp_forward.3} parent=11 // pred_check
        %p324 = pneg %p128
      $region26: #{aspp_forward.3} parent=11 // pred_check_branch
        %326 = sbr.rel (%p324) target = $region28
      $region27: #{aspp_forward.3} parent=11 // pred_region
        _
      $region28: #{aspp_forward.3} parent=11 // pred_fallthru
        _
      // Predicated region
      $region29: #{aspp_forward.3} parent=11 // pred_check
        %p327 = pneg %p149
      $region30: #{aspp_forward.3} parent=11 // pred_check_branch
        %329 = sbr.rel (%p327) target = $region32
      $region31: #{aspp_forward.3} parent=11 // pred_region
        _
      $region32: #{aspp_forward.3} parent=11 // pred_fallthru
        _
      // Predicated region
      $region33: #{aspp_forward.3} parent=11 // pred_check
        %p330 = pneg %p170
      $region34: #{aspp_forward.3} parent=11 // pred_check_branch
        %332 = sbr.rel (%p330) target = $region36
      $region35: #{aspp_forward.3} parent=11 // pred_region
        _
      $region36: #{aspp_forward.3} parent=11 // pred_fallthru
        _
    $region12: #{aspp_forward.3} parent=5 // pred_fallthru
      _
    %p333 = scmp.lt.s32.totalorder %s18, 2
    // Predicated region
    $region37: #{aspp_forward.3} parent=5 // pred_check
      %p334 = pneg %p333
    $region38: #{aspp_forward.3} parent=5 // pred_check_branch
      %336 = sbr.rel (%p334) target = $region40
    $region39: #{aspp_forward.3} parent=5 // pred_region
      // Predicated region
      $region41: #{aspp_forward.3} parent=39 // pred_check
        %p337 = pneg %p38
      $region42: #{aspp_forward.3} parent=39 // pred_check_branch
        %339 = sbr.rel (%p337) target = $region44
      $region43: #{aspp_forward.3} parent=39 // pred_region
        %p340 = scmp.lt.s32.totalorder %s18, 1
        %s341 = scalar_select %p340, %s18, 1
        %s342 = smul.addr %s341, 72
        %s343 = smul.addr %s342, 8
        %s344 = scalar_lea.vmem %s0, %s343
      $region44: #{aspp_forward.3} parent=39 // pred_fallthru
        _
    $region40: #{aspp_forward.3} parent=5 // pred_fallthru
      _
    %p345 = scmp.le.s32.totalorder 1, %s18
    %p346 = scmp.lt.s32.totalorder %s18, 3
    %p347 = pnand %p345, %p346
    %p348 = pneg %p347
    // Predicated region
    $region45: #{aspp_forward.3} parent=5 // pred_check
      _
    $region46: #{aspp_forward.3} parent=5 // pred_check_branch
      %350 = sbr.rel (%p347) target = $region48
    $region47: #{aspp_forward.3} parent=5 // pred_region
      %s351 = ssub.s32 %s18, 1
      %p352 = scmp.lt.s32.totalorder %s23, 1
      %s353 = scalar_select %p352, %s23, 1
      %s354 = smul.addr %s353, 72
      %s355 = smul.addr %s354, 8
      %s356 = scalar_lea.vmem %s0, %s355
      %p357 = pneg %p44
      %p358 = pneg %p41
      %p359 = pneg %p65
      %p360 = pneg %p62
      %p361 = pneg %p86
      %p362 = pneg %p83
      %p363 = pneg %p107
      %p364 = pneg %p104
      %p365 = pneg %p128
      %p366 = pneg %p125
      %p367 = pneg %p149
      %p368 = pneg %p146
      %p369 = pneg %p170
      %p370 = pneg %p167
      %p371 = pneg %p196
      %p372 = pneg %p193
      %p373 = scmp.lt.s32.totalorder %s23, 1
      %s374 = scalar_select %p373, %s23, 1
      %s375 = smul.addr %s374, 32
      %s376 = smul.addr %s375, 8
      %s377 = scalar_lea.vmem %s7, %s376
      %p378 = pneg %p222
      %p379 = pneg %p219
      %p380 = scmp.lt.s32.totalorder %s23, 1
      %s381 = scalar_select %p380, %s23, 1
      %s382 = smul.addr %s381, 32
      %s383 = smul.addr %s382, 8
      %s384 = scalar_lea.vmem %s8, %s383
      %p385 = pneg %p248
      %p386 = pneg %p245
      %p387 = scmp.lt.s32.totalorder %s23, 1
      %s388 = scalar_select %p387, %s23, 1
      %s389 = scalar_lea.vmem %s9, %s388
      %p390 = pneg %p274
      %p391 = pneg %p271
      %p392 = scmp.lt.s32.totalorder %s23, 1
      %s393 = scalar_select %p392, %s23, 1
      %s394 = smul.addr %s393, 2
      %s395 = scalar_lea.vmem %s10, %s394
      %p396 = pneg %p300
      %p397 = pneg %p297
      %p398 = scmp.lt.s32.totalorder %s23, 1
      %s399 = scalar_select %p398, %s23, 1
      %s400 = smul.addr %s399, 2
      %s401 = scalar_lea.vmem %s11, %s400
      %p402 = scmp.lt.s32.totalorder %s23, 1
      %s403 = scalar_select %p402, %s23, 1
      %s404 = smul.addr %s403, 72
      %s405 = smul.addr %s404, 8
      %s406 = scalar_lea.vmem %s0, %s405
      %p407 = scmp.lt.s32.totalorder %s23, 1
      %s408 = scalar_select %p407, %s23, 1
      %s409 = smul.addr %s408, 32
      %s410 = smul.addr %s409, 8
      %s411 = scalar_lea.vmem %s7, %s410
      %p412 = scmp.lt.s32.totalorder %s23, 1
      %s413 = scalar_select %p412, %s23, 1
      %s414 = smul.addr %s413, 32
      %s415 = smul.addr %s414, 8
      %s416 = scalar_lea.vmem %s8, %s415
      %p417 = scmp.lt.s32.totalorder %s23, 1
      %s418 = scalar_select %p417, %s23, 1
      %s419 = scalar_lea.vmem %s9, %s418
      %p420 = scmp.lt.s32.totalorder %s23, 1
      %s421 = scalar_select %p420, %s23, 1
      %s422 = smul.addr %s421, 2
      %s423 = scalar_lea.vmem %s10, %s422
      %p424 = scmp.lt.s32.totalorder %s23, 1
      %s425 = scalar_select %p424, %s23, 1
      %s426 = smul.addr %s425, 2
      %s427 = scalar_lea.vmem %s11, %s426
      %v428 = vld [vmem:[%s406] sm:$0xff]
      %v429 = vld [vmem:[%s406 + $0x8] sm:$0xff]
      %v430 = vld [vmem:[%s406 + $0x10] sm:$0xff]
      %v431 = vld [vmem:[%s406 + $0x18] sm:$0xff]
      %v432 = vld [vmem:[%s406 + $0x20] sm:$0xff]
      %v433 = vld [vmem:[%s406 + $0x28] sm:$0xff]
      %v434 = vld [vmem:[%s406 + $0x30] sm:$0xff]
      %v435 = vld [vmem:[%s406 + $0x38] sm:$0xff]
      %v436 = vld [vmem:[%s406 + $0x40] sm:$0xff]
      %v437 = vld [vmem:[%s406 + $0x48] sm:$0xff]
      %v438 = vld [vmem:[%s406 + $0x50] sm:$0xff]
      %v439 = vld [vmem:[%s406 + $0x58] sm:$0xff]
      %v440 = vld [vmem:[%s406 + $0x60] sm:$0xff]
      %v441 = vld [vmem:[%s406 + $0x68] sm:$0xff]
      %v442 = vld [vmem:[%s406 + $0x70] sm:$0xff]
      %v443 = vld [vmem:[%s406 + $0x78] sm:$0xff]
      %v444 = vld [vmem:[%s406 + $0x80] sm:$0xff]
      %v445 = vld [vmem:[%s406 + $0x88] sm:$0xff]
      %v446 = vld [vmem:[%s406 + $0x90] sm:$0xff]
      %v447 = vld [vmem:[%s406 + $0x98] sm:$0xff]
      %v448 = vld [vmem:[%s406 + $0xa0] sm:$0xff]
      %v449 = vld [vmem:[%s406 + $0xa8] sm:$0xff]
      %v450 = vld [vmem:[%s406 + $0xb0] sm:$0xff]
      %v451 = vld [vmem:[%s406 + $0xb8] sm:$0xff]
      %v452 = vld [vmem:[%s406 + $0xc0] sm:$0xff]
      %v453 = vld [vmem:[%s406 + $0xc8] sm:$0xff]
      %v454 = vld [vmem:[%s406 + $0xd0] sm:$0xff]
      %v455 = vld [vmem:[%s406 + $0xd8] sm:$0xff]
      %v456 = vld [vmem:[%s406 + $0xe0] sm:$0xff]
      %v457 = vld [vmem:[%s406 + $0xe8] sm:$0xff]
      %v458 = vld [vmem:[%s406 + $0xf0] sm:$0xff]
      %v459 = vld [vmem:[%s406 + $0xf8] sm:$0xff]
      %v460 = vld [vmem:[%s406 + $0x100] sm:$0xff]
      %v461 = vld [vmem:[%s406 + $0x108] sm:$0xff]
      %v462 = vld [vmem:[%s406 + $0x110] sm:$0xff]
      %v463 = vld [vmem:[%s406 + $0x118] sm:$0xff]
      %v464 = vld [vmem:[%s406 + $0x120] sm:$0xff]
      %v465 = vld [vmem:[%s406 + $0x128] sm:$0xff]
      %v466 = vld [vmem:[%s406 + $0x130] sm:$0xff]
      %v467 = vld [vmem:[%s406 + $0x138] sm:$0xff]
      %v468 = vld [vmem:[%s406 + $0x140] sm:$0xff]
      %v469 = vld [vmem:[%s406 + $0x148] sm:$0xff]
      %v470 = vld [vmem:[%s406 + $0x150] sm:$0xff]
      %v471 = vld [vmem:[%s406 + $0x158] sm:$0xff]
      %v472 = vld [vmem:[%s406 + $0x160] sm:$0xff]
      %v473 = vld [vmem:[%s406 + $0x168] sm:$0xff]
      %v474 = vld [vmem:[%s406 + $0x170] sm:$0xff]
      %v475 = vld [vmem:[%s406 + $0x178] sm:$0xff]
      %v476 = vld [vmem:[%s406 + $0x180] sm:$0xff]
      %v477 = vld [vmem:[%s406 + $0x188] sm:$0xff]
      %v478 = vld [vmem:[%s406 + $0x190] sm:$0xff]
      %v479 = vld [vmem:[%s406 + $0x198] sm:$0xff]
      %v480 = vld [vmem:[%s406 + $0x1a0] sm:$0xff]
      %v481 = vld [vmem:[%s406 + $0x1a8] sm:$0xff]
      %v482 = vld [vmem:[%s406 + $0x1b0] sm:$0xff]
      %v483 = vld [vmem:[%s406 + $0x1b8] sm:$0xff]
      %v484 = vld [vmem:[%s406 + $0x1c0] sm:$0xff]
      %v485 = vld [vmem:[%s406 + $0x1c8] sm:$0xff]
      %v486 = vld [vmem:[%s406 + $0x1d0] sm:$0xff]
      %v487 = vld [vmem:[%s406 + $0x1d8] sm:$0xff]
      %v488 = vld [vmem:[%s406 + $0x1e0] sm:$0xff]
      %v489 = vld [vmem:[%s406 + $0x1e8] sm:$0xff]
      %v490 = vld [vmem:[%s406 + $0x1f0] sm:$0xff]
      %v491 = vld [vmem:[%s406 + $0x1f8] sm:$0xff]
      %v492 = vld [vmem:[%s406 + $0x200] sm:$0xff]
      %v493 = vld [vmem:[%s406 + $0x208] sm:$0xff]
      %v494 = vld [vmem:[%s406 + $0x210] sm:$0xff]
      %v495 = vld [vmem:[%s406 + $0x218] sm:$0xff]
      %v496 = vld [vmem:[%s406 + $0x220] sm:$0xff]
      %v497 = vld [vmem:[%s406 + $0x228] sm:$0xff]
      %v498 = vld [vmem:[%s406 + $0x230] sm:$0xff]
      %v499 = vld [vmem:[%s406 + $0x238] sm:$0xff]
      %v500 = vld [vmem:[%s1] sm:$0xff]
      %v501 = vld [vmem:[%s1 + $0x8] sm:$0xff]
      %v502 = vld [vmem:[%s1 + $0x10] sm:$0xff]
      %v503 = vld [vmem:[%s1 + $0x18] sm:$0xff]
      %v504 = vld [vmem:[%s1 + $0x20] sm:$0xff]
      %v505 = vld [vmem:[%s1 + $0x28] sm:$0xff]
      %v506 = vld [vmem:[%s1 + $0x30] sm:$0xff]
      %v507 = vld [vmem:[%s1 + $0x38] sm:$0xff]
      %v508 = vld [vmem:[%s1 + $0x40] sm:$0xff]
      %v509 = vld [vmem:[%s2] sm:$0x1]
      %vm558 = vcmask 1045504
      %v559 = vrot.slane %v434, 2
      %v560 = vrot.slane %v435, 2
      %v561 = vsel %vm558, %v559, %v560
      %v562 = vrot.slane %v436, 2
      %v563 = vsel %vm558, %v560, %v562
      %v564 = vrot.slane %v437, 2
      %v565 = vrot.slane %v438, 2
      %v566 = vsel %vm558, %v564, %v565
      %v567 = vrot.slane %v439, 2
      %v568 = vsel %vm558, %v565, %v567
      %v569 = vrot.slane %v440, 2
      %v570 = vrot.slane %v441, 2
      %v571 = vsel %vm558, %v569, %v570
      %v572 = vrot.slane %v442, 2
      %v573 = vsel %vm558, %v570, %v572
      %v574 = vrot.slane %v443, 2
      %v575 = vrot.slane %v444, 2
      %v576 = vsel %vm558, %v574, %v575
      %v577 = vrot.slane %v445, 2
      %v578 = vsel %vm558, %v575, %v577
      %v579 = vrot.slane %v446, 2
      %v580 = vrot.slane %v447, 2
      %v581 = vsel %vm558, %v579, %v580
      %v582 = vrot.slane %v448, 2
      %v583 = vsel %vm558, %v580, %v582
      %v584 = vrot.slane %v449, 2
      %v585 = vrot.slane %v450, 2
      %v586 = vsel %vm558, %v584, %v585
      %v587 = vrot.slane %v451, 2
      %v588 = vsel %vm558, %v585, %v587
      %v589 = vrot.slane %v452, 2
      %v590 = vrot.slane %v453, 2
      %v591 = vsel %vm558, %v589, %v590
      %v592 = vrot.slane %v454, 2
      %v593 = vsel %vm558, %v590, %v592
      %v594 = vrot.slane %v455, 2
      %v595 = vrot.slane %v456, 2
      %v596 = vsel %vm558, %v594, %v595
      %v597 = vrot.slane %v457, 2
      %v598 = vsel %vm558, %v595, %v597
      %v599 = vrot.slane %v458, 2
      %v600 = vrot.slane %v459, 2
      %v601 = vsel %vm558, %v599, %v600
      %v602 = vrot.slane %v460, 2
      %v603 = vsel %vm558, %v600, %v602
      %v604 = vrot.slane %v461, 2
      %v605 = vrot.slane %v462, 2
      %v606 = vsel %vm558, %v604, %v605
      %v607 = vrot.slane %v463, 2
      %v608 = vsel %vm558, %v605, %v607
      %v609 = vrot.slane %v464, 2
      %v610 = vrot.slane %v465, 2
      %v611 = vsel %vm558, %v609, %v610
      %v612 = vrot.slane %v466, 2
      %v613 = vsel %vm558, %v610, %v612
      %v614 = vrot.slane %v467, 2
      %v615 = vrot.slane %v468, 2
      %v616 = vsel %vm558, %v614, %v615
      %v617 = vrot.slane %v469, 2
      %v618 = vsel %vm558, %v615, %v617
      %v619 = vrot.slane %v470, 2
      %v620 = vrot.slane %v471, 2
      %v621 = vsel %vm558, %v619, %v620
      %v622 = vrot.slane %v472, 2
      %v623 = vsel %vm558, %v620, %v622
      %v624 = vrot.slane %v473, 2
      %v625 = vrot.slane %v474, 2
      %v626 = vsel %vm558, %v624, %v625
      %v627 = vrot.slane %v475, 2
      %v628 = vsel %vm558, %v625, %v627
      %v629 = vrot.slane %v476, 2
      %v630 = vrot.slane %v477, 2
      %v631 = vsel %vm558, %v629, %v630
      %v632 = vrot.slane %v478, 2
      %v633 = vsel %vm558, %v630, %v632
      %v634 = vrot.slane %v479, 2
      %v635 = vrot.slane %v480, 2
      %v636 = vsel %vm558, %v634, %v635
      %v637 = vrot.slane %v481, 2
      %v638 = vsel %vm558, %v635, %v637
      %vm671 = vcmask 1043456
      %v672 = vrot.slane %v434, 4
      %v673 = vrot.slane %v435, 4
      %v674 = vsel %vm671, %v672, %v673
      %v675 = vrot.slane %v436, 4
      %v676 = vsel %vm671, %v673, %v675
      %v677 = vrot.slane %v437, 4
      %v678 = vrot.slane %v438, 4
      %v679 = vsel %vm671, %v677, %v678
      %v680 = vrot.slane %v439, 4
      %v681 = vsel %vm671, %v678, %v680
      %v682 = vrot.slane %v440, 4
      %v683 = vrot.slane %v441, 4
      %v684 = vsel %vm671, %v682, %v683
      %v685 = vrot.slane %v442, 4
      %v686 = vsel %vm671, %v683, %v685
      %v687 = vrot.slane %v443, 4
      %v688 = vrot.slane %v444, 4
      %v689 = vsel %vm671, %v687, %v688
      %v690 = vrot.slane %v445, 4
      %v691 = vsel %vm671, %v688, %v690
      %v692 = vrot.slane %v446, 4
      %v693 = vrot.slane %v447, 4
      %v694 = vsel %vm671, %v692, %v693
      %v695 = vrot.slane %v448, 4
      %v696 = vsel %vm671, %v693, %v695
      %v697 = vrot.slane %v449, 4
      %v698 = vrot.slane %v450, 4
      %v699 = vsel %vm671, %v697, %v698
      %v700 = vrot.slane %v451, 4
      %v701 = vsel %vm671, %v698, %v700
      %v702 = vrot.slane %v452, 4
      %v703 = vrot.slane %v453, 4
      %v704 = vsel %vm671, %v702, %v703
      %v705 = vrot.slane %v454, 4
      %v706 = vsel %vm671, %v703, %v705
      %v707 = vrot.slane %v455, 4
      %v708 = vrot.slane %v456, 4
      %v709 = vsel %vm671, %v707, %v708
      %v710 = vrot.slane %v457, 4
      %v711 = vsel %vm671, %v708, %v710
      %v712 = vrot.slane %v458, 4
      %v713 = vrot.slane %v459, 4
      %v714 = vsel %vm671, %v712, %v713
      %v715 = vrot.slane %v460, 4
      %v716 = vsel %vm671, %v713, %v715
      %v717 = vrot.slane %v461, 4
      %v718 = vrot.slane %v462, 4
      %v719 = vsel %vm671, %v717, %v718
      %v720 = vrot.slane %v463, 4
      %v721 = vsel %vm671, %v718, %v720
      %v722 = vrot.slane %v464, 4
      %v723 = vrot.slane %v465, 4
      %v724 = vsel %vm671, %v722, %v723
      %v725 = vrot.slane %v466, 4
      %v726 = vsel %vm671, %v723, %v725
      %v727 = vrot.slane %v467, 4
      %v728 = vrot.slane %v468, 4
      %v729 = vsel %vm671, %v727, %v728
      %v730 = vrot.slane %v469, 4
      %v731 = vsel %vm671, %v728, %v730
      %v732 = vrot.slane %v470, 4
      %v733 = vrot.slane %v471, 4
      %v734 = vsel %vm671, %v732, %v733
      %v735 = vrot.slane %v472, 4
      %v736 = vsel %vm671, %v733, %v735
      %v737 = vrot.slane %v473, 4
      %v738 = vrot.slane %v474, 4
      %v739 = vsel %vm671, %v737, %v738
      %v740 = vrot.slane %v475, 4
      %v741 = vsel %vm671, %v738, %v740
      %v742 = vrot.slane %v476, 4
      %v743 = vrot.slane %v477, 4
      %v744 = vsel %vm671, %v742, %v743
      %v745 = vrot.slane %v478, 4
      %v746 = vsel %vm671, %v743, %v745
      %v747 = vrot.slane %v479, 4
      %v748 = vrot.slane %v480, 4
      %v749 = vsel %vm671, %v747, %v748
      %v750 = vrot.slane %v481, 4
      %v751 = vsel %vm671, %v748, %v750
      %vm752 = vcmask 1041408
      %v753 = vrot.slane %v434, 6
      %v754 = vrot.slane %v435, 6
      %v755 = vsel %vm752, %v753, %v754
      %v756 = vrot.slane %v436, 6
      %v757 = vsel %vm752, %v754, %v756
      %v758 = vrot.slane %v437, 6
      %v759 = vrot.slane %v438, 6
      %v760 = vsel %vm752, %v758, %v759
      %v761 = vrot.slane %v439, 6
      %v762 = vsel %vm752, %v759, %v761
      %v763 = vrot.slane %v440, 6
      %v764 = vrot.slane %v441, 6
      %v765 = vsel %vm752, %v763, %v764
      %v766 = vrot.slane %v442, 6
      %v767 = vsel %vm752, %v764, %v766
      %v768 = vrot.slane %v443, 6
      %v769 = vrot.slane %v444, 6
      %v770 = vsel %vm752, %v768, %v769
      %v771 = vrot.slane %v445, 6
      %v772 = vsel %vm752, %v769, %v771
      %v773 = vrot.slane %v446, 6
      %v774 = vrot.slane %v447, 6
      %v775 = vsel %vm752, %v773, %v774
      %v776 = vrot.slane %v448, 6
      %v777 = vsel %vm752, %v774, %v776
      %v778 = vrot.slane %v449, 6
      %v779 = vrot.slane %v450, 6
      %v780 = vsel %vm752, %v778, %v779
      %v781 = vrot.slane %v451, 6
      %v782 = vsel %vm752, %v779, %v781
      %v783 = vrot.slane %v452, 6
      %v784 = vrot.slane %v453, 6
      %v785 = vsel %vm752, %v783, %v784
      %v786 = vrot.slane %v454, 6
      %v787 = vsel %vm752, %v784, %v786
      %v788 = vrot.slane %v455, 6
      %v789 = vrot.slane %v456, 6
      %v790 = vsel %vm752, %v788, %v789
      %v791 = vrot.slane %v457, 6
      %v792 = vsel %vm752, %v789, %v791
      %v793 = vrot.slane %v458, 6
      %v794 = vrot.slane %v459, 6
      %v795 = vsel %vm752, %v793, %v794
      %v796 = vrot.slane %v460, 6
      %v797 = vsel %vm752, %v794, %v796
      %v798 = vrot.slane %v461, 6
      %v799 = vrot.slane %v462, 6
      %v800 = vsel %vm752, %v798, %v799
      %v801 = vrot.slane %v463, 6
      %v802 = vsel %vm752, %v799, %v801
      %v803 = vrot.slane %v464, 6
      %v804 = vrot.slane %v465, 6
      %v805 = vsel %vm752, %v803, %v804
      %v806 = vrot.slane %v466, 6
      %v807 = vsel %vm752, %v804, %v806
      %v808 = vrot.slane %v467, 6
      %v809 = vrot.slane %v468, 6
      %v810 = vsel %vm752, %v808, %v809
      %v811 = vrot.slane %v469, 6
      %v812 = vsel %vm752, %v809, %v811
      %v813 = vrot.slane %v470, 6
      %v814 = vrot.slane %v471, 6
      %v815 = vsel %vm752, %v813, %v814
      %v816 = vrot.slane %v472, 6
      %v817 = vsel %vm752, %v814, %v816
      %v818 = vrot.slane %v473, 6
      %v819 = vrot.slane %v474, 6
      %v820 = vsel %vm752, %v818, %v819
      %v821 = vrot.slane %v475, 6
      %v822 = vsel %vm752, %v819, %v821
      %v823 = vrot.slane %v476, 6
      %v824 = vrot.slane %v477, 6
      %v825 = vsel %vm752, %v823, %v824
      %v826 = vrot.slane %v478, 6
      %v827 = vsel %vm752, %v824, %v826
      %v828 = vrot.slane %v479, 6
      %v829 = vrot.slane %v480, 6
      %v830 = vsel %vm752, %v828, %v829
      %v831 = vrot.slane %v481, 6
      %v832 = vsel %vm752, %v829, %v831
      %v839 = vrot.slane %v482, 2
      %v840 = vrot.slane %v483, 2
      %v841 = vsel %vm558, %v839, %v840
      %v842 = vrot.slane %v484, 2
      %v843 = vsel %vm558, %v840, %v842
      %v844 = vrot.slane %v485, 2
      %v845 = vrot.slane %v486, 2
      %v846 = vsel %vm558, %v844, %v845
      %v847 = vrot.slane %v487, 2
      %v848 = vsel %vm558, %v845, %v847
      %v849 = vrot.slane %v482, 4
      %v850 = vrot.slane %v483, 4
      %v851 = vsel %vm671, %v849, %v850
      %v852 = vrot.slane %v484, 4
      %v853 = vsel %vm671, %v850, %v852
      %v854 = vrot.slane %v485, 4
      %v855 = vrot.slane %v486, 4
      %v856 = vsel %vm671, %v854, %v855
      %v857 = vrot.slane %v487, 4
      %v858 = vsel %vm671, %v855, %v857
      %v891 = vrot.slane %v482, 6
      %v892 = vrot.slane %v483, 6
      %v893 = vsel %vm752, %v891, %v892
      %v894 = vrot.slane %v484, 6
      %v895 = vsel %vm752, %v892, %v894
      %v896 = vrot.slane %v485, 6
      %v897 = vrot.slane %v486, 6
      %v898 = vsel %vm752, %v896, %v897
      %v899 = vrot.slane %v487, 6
      %v900 = vsel %vm752, %v897, %v899
      %v907 = vrot.slane %v488, 2
      %v908 = vrot.slane %v489, 2
      %v909 = vsel %vm558, %v907, %v908
      %v910 = vrot.slane %v490, 2
      %v911 = vsel %vm558, %v908, %v910
      %v912 = vrot.slane %v491, 2
      %v913 = vrot.slane %v492, 2
      %v914 = vsel %vm558, %v912, %v913
      %v915 = vrot.slane %v493, 2
      %v916 = vsel %vm558, %v913, %v915
      %v917 = vrot.slane %v488, 4
      %v918 = vrot.slane %v489, 4
      %v919 = vsel %vm671, %v917, %v918
      %v920 = vrot.slane %v490, 4
      %v921 = vsel %vm671, %v918, %v920
      %v922 = vrot.slane %v491, 4
      %v923 = vrot.slane %v492, 4
      %v924 = vsel %vm671, %v922, %v923
      %v925 = vrot.slane %v493, 4
      %v926 = vsel %vm671, %v923, %v925
      %v927 = vrot.slane %v488, 6
      %v928 = vrot.slane %v489, 6
      %v929 = vsel %vm752, %v927, %v928
      %v930 = vrot.slane %v490, 6
      %v931 = vsel %vm752, %v928, %v930
      %v932 = vrot.slane %v491, 6
      %v933 = vrot.slane %v492, 6
      %v934 = vsel %vm752, %v932, %v933
      %v935 = vrot.slane %v493, 6
      %v936 = vsel %vm752, %v933, %v935
      %937 = vrot.lane.b32.xlu0 %v674, 8
      %v938 = vpop.permute.xlu0 %937
      %939 = vrot.lane.b32.xlu0 %v676, 8
      %v940 = vpop.permute.xlu0 %939
      %941 = vrot.lane.b32.xlu0 %v679, 8
      %v942 = vpop.permute.xlu0 %941
      %943 = vrot.lane.b32.xlu0 %v681, 8
      %v944 = vpop.permute.xlu0 %943
      %945 = vrot.lane.b32.xlu0 %v684, 8
      %v946 = vpop.permute.xlu0 %945
      %947 = vrot.lane.b32.xlu0 %v686, 8
      %v948 = vpop.permute.xlu0 %947
      %949 = vrot.lane.b32.xlu0 %v689, 8
      %v950 = vpop.permute.xlu0 %949
      %951 = vrot.lane.b32.xlu0 %v691, 8
      %v952 = vpop.permute.xlu0 %951
      %953 = vrot.lane.b32.xlu0 %v694, 8
      %v954 = vpop.permute.xlu0 %953
      %955 = vrot.lane.b32.xlu0 %v696, 8
      %v956 = vpop.permute.xlu0 %955
      %957 = vrot.lane.b32.xlu0 %v699, 8
      %v958 = vpop.permute.xlu0 %957
      %959 = vrot.lane.b32.xlu0 %v701, 8
      %v960 = vpop.permute.xlu0 %959
      %961 = vrot.lane.b32.xlu0 %v704, 8
      %v962 = vpop.permute.xlu0 %961
      %963 = vrot.lane.b32.xlu0 %v706, 8
      %v964 = vpop.permute.xlu0 %963
      %965 = vrot.lane.b32.xlu0 %v709, 8
      %v966 = vpop.permute.xlu0 %965
      %967 = vrot.lane.b32.xlu0 %v711, 8
      %v968 = vpop.permute.xlu0 %967
      %969 = vrot.lane.b32.xlu0 %v714, 8
      %v970 = vpop.permute.xlu0 %969
      %971 = vrot.lane.b32.xlu0 %v716, 8
      %v972 = vpop.permute.xlu0 %971
      %973 = vrot.lane.b32.xlu0 %v719, 8
      %v974 = vpop.permute.xlu0 %973
      %975 = vrot.lane.b32.xlu0 %v721, 8
      %v976 = vpop.permute.xlu0 %975
      %977 = vrot.lane.b32.xlu0 %v724, 8
      %v978 = vpop.permute.xlu0 %977
      %979 = vrot.lane.b32.xlu0 %v726, 8
      %v980 = vpop.permute.xlu0 %979
      %981 = vrot.lane.b32.xlu0 %v729, 8
      %v982 = vpop.permute.xlu0 %981
      %983 = vrot.lane.b32.xlu0 %v731, 8
      %v984 = vpop.permute.xlu0 %983
      %985 = vrot.lane.b32.xlu0 %v734, 8
      %v986 = vpop.permute.xlu0 %985
      %987 = vrot.lane.b32.xlu0 %v736, 8
      %v988 = vpop.permute.xlu0 %987
      %989 = vrot.lane.b32.xlu0 %v739, 8
      %v990 = vpop.permute.xlu0 %989
      %991 = vrot.lane.b32.xlu0 %v741, 8
      %v992 = vpop.permute.xlu0 %991
      %993 = vrot.lane.b32.xlu0 %v744, 8
      %v994 = vpop.permute.xlu0 %993
      %995 = vrot.lane.b32.xlu0 %v746, 8
      %v996 = vpop.permute.xlu0 %995
      %997 = vrot.lane.b32.xlu0 %v749, 8
      %v998 = vpop.permute.xlu0 %997
      %999 = vrot.lane.b32.xlu0 %v751, 8
      %v1000 = vpop.permute.xlu0 %999
      %1033 = vrot.lane.b32.xlu0 %v755, 16
      %v1034 = vpop.permute.xlu0 %1033
      %1035 = vrot.lane.b32.xlu0 %v757, 16
      %v1036 = vpop.permute.xlu0 %1035
      %1037 = vrot.lane.b32.xlu0 %v760, 16
      %v1038 = vpop.permute.xlu0 %1037
      %1039 = vrot.lane.b32.xlu0 %v762, 16
      %v1040 = vpop.permute.xlu0 %1039
      %1041 = vrot.lane.b32.xlu0 %v765, 16
      %v1042 = vpop.permute.xlu0 %1041
      %1043 = vrot.lane.b32.xlu0 %v767, 16
      %v1044 = vpop.permute.xlu0 %1043
      %1045 = vrot.lane.b32.xlu0 %v770, 16
      %v1046 = vpop.permute.xlu0 %1045
      %1047 = vrot.lane.b32.xlu0 %v772, 16
      %v1048 = vpop.permute.xlu0 %1047
      %1049 = vrot.lane.b32.xlu0 %v775, 16
      %v1050 = vpop.permute.xlu0 %1049
      %1051 = vrot.lane.b32.xlu0 %v777, 16
      %v1052 = vpop.permute.xlu0 %1051
      %1053 = vrot.lane.b32.xlu0 %v780, 16
      %v1054 = vpop.permute.xlu0 %1053
      %1055 = vrot.lane.b32.xlu0 %v782, 16
      %v1056 = vpop.permute.xlu0 %1055
      %1057 = vrot.lane.b32.xlu0 %v785, 16
      %v1058 = vpop.permute.xlu0 %1057
      %1059 = vrot.lane.b32.xlu0 %v787, 16
      %v1060 = vpop.permute.xlu0 %1059
      %1061 = vrot.lane.b32.xlu0 %v790, 16
      %v1062 = vpop.permute.xlu0 %1061
      %1063 = vrot.lane.b32.xlu0 %v792, 16
      %v1064 = vpop.permute.xlu0 %1063
      %1065 = vrot.lane.b32.xlu0 %v795, 16
      %v1066 = vpop.permute.xlu0 %1065
      %1067 = vrot.lane.b32.xlu0 %v797, 16
      %v1068 = vpop.permute.xlu0 %1067
      %1069 = vrot.lane.b32.xlu0 %v800, 16
      %v1070 = vpop.permute.xlu0 %1069
      %1071 = vrot.lane.b32.xlu0 %v802, 16
      %v1072 = vpop.permute.xlu0 %1071
      %1073 = vrot.lane.b32.xlu0 %v805, 16
      %v1074 = vpop.permute.xlu0 %1073
      %1075 = vrot.lane.b32.xlu0 %v807, 16
      %v1076 = vpop.permute.xlu0 %1075
      %1077 = vrot.lane.b32.xlu0 %v810, 16
      %v1078 = vpop.permute.xlu0 %1077
      %1079 = vrot.lane.b32.xlu0 %v812, 16
      %v1080 = vpop.permute.xlu0 %1079
      %1081 = vrot.lane.b32.xlu0 %v815, 16
      %v1082 = vpop.permute.xlu0 %1081
      %1083 = vrot.lane.b32.xlu0 %v817, 16
      %v1084 = vpop.permute.xlu0 %1083
      %1085 = vrot.lane.b32.xlu0 %v820, 16
      %v1086 = vpop.permute.xlu0 %1085
      %1087 = vrot.lane.b32.xlu0 %v822, 16
      %v1088 = vpop.permute.xlu0 %1087
      %1089 = vrot.lane.b32.xlu0 %v825, 16
      %v1090 = vpop.permute.xlu0 %1089
      %1091 = vrot.lane.b32.xlu0 %v827, 16
      %v1092 = vpop.permute.xlu0 %1091
      %1093 = vrot.lane.b32.xlu0 %v830, 16
      %v1094 = vpop.permute.xlu0 %1093
      %1095 = vrot.lane.b32.xlu0 %v832, 16
      %v1096 = vpop.permute.xlu0 %1095
      %1129 = vrot.lane.b32.xlu0 %v571, 24
      %v1130 = vpop.permute.xlu0 %1129
      %1131 = vrot.lane.b32.xlu0 %v573, 24
      %v1132 = vpop.permute.xlu0 %1131
      %1133 = vrot.lane.b32.xlu0 %v576, 24
      %v1134 = vpop.permute.xlu0 %1133
      %1135 = vrot.lane.b32.xlu0 %v578, 24
      %v1136 = vpop.permute.xlu0 %1135
      %1137 = vrot.lane.b32.xlu0 %v581, 24
      %v1138 = vpop.permute.xlu0 %1137
      %1139 = vrot.lane.b32.xlu0 %v583, 24
      %v1140 = vpop.permute.xlu0 %1139
      %1141 = vrot.lane.b32.xlu0 %v586, 24
      %v1142 = vpop.permute.xlu0 %1141
      %1143 = vrot.lane.b32.xlu0 %v588, 24
      %v1144 = vpop.permute.xlu0 %1143
      %1145 = vrot.lane.b32.xlu0 %v591, 24
      %v1146 = vpop.permute.xlu0 %1145
      %1147 = vrot.lane.b32.xlu0 %v593, 24
      %v1148 = vpop.permute.xlu0 %1147
      %1149 = vrot.lane.b32.xlu0 %v596, 24
      %v1150 = vpop.permute.xlu0 %1149
      %1151 = vrot.lane.b32.xlu0 %v598, 24
      %v1152 = vpop.permute.xlu0 %1151
      %1153 = vrot.lane.b32.xlu0 %v601, 24
      %v1154 = vpop.permute.xlu0 %1153
      %1155 = vrot.lane.b32.xlu0 %v603, 24
      %v1156 = vpop.permute.xlu0 %1155
      %1157 = vrot.lane.b32.xlu0 %v606, 24
      %v1158 = vpop.permute.xlu0 %1157
      %1159 = vrot.lane.b32.xlu0 %v608, 24
      %v1160 = vpop.permute.xlu0 %1159
      %1161 = vrot.lane.b32.xlu0 %v611, 24
      %v1162 = vpop.permute.xlu0 %1161
      %1163 = vrot.lane.b32.xlu0 %v613, 24
      %v1164 = vpop.permute.xlu0 %1163
      %1165 = vrot.lane.b32.xlu0 %v616, 24
      %v1166 = vpop.permute.xlu0 %1165
      %1167 = vrot.lane.b32.xlu0 %v618, 24
      %v1168 = vpop.permute.xlu0 %1167
      %1169 = vrot.lane.b32.xlu0 %v621, 24
      %v1170 = vpop.permute.xlu0 %1169
      %1171 = vrot.lane.b32.xlu0 %v623, 24
      %v1172 = vpop.permute.xlu0 %1171
      %1173 = vrot.lane.b32.xlu0 %v626, 24
      %v1174 = vpop.permute.xlu0 %1173
      %1175 = vrot.lane.b32.xlu0 %v628, 24
      %v1176 = vpop.permute.xlu0 %1175
      %1177 = vrot.lane.b32.xlu0 %v631, 24
      %v1178 = vpop.permute.xlu0 %1177
      %1179 = vrot.lane.b32.xlu0 %v633, 24
      %v1180 = vpop.permute.xlu0 %1179
      %1181 = vrot.lane.b32.xlu0 %v636, 24
      %v1182 = vpop.permute.xlu0 %1181
      %1183 = vrot.lane.b32.xlu0 %v638, 24
      %v1184 = vpop.permute.xlu0 %1183
      %1185 = vrot.lane.b32.xlu0 %v841, 24
      %v1186 = vpop.permute.xlu0 %1185
      %1187 = vrot.lane.b32.xlu0 %v843, 24
      %v1188 = vpop.permute.xlu0 %1187
      %1189 = vrot.lane.b32.xlu0 %v846, 24
      %v1190 = vpop.permute.xlu0 %1189
      %1191 = vrot.lane.b32.xlu0 %v848, 24
      %v1192 = vpop.permute.xlu0 %1191
      %1225 = vrot.lane.b32.xlu0 %v684, 32
      %v1226 = vpop.permute.xlu0 %1225
      %1227 = vrot.lane.b32.xlu0 %v686, 32
      %v1228 = vpop.permute.xlu0 %1227
      %1229 = vrot.lane.b32.xlu0 %v689, 32
      %v1230 = vpop.permute.xlu0 %1229
      %1231 = vrot.lane.b32.xlu0 %v691, 32
      %v1232 = vpop.permute.xlu0 %1231
      %1233 = vrot.lane.b32.xlu0 %v694, 32
      %v1234 = vpop.permute.xlu0 %1233
      %1235 = vrot.lane.b32.xlu0 %v696, 32
      %v1236 = vpop.permute.xlu0 %1235
      %1237 = vrot.lane.b32.xlu0 %v699, 32
      %v1238 = vpop.permute.xlu0 %1237
      %1239 = vrot.lane.b32.xlu0 %v701, 32
      %v1240 = vpop.permute.xlu0 %1239
      %1241 = vrot.lane.b32.xlu0 %v704, 32
      %v1242 = vpop.permute.xlu0 %1241
      %1243 = vrot.lane.b32.xlu0 %v706, 32
      %v1244 = vpop.permute.xlu0 %1243
      %1245 = vrot.lane.b32.xlu0 %v709, 32
      %v1246 = vpop.permute.xlu0 %1245
      %1247 = vrot.lane.b32.xlu0 %v711, 32
      %v1248 = vpop.permute.xlu0 %1247
      %1249 = vrot.lane.b32.xlu0 %v714, 32
      %v1250 = vpop.permute.xlu0 %1249
      %1251 = vrot.lane.b32.xlu0 %v716, 32
      %v1252 = vpop.permute.xlu0 %1251
      %1253 = vrot.lane.b32.xlu0 %v719, 32
      %v1254 = vpop.permute.xlu0 %1253
      %1255 = vrot.lane.b32.xlu0 %v721, 32
      %v1256 = vpop.permute.xlu0 %1255
      %1257 = vrot.lane.b32.xlu0 %v724, 32
      %v1258 = vpop.permute.xlu0 %1257
      %1259 = vrot.lane.b32.xlu0 %v726, 32
      %v1260 = vpop.permute.xlu0 %1259
      %1261 = vrot.lane.b32.xlu0 %v729, 32
      %v1262 = vpop.permute.xlu0 %1261
      %1263 = vrot.lane.b32.xlu0 %v731, 32
      %v1264 = vpop.permute.xlu0 %1263
      %1265 = vrot.lane.b32.xlu0 %v734, 32
      %v1266 = vpop.permute.xlu0 %1265
      %1267 = vrot.lane.b32.xlu0 %v736, 32
      %v1268 = vpop.permute.xlu0 %1267
      %1269 = vrot.lane.b32.xlu0 %v739, 32
      %v1270 = vpop.permute.xlu0 %1269
      %1271 = vrot.lane.b32.xlu0 %v741, 32
      %v1272 = vpop.permute.xlu0 %1271
      %1273 = vrot.lane.b32.xlu0 %v744, 32
      %v1274 = vpop.permute.xlu0 %1273
      %1275 = vrot.lane.b32.xlu0 %v746, 32
      %v1276 = vpop.permute.xlu0 %1275
      %1277 = vrot.lane.b32.xlu0 %v749, 32
      %v1278 = vpop.permute.xlu0 %1277
      %1279 = vrot.lane.b32.xlu0 %v751, 32
      %v1280 = vpop.permute.xlu0 %1279
      %1281 = vrot.lane.b32.xlu0 %v851, 32
      %v1282 = vpop.permute.xlu0 %1281
      %1283 = vrot.lane.b32.xlu0 %v853, 32
      %v1284 = vpop.permute.xlu0 %1283
      %1285 = vrot.lane.b32.xlu0 %v856, 32
      %v1286 = vpop.permute.xlu0 %1285
      %1287 = vrot.lane.b32.xlu0 %v858, 32
      %v1288 = vpop.permute.xlu0 %1287
      %1321 = vrot.lane.b32.xlu0 %v765, 40
      %v1322 = vpop.permute.xlu0 %1321
      %1323 = vrot.lane.b32.xlu0 %v767, 40
      %v1324 = vpop.permute.xlu0 %1323
      %1325 = vrot.lane.b32.xlu0 %v770, 40
      %v1326 = vpop.permute.xlu0 %1325
      %1327 = vrot.lane.b32.xlu0 %v772, 40
      %v1328 = vpop.permute.xlu0 %1327
      %1329 = vrot.lane.b32.xlu0 %v775, 40
      %v1330 = vpop.permute.xlu0 %1329
      %1331 = vrot.lane.b32.xlu0 %v777, 40
      %v1332 = vpop.permute.xlu0 %1331
      %1333 = vrot.lane.b32.xlu0 %v780, 40
      %v1334 = vpop.permute.xlu0 %1333
      %1335 = vrot.lane.b32.xlu0 %v782, 40
      %v1336 = vpop.permute.xlu0 %1335
      %1337 = vrot.lane.b32.xlu0 %v785, 40
      %v1338 = vpop.permute.xlu0 %1337
      %1339 = vrot.lane.b32.xlu0 %v787, 40
      %v1340 = vpop.permute.xlu0 %1339
      %1341 = vrot.lane.b32.xlu0 %v790, 40
      %v1342 = vpop.permute.xlu0 %1341
      %1343 = vrot.lane.b32.xlu0 %v792, 40
      %v1344 = vpop.permute.xlu0 %1343
      %1345 = vrot.lane.b32.xlu0 %v795, 40
      %v1346 = vpop.permute.xlu0 %1345
      %1347 = vrot.lane.b32.xlu0 %v797, 40
      %v1348 = vpop.permute.xlu0 %1347
      %1349 = vrot.lane.b32.xlu0 %v800, 40
      %v1350 = vpop.permute.xlu0 %1349
      %1351 = vrot.lane.b32.xlu0 %v802, 40
      %v1352 = vpop.permute.xlu0 %1351
      %1353 = vrot.lane.b32.xlu0 %v805, 40
      %v1354 = vpop.permute.xlu0 %1353
      %1355 = vrot.lane.b32.xlu0 %v807, 40
      %v1356 = vpop.permute.xlu0 %1355
      %1357 = vrot.lane.b32.xlu0 %v810, 40
      %v1358 = vpop.permute.xlu0 %1357
      %1359 = vrot.lane.b32.xlu0 %v812, 40
      %v1360 = vpop.permute.xlu0 %1359
      %1361 = vrot.lane.b32.xlu0 %v815, 40
      %v1362 = vpop.permute.xlu0 %1361
      %1363 = vrot.lane.b32.xlu0 %v817, 40
      %v1364 = vpop.permute.xlu0 %1363
      %1365 = vrot.lane.b32.xlu0 %v820, 40
      %v1366 = vpop.permute.xlu0 %1365
      %1367 = vrot.lane.b32.xlu0 %v822, 40
      %v1368 = vpop.permute.xlu0 %1367
      %1369 = vrot.lane.b32.xlu0 %v825, 40
      %v1370 = vpop.permute.xlu0 %1369
      %1371 = vrot.lane.b32.xlu0 %v827, 40
      %v1372 = vpop.permute.xlu0 %1371
      %1373 = vrot.lane.b32.xlu0 %v830, 40
      %v1374 = vpop.permute.xlu0 %1373
      %1375 = vrot.lane.b32.xlu0 %v832, 40
      %v1376 = vpop.permute.xlu0 %1375
      %1377 = vrot.lane.b32.xlu0 %v893, 40
      %v1378 = vpop.permute.xlu0 %1377
      %1379 = vrot.lane.b32.xlu0 %v895, 40
      %v1380 = vpop.permute.xlu0 %1379
      %1381 = vrot.lane.b32.xlu0 %v898, 40
      %v1382 = vpop.permute.xlu0 %1381
      %1383 = vrot.lane.b32.xlu0 %v900, 40
      %v1384 = vpop.permute.xlu0 %1383
      %1417 = vrot.lane.b32.xlu0 %v581, 48
      %v1418 = vpop.permute.xlu0 %1417
      %1419 = vrot.lane.b32.xlu0 %v583, 48
      %v1420 = vpop.permute.xlu0 %1419
      %1421 = vrot.lane.b32.xlu0 %v586, 48
      %v1422 = vpop.permute.xlu0 %1421
      %1423 = vrot.lane.b32.xlu0 %v588, 48
      %v1424 = vpop.permute.xlu0 %1423
      %1425 = vrot.lane.b32.xlu0 %v591, 48
      %v1426 = vpop.permute.xlu0 %1425
      %1427 = vrot.lane.b32.xlu0 %v593, 48
      %v1428 = vpop.permute.xlu0 %1427
      %1429 = vrot.lane.b32.xlu0 %v596, 48
      %v1430 = vpop.permute.xlu0 %1429
      %1431 = vrot.lane.b32.xlu0 %v598, 48
      %v1432 = vpop.permute.xlu0 %1431
      %1433 = vrot.lane.b32.xlu0 %v601, 48
      %v1434 = vpop.permute.xlu0 %1433
      %1435 = vrot.lane.b32.xlu0 %v603, 48
      %v1436 = vpop.permute.xlu0 %1435
      %1437 = vrot.lane.b32.xlu0 %v606, 48
      %v1438 = vpop.permute.xlu0 %1437
      %1439 = vrot.lane.b32.xlu0 %v608, 48
      %v1440 = vpop.permute.xlu0 %1439
      %1441 = vrot.lane.b32.xlu0 %v611, 48
      %v1442 = vpop.permute.xlu0 %1441
      %1443 = vrot.lane.b32.xlu0 %v613, 48
      %v1444 = vpop.permute.xlu0 %1443
      %1445 = vrot.lane.b32.xlu0 %v616, 48
      %v1446 = vpop.permute.xlu0 %1445
      %1447 = vrot.lane.b32.xlu0 %v618, 48
      %v1448 = vpop.permute.xlu0 %1447
      %1449 = vrot.lane.b32.xlu0 %v621, 48
      %v1450 = vpop.permute.xlu0 %1449
      %1451 = vrot.lane.b32.xlu0 %v623, 48
      %v1452 = vpop.permute.xlu0 %1451
      %1453 = vrot.lane.b32.xlu0 %v626, 48
      %v1454 = vpop.permute.xlu0 %1453
      %1455 = vrot.lane.b32.xlu0 %v628, 48
      %v1456 = vpop.permute.xlu0 %1455
      %1457 = vrot.lane.b32.xlu0 %v631, 48
      %v1458 = vpop.permute.xlu0 %1457
      %1459 = vrot.lane.b32.xlu0 %v633, 48
      %v1460 = vpop.permute.xlu0 %1459
      %1461 = vrot.lane.b32.xlu0 %v636, 48
      %v1462 = vpop.permute.xlu0 %1461
      %1463 = vrot.lane.b32.xlu0 %v638, 48
      %v1464 = vpop.permute.xlu0 %1463
      %1465 = vrot.lane.b32.xlu0 %v841, 48
      %v1466 = vpop.permute.xlu0 %1465
      %1467 = vrot.lane.b32.xlu0 %v843, 48
      %v1468 = vpop.permute.xlu0 %1467
      %1469 = vrot.lane.b32.xlu0 %v846, 48
      %v1470 = vpop.permute.xlu0 %1469
      %1471 = vrot.lane.b32.xlu0 %v848, 48
      %v1472 = vpop.permute.xlu0 %1471
      %1473 = vrot.lane.b32.xlu0 %v909, 48
      %v1474 = vpop.permute.xlu0 %1473
      %1475 = vrot.lane.b32.xlu0 %v911, 48
      %v1476 = vpop.permute.xlu0 %1475
      %1477 = vrot.lane.b32.xlu0 %v914, 48
      %v1478 = vpop.permute.xlu0 %1477
      %1479 = vrot.lane.b32.xlu0 %v916, 48
      %v1480 = vpop.permute.xlu0 %1479
      %1513 = vrot.lane.b32.xlu0 %v694, 56
      %v1514 = vpop.permute.xlu0 %1513
      %1515 = vrot.lane.b32.xlu0 %v696, 56
      %v1516 = vpop.permute.xlu0 %1515
      %1517 = vrot.lane.b32.xlu0 %v699, 56
      %v1518 = vpop.permute.xlu0 %1517
      %1519 = vrot.lane.b32.xlu0 %v701, 56
      %v1520 = vpop.permute.xlu0 %1519
      %1521 = vrot.lane.b32.xlu0 %v704, 56
      %v1522 = vpop.permute.xlu0 %1521
      %1523 = vrot.lane.b32.xlu0 %v706, 56
      %v1524 = vpop.permute.xlu0 %1523
      %1525 = vrot.lane.b32.xlu0 %v709, 56
      %v1526 = vpop.permute.xlu0 %1525
      %1527 = vrot.lane.b32.xlu0 %v711, 56
      %v1528 = vpop.permute.xlu0 %1527
      %1529 = vrot.lane.b32.xlu0 %v714, 56
      %v1530 = vpop.permute.xlu0 %1529
      %1531 = vrot.lane.b32.xlu0 %v716, 56
      %v1532 = vpop.permute.xlu0 %1531
      %1533 = vrot.lane.b32.xlu0 %v719, 56
      %v1534 = vpop.permute.xlu0 %1533
      %1535 = vrot.lane.b32.xlu0 %v721, 56
      %v1536 = vpop.permute.xlu0 %1535
      %1537 = vrot.lane.b32.xlu0 %v724, 56
      %v1538 = vpop.permute.xlu0 %1537
      %1539 = vrot.lane.b32.xlu0 %v726, 56
      %v1540 = vpop.permute.xlu0 %1539
      %1541 = vrot.lane.b32.xlu0 %v729, 56
      %v1542 = vpop.permute.xlu0 %1541
      %1543 = vrot.lane.b32.xlu0 %v731, 56
      %v1544 = vpop.permute.xlu0 %1543
      %1545 = vrot.lane.b32.xlu0 %v734, 56
      %v1546 = vpop.permute.xlu0 %1545
      %1547 = vrot.lane.b32.xlu0 %v736, 56
      %v1548 = vpop.permute.xlu0 %1547
      %1549 = vrot.lane.b32.xlu0 %v739, 56
      %v1550 = vpop.permute.xlu0 %1549
      %1551 = vrot.lane.b32.xlu0 %v741, 56
      %v1552 = vpop.permute.xlu0 %1551
      %1553 = vrot.lane.b32.xlu0 %v744, 56
      %v1554 = vpop.permute.xlu0 %1553
      %1555 = vrot.lane.b32.xlu0 %v746, 56
      %v1556 = vpop.permute.xlu0 %1555
      %1557 = vrot.lane.b32.xlu0 %v749, 56
      %v1558 = vpop.permute.xlu0 %1557
      %1559 = vrot.lane.b32.xlu0 %v751, 56
      %v1560 = vpop.permute.xlu0 %1559
      %1561 = vrot.lane.b32.xlu0 %v851, 56
      %v1562 = vpop.permute.xlu0 %1561
      %1563 = vrot.lane.b32.xlu0 %v853, 56
      %v1564 = vpop.permute.xlu0 %1563
      %1565 = vrot.lane.b32.xlu0 %v856, 56
      %v1566 = vpop.permute.xlu0 %1565
      %1567 = vrot.lane.b32.xlu0 %v858, 56
      %v1568 = vpop.permute.xlu0 %1567
      %1569 = vrot.lane.b32.xlu0 %v919, 56
      %v1570 = vpop.permute.xlu0 %1569
      %1571 = vrot.lane.b32.xlu0 %v921, 56
      %v1572 = vpop.permute.xlu0 %1571
      %1573 = vrot.lane.b32.xlu0 %v924, 56
      %v1574 = vpop.permute.xlu0 %1573
      %1575 = vrot.lane.b32.xlu0 %v926, 56
      %v1576 = vpop.permute.xlu0 %1575
      %1609 = vrot.lane.b32.xlu0 %v775, 64
      %v1610 = vpop.permute.xlu0 %1609
      %1611 = vrot.lane.b32.xlu0 %v777, 64
      %v1612 = vpop.permute.xlu0 %1611
      %1613 = vrot.lane.b32.xlu0 %v780, 64
      %v1614 = vpop.permute.xlu0 %1613
      %1615 = vrot.lane.b32.xlu0 %v782, 64
      %v1616 = vpop.permute.xlu0 %1615
      %1617 = vrot.lane.b32.xlu0 %v785, 64
      %v1618 = vpop.permute.xlu0 %1617
      %1619 = vrot.lane.b32.xlu0 %v787, 64
      %v1620 = vpop.permute.xlu0 %1619
      %1621 = vrot.lane.b32.xlu0 %v790, 64
      %v1622 = vpop.permute.xlu0 %1621
      %1623 = vrot.lane.b32.xlu0 %v792, 64
      %v1624 = vpop.permute.xlu0 %1623
      %1625 = vrot.lane.b32.xlu0 %v795, 64
      %v1626 = vpop.permute.xlu0 %1625
      %1627 = vrot.lane.b32.xlu0 %v797, 64
      %v1628 = vpop.permute.xlu0 %1627
      %1629 = vrot.lane.b32.xlu0 %v800, 64
      %v1630 = vpop.permute.xlu0 %1629
      %1631 = vrot.lane.b32.xlu0 %v802, 64
      %v1632 = vpop.permute.xlu0 %1631
      %1633 = vrot.lane.b32.xlu0 %v805, 64
      %v1634 = vpop.permute.xlu0 %1633
      %1635 = vrot.lane.b32.xlu0 %v807, 64
      %v1636 = vpop.permute.xlu0 %1635
      %1637 = vrot.lane.b32.xlu0 %v810, 64
      %v1638 = vpop.permute.xlu0 %1637
      %1639 = vrot.lane.b32.xlu0 %v812, 64
      %v1640 = vpop.permute.xlu0 %1639
      %1641 = vrot.lane.b32.xlu0 %v815, 64
      %v1642 = vpop.permute.xlu0 %1641
      %1643 = vrot.lane.b32.xlu0 %v817, 64
      %v1644 = vpop.permute.xlu0 %1643
      %1645 = vrot.lane.b32.xlu0 %v820, 64
      %v1646 = vpop.permute.xlu0 %1645
      %1647 = vrot.lane.b32.xlu0 %v822, 64
      %v1648 = vpop.permute.xlu0 %1647
      %1649 = vrot.lane.b32.xlu0 %v825, 64
      %v1650 = vpop.permute.xlu0 %1649
      %1651 = vrot.lane.b32.xlu0 %v827, 64
      %v1652 = vpop.permute.xlu0 %1651
      %1653 = vrot.lane.b32.xlu0 %v830, 64
      %v1654 = vpop.permute.xlu0 %1653
      %1655 = vrot.lane.b32.xlu0 %v832, 64
      %v1656 = vpop.permute.xlu0 %1655
      %1657 = vrot.lane.b32.xlu0 %v893, 64
      %v1658 = vpop.permute.xlu0 %1657
      %1659 = vrot.lane.b32.xlu0 %v895, 64
      %v1660 = vpop.permute.xlu0 %1659
      %1661 = vrot.lane.b32.xlu0 %v898, 64
      %v1662 = vpop.permute.xlu0 %1661
      %1663 = vrot.lane.b32.xlu0 %v900, 64
      %v1664 = vpop.permute.xlu0 %1663
      %1665 = vrot.lane.b32.xlu0 %v929, 64
      %v1666 = vpop.permute.xlu0 %1665
      %1667 = vrot.lane.b32.xlu0 %v931, 64
      %v1668 = vpop.permute.xlu0 %1667
      %1669 = vrot.lane.b32.xlu0 %v934, 64
      %v1670 = vpop.permute.xlu0 %1669
      %1671 = vrot.lane.b32.xlu0 %v936, 64
      %v1672 = vpop.permute.xlu0 %1671
      %vm1705 = vcmask 64512
      %v1706 = vsel %vm1705, %v561, %v938
      %v1707 = vsel %vm1705, %v563, %v940
      %v1708 = vsel %vm1705, %v566, %v942
      %v1709 = vsel %vm1705, %v568, %v944
      %v1710 = vsel %vm1705, %v571, %v946
      %v1711 = vsel %vm1705, %v573, %v948
      %v1712 = vsel %vm1705, %v576, %v950
      %v1713 = vsel %vm1705, %v578, %v952
      %v1714 = vsel %vm1705, %v581, %v954
      %v1715 = vsel %vm1705, %v583, %v956
      %v1716 = vsel %vm1705, %v586, %v958
      %v1717 = vsel %vm1705, %v588, %v960
      %v1718 = vsel %vm1705, %v591, %v962
      %v1719 = vsel %vm1705, %v593, %v964
      %v1720 = vsel %vm1705, %v596, %v966
      %v1721 = vsel %vm1705, %v598, %v968
      %v1722 = vsel %vm1705, %v601, %v970
      %v1723 = vsel %vm1705, %v603, %v972
      %v1724 = vsel %vm1705, %v606, %v974
      %v1725 = vsel %vm1705, %v608, %v976
      %v1726 = vsel %vm1705, %v611, %v978
      %v1727 = vsel %vm1705, %v613, %v980
      %v1728 = vsel %vm1705, %v616, %v982
      %v1729 = vsel %vm1705, %v618, %v984
      %v1730 = vsel %vm1705, %v621, %v986
      %v1731 = vsel %vm1705, %v623, %v988
      %v1732 = vsel %vm1705, %v626, %v990
      %v1733 = vsel %vm1705, %v628, %v992
      %v1734 = vsel %vm1705, %v631, %v994
      %v1735 = vsel %vm1705, %v633, %v996
      %v1736 = vsel %vm1705, %v636, %v998
      %v1737 = vsel %vm1705, %v638, %v1000
      %vm1738 = vcmask 130048
      %v1739 = vsel %vm1738, %v1706, %v1034
      %v1740 = vsel %vm1738, %v1707, %v1036
      %v1741 = vsel %vm1738, %v1708, %v1038
      %v1742 = vsel %vm1738, %v1709, %v1040
      %v1743 = vsel %vm1738, %v1710, %v1042
      %v1744 = vsel %vm1738, %v1711, %v1044
      %v1745 = vsel %vm1738, %v1712, %v1046
      %v1746 = vsel %vm1738, %v1713, %v1048
      %v1747 = vsel %vm1738, %v1714, %v1050
      %v1748 = vsel %vm1738, %v1715, %v1052
      %v1749 = vsel %vm1738, %v1716, %v1054
      %v1750 = vsel %vm1738, %v1717, %v1056
      %v1751 = vsel %vm1738, %v1718, %v1058
      %v1752 = vsel %vm1738, %v1719, %v1060
      %v1753 = vsel %vm1738, %v1720, %v1062
      %v1754 = vsel %vm1738, %v1721, %v1064
      %v1755 = vsel %vm1738, %v1722, %v1066
      %v1756 = vsel %vm1738, %v1723, %v1068
      %v1757 = vsel %vm1738, %v1724, %v1070
      %v1758 = vsel %vm1738, %v1725, %v1072
      %v1759 = vsel %vm1738, %v1726, %v1074
      %v1760 = vsel %vm1738, %v1727, %v1076
      %v1761 = vsel %vm1738, %v1728, %v1078
      %v1762 = vsel %vm1738, %v1729, %v1080
      %v1763 = vsel %vm1738, %v1730, %v1082
      %v1764 = vsel %vm1738, %v1731, %v1084
      %v1765 = vsel %vm1738, %v1732, %v1086
      %v1766 = vsel %vm1738, %v1733, %v1088
      %v1767 = vsel %vm1738, %v1734, %v1090
      %v1768 = vsel %vm1738, %v1735, %v1092
      %v1769 = vsel %vm1738, %v1736, %v1094
      %v1770 = vsel %vm1738, %v1737, %v1096
      %vm1771 = vcmask 195584
      %v1772 = vsel %vm1771, %v1739, %v1130
      %v1773 = vsel %vm1771, %v1740, %v1132
      %v1774 = vsel %vm1771, %v1741, %v1134
      %v1775 = vsel %vm1771, %v1742, %v1136
      %v1776 = vsel %vm1771, %v1743, %v1138
      %v1777 = vsel %vm1771, %v1744, %v1140
      %v1778 = vsel %vm1771, %v1745, %v1142
      %v1779 = vsel %vm1771, %v1746, %v1144
      %v1780 = vsel %vm1771, %v1747, %v1146
      %v1781 = vsel %vm1771, %v1748, %v1148
      %v1782 = vsel %vm1771, %v1749, %v1150
      %v1783 = vsel %vm1771, %v1750, %v1152
      %v1784 = vsel %vm1771, %v1751, %v1154
      %v1785 = vsel %vm1771, %v1752, %v1156
      %v1786 = vsel %vm1771, %v1753, %v1158
      %v1787 = vsel %vm1771, %v1754, %v1160
      %v1788 = vsel %vm1771, %v1755, %v1162
      %v1789 = vsel %vm1771, %v1756, %v1164
      %v1790 = vsel %vm1771, %v1757, %v1166
      %v1791 = vsel %vm1771, %v1758, %v1168
      %v1792 = vsel %vm1771, %v1759, %v1170
      %v1793 = vsel %vm1771, %v1760, %v1172
      %v1794 = vsel %vm1771, %v1761, %v1174
      %v1795 = vsel %vm1771, %v1762, %v1176
      %v1796 = vsel %vm1771, %v1763, %v1178
      %v1797 = vsel %vm1771, %v1764, %v1180
      %v1798 = vsel %vm1771, %v1765, %v1182
      %v1799 = vsel %vm1771, %v1766, %v1184
      %v1800 = vsel %vm1771, %v1767, %v1186
      %v1801 = vsel %vm1771, %v1768, %v1188
      %v1802 = vsel %vm1771, %v1769, %v1190
      %v1803 = vsel %vm1771, %v1770, %v1192
      %vm1804 = vcmask 261120
      %v1805 = vsel %vm1804, %v1772, %v1226
      %v1806 = vsel %vm1804, %v1773, %v1228
      %v1807 = vsel %vm1804, %v1774, %v1230
      %v1808 = vsel %vm1804, %v1775, %v1232
      %v1809 = vsel %vm1804, %v1776, %v1234
      %v1810 = vsel %vm1804, %v1777, %v1236
      %v1811 = vsel %vm1804, %v1778, %v1238
      %v1812 = vsel %vm1804, %v1779, %v1240
      %v1813 = vsel %vm1804, %v1780, %v1242
      %v1814 = vsel %vm1804, %v1781, %v1244
      %v1815 = vsel %vm1804, %v1782, %v1246
      %v1816 = vsel %vm1804, %v1783, %v1248
      %v1817 = vsel %vm1804, %v1784, %v1250
      %v1818 = vsel %vm1804, %v1785, %v1252
      %v1819 = vsel %vm1804, %v1786, %v1254
      %v1820 = vsel %vm1804, %v1787, %v1256
      %v1821 = vsel %vm1804, %v1788, %v1258
      %v1822 = vsel %vm1804, %v1789, %v1260
      %v1823 = vsel %vm1804, %v1790, %v1262
      %v1824 = vsel %vm1804, %v1791, %v1264
      %v1825 = vsel %vm1804, %v1792, %v1266
      %v1826 = vsel %vm1804, %v1793, %v1268
      %v1827 = vsel %vm1804, %v1794, %v1270
      %v1828 = vsel %vm1804, %v1795, %v1272
      %v1829 = vsel %vm1804, %v1796, %v1274
      %v1830 = vsel %vm1804, %v1797, %v1276
      %v1831 = vsel %vm1804, %v1798, %v1278
      %v1832 = vsel %vm1804, %v1799, %v1280
      %v1833 = vsel %vm1804, %v1800, %v1282
      %v1834 = vsel %vm1804, %v1801, %v1284
      %v1835 = vsel %vm1804, %v1802, %v1286
      %v1836 = vsel %vm1804, %v1803, %v1288
      %vm1837 = vcmask 326656
      %v1838 = vsel %vm1837, %v1805, %v1322
      %v1839 = vsel %vm1837, %v1806, %v1324
      %v1840 = vsel %vm1837, %v1807, %v1326
      %v1841 = vsel %vm1837, %v1808, %v1328
      %v1842 = vsel %vm1837, %v1809, %v1330
      %v1843 = vsel %vm1837, %v1810, %v1332
      %v1844 = vsel %vm1837, %v1811, %v1334
      %v1845 = vsel %vm1837, %v1812, %v1336
      %v1846 = vsel %vm1837, %v1813, %v1338
      %v1847 = vsel %vm1837, %v1814, %v1340
      %v1848 = vsel %vm1837, %v1815, %v1342
      %v1849 = vsel %vm1837, %v1816, %v1344
      %v1850 = vsel %vm1837, %v1817, %v1346
      %v1851 = vsel %vm1837, %v1818, %v1348
      %v1852 = vsel %vm1837, %v1819, %v1350
      %v1853 = vsel %vm1837, %v1820, %v1352
      %v1854 = vsel %vm1837, %v1821, %v1354
      %v1855 = vsel %vm1837, %v1822, %v1356
      %v1856 = vsel %vm1837, %v1823, %v1358
      %v1857 = vsel %vm1837, %v1824, %v1360
      %v1858 = vsel %vm1837, %v1825, %v1362
      %v1859 = vsel %vm1837, %v1826, %v1364
      %v1860 = vsel %vm1837, %v1827, %v1366
      %v1861 = vsel %vm1837, %v1828, %v1368
      %v1862 = vsel %vm1837, %v1829, %v1370
      %v1863 = vsel %vm1837, %v1830, %v1372
      %v1864 = vsel %vm1837, %v1831, %v1374
      %v1865 = vsel %vm1837, %v1832, %v1376
      %v1866 = vsel %vm1837, %v1833, %v1378
      %v1867 = vsel %vm1837, %v1834, %v1380
      %v1868 = vsel %vm1837, %v1835, %v1382
      %v1869 = vsel %vm1837, %v1836, %v1384
      %vm1870 = vcmask 392192
      %v1871 = vsel %vm1870, %v1838, %v1418
      %v1872 = vsel %vm1870, %v1839, %v1420
      %v1873 = vsel %vm1870, %v1840, %v1422
      %v1874 = vsel %vm1870, %v1841, %v1424
      %v1875 = vsel %vm1870, %v1842, %v1426
      %v1876 = vsel %vm1870, %v1843, %v1428
      %v1877 = vsel %vm1870, %v1844, %v1430
      %v1878 = vsel %vm1870, %v1845, %v1432
      %v1879 = vsel %vm1870, %v1846, %v1434
      %v1880 = vsel %vm1870, %v1847, %v1436
      %v1881 = vsel %vm1870, %v1848, %v1438
      %v1882 = vsel %vm1870, %v1849, %v1440
      %v1883 = vsel %vm1870, %v1850, %v1442
      %v1884 = vsel %vm1870, %v1851, %v1444
      %v1885 = vsel %vm1870, %v1852, %v1446
      %v1886 = vsel %vm1870, %v1853, %v1448
      %v1887 = vsel %vm1870, %v1854, %v1450
      %v1888 = vsel %vm1870, %v1855, %v1452
      %v1889 = vsel %vm1870, %v1856, %v1454
      %v1890 = vsel %vm1870, %v1857, %v1456
      %v1891 = vsel %vm1870, %v1858, %v1458
      %v1892 = vsel %vm1870, %v1859, %v1460
      %v1893 = vsel %vm1870, %v1860, %v1462
      %v1894 = vsel %vm1870, %v1861, %v1464
      %v1895 = vsel %vm1870, %v1862, %v1466
      %v1896 = vsel %vm1870, %v1863, %v1468
      %v1897 = vsel %vm1870, %v1864, %v1470
      %v1898 = vsel %vm1870, %v1865, %v1472
      %v1899 = vsel %vm1870, %v1866, %v1474
      %v1900 = vsel %vm1870, %v1867, %v1476
      %v1901 = vsel %vm1870, %v1868, %v1478
      %v1902 = vsel %vm1870, %v1869, %v1480
      %vm1903 = vcmask 457728
      %v1904 = vsel %vm1903, %v1871, %v1514
      %v1905 = vsel %vm1903, %v1872, %v1516
      %v1906 = vsel %vm1903, %v1873, %v1518
      %v1907 = vsel %vm1903, %v1874, %v1520
      %v1908 = vsel %vm1903, %v1875, %v1522
      %v1909 = vsel %vm1903, %v1876, %v1524
      %v1910 = vsel %vm1903, %v1877, %v1526
      %v1911 = vsel %vm1903, %v1878, %v1528
      %v1912 = vsel %vm1903, %v1879, %v1530
      %v1913 = vsel %vm1903, %v1880, %v1532
      %v1914 = vsel %vm1903, %v1881, %v1534
      %v1915 = vsel %vm1903, %v1882, %v1536
      %v1916 = vsel %vm1903, %v1883, %v1538
      %v1917 = vsel %vm1903, %v1884, %v1540
      %v1918 = vsel %vm1903, %v1885, %v1542
      %v1919 = vsel %vm1903, %v1886, %v1544
      %v1920 = vsel %vm1903, %v1887, %v1546
      %v1921 = vsel %vm1903, %v1888, %v1548
      %v1922 = vsel %vm1903, %v1889, %v1550
      %v1923 = vsel %vm1903, %v1890, %v1552
      %v1924 = vsel %vm1903, %v1891, %v1554
      %v1925 = vsel %vm1903, %v1892, %v1556
      %v1926 = vsel %vm1903, %v1893, %v1558
      %v1927 = vsel %vm1903, %v1894, %v1560
      %v1928 = vsel %vm1903, %v1895, %v1562
      %v1929 = vsel %vm1903, %v1896, %v1564
      %v1930 = vsel %vm1903, %v1897, %v1566
      %v1931 = vsel %vm1903, %v1898, %v1568
      %v1932 = vsel %vm1903, %v1899, %v1570
      %v1933 = vsel %vm1903, %v1900, %v1572
      %v1934 = vsel %vm1903, %v1901, %v1574
      %v1935 = vsel %vm1903, %v1902, %v1576
      %vm1936 = vcmask 523264
      %v1937 = vsel %vm1936, %v1904, %v1610
      %v1938 = vsel %vm1936, %v1905, %v1612
      %v1939 = vsel %vm1936, %v1906, %v1614
      %v1940 = vsel %vm1936, %v1907, %v1616
      %v1941 = vsel %vm1936, %v1908, %v1618
      %v1942 = vsel %vm1936, %v1909, %v1620
      %v1943 = vsel %vm1936, %v1910, %v1622
      %v1944 = vsel %vm1936, %v1911, %v1624
      %v1945 = vsel %vm1936, %v1912, %v1626
      %v1946 = vsel %vm1936, %v1913, %v1628
      %v1947 = vsel %vm1936, %v1914, %v1630
      %v1948 = vsel %vm1936, %v1915, %v1632
      %v1949 = vsel %vm1936, %v1916, %v1634
      %v1950 = vsel %vm1936, %v1917, %v1636
      %v1951 = vsel %vm1936, %v1918, %v1638
      %v1952 = vsel %vm1936, %v1919, %v1640
      %v1953 = vsel %vm1936, %v1920, %v1642
      %v1954 = vsel %vm1936, %v1921, %v1644
      %v1955 = vsel %vm1936, %v1922, %v1646
      %v1956 = vsel %vm1936, %v1923, %v1648
      %v1957 = vsel %vm1936, %v1924, %v1650
      %v1958 = vsel %vm1936, %v1925, %v1652
      %v1959 = vsel %vm1936, %v1926, %v1654
      %v1960 = vsel %vm1936, %v1927, %v1656
      %v1961 = vsel %vm1936, %v1928, %v1658
      %v1962 = vsel %vm1936, %v1929, %v1660
      %v1963 = vsel %vm1936, %v1930, %v1662
      %v1964 = vsel %vm1936, %v1931, %v1664
      %v1965 = vsel %vm1936, %v1932, %v1666
      %v1966 = vsel %vm1936, %v1933, %v1668
      %v1967 = vsel %vm1936, %v1934, %v1670
      %v1968 = vsel %vm1936, %v1935, %v1672
      %v1970 = vlaneseq
      %v1971 = vshrl.u32 %v1970, 7
      %v1972 = vsub.s32 0, %v1971
      %v1973 = vrot.slane %v509, %v1972
      %vm1975 = vcmask 588800
      %v1977 = vsel %vm1975, %v1937, 0
      %v1980 = vsel %vm1975, %v1938, 0
      %v1983 = vsel %vm1975, %v1939, 0
      %v1986 = vsel %vm1975, %v1940, 0
      %v1989 = vsel %vm1975, %v1941, 0
      %v1992 = vsel %vm1975, %v1942, 0
      %v1995 = vsel %vm1975, %v1943, 0
      %v1998 = vsel %vm1975, %v1944, 0
      %v2001 = vsel %vm1975, %v1945, 0
      %v2004 = vsel %vm1975, %v1946, 0
      %v2007 = vsel %vm1975, %v1947, 0
      %v2010 = vsel %vm1975, %v1948, 0
      %v2013 = vsel %vm1975, %v1949, 0
      %v2016 = vsel %vm1975, %v1950, 0
      %v2019 = vsel %vm1975, %v1951, 0
      %v2022 = vsel %vm1975, %v1952, 0
      %v2025 = vsel %vm1975, %v1953, 0
      %v2028 = vsel %vm1975, %v1954, 0
      %v2031 = vsel %vm1975, %v1955, 0
      %v2034 = vsel %vm1975, %v1956, 0
      %v2037 = vsel %vm1975, %v1957, 0
      %v2040 = vsel %vm1975, %v1958, 0
      %v2043 = vsel %vm1975, %v1959, 0
      %v2046 = vsel %vm1975, %v1960, 0
      %v2049 = vsel %vm1975, %v1961, 0
      %v2052 = vsel %vm1975, %v1962, 0
      %v2055 = vsel %vm1975, %v1963, 0
      %v2058 = vsel %vm1975, %v1964, 0
      %v2061 = vsel %vm1975, %v1965, 0
      %v2064 = vsel %vm1975, %v1966, 0
      %v2067 = vsel %vm1975, %v1967, 0
      %v2070 = vsel %vm1975, %v1968, 0
      %2072 = vmatprep.subr.mxu0 0.0
      %2073 = vmatpush1.msra.mxu0 %v500
      %2074 = vmatprep.subr.mxu0 0.0
      %2075 = vmatpush1.msra.mxu0 %v501
      %2076 = vmatprep.subr.mxu0 0.0
      %2077 = vmatpush1.msra.mxu0 %v502
      %2078 = vmatprep.subr.mxu0 0.0
      %2079 = vmatpush1.msra.mxu0 %v503
      %2080 = vmatprep.subr.mxu0 0.0
      %2081 = vmatpush1.msra.mxu0 %v504
      %2082 = vmatprep.subr.mxu0 0.0
      %2083 = vmatpush1.msra.mxu0 %v505
      %2084 = vmatprep.subr.mxu0 0.0
      %2085 = vmatpush1.msra.mxu0 %v506
      %2086 = vmatprep.subr.mxu0 0.0
      %2087 = vmatpush1.msra.mxu0 %v507
      %2088 = vmatprep.subr.mxu0 0.0
      %2089 = vmatpush1.msra.mxu0 %v508
      %2090 = vmatprep.subr.mxu0 0.0
      %2091 = vmatpush1.msra.mxu0 0.0
      %2092 = vmatprep.subr.mxu0 0.0
      %2093 = vmatpush1.msra.mxu0 0.0
      %2094 = vmatprep.subr.mxu0 0.0
      %2095 = vmatpush1.msra.mxu0 0.0
      %2096 = vmatprep.subr.mxu0 0.0
      %2097 = vmatpush1.msra.mxu0 0.0
      %2098 = vmatprep.subr.mxu0 0.0
      %2099 = vmatpush1.msra.mxu0 0.0
      %2100 = vmatprep.subr.mxu0 0.0
      %2101 = vmatpush1.msra.mxu0 0.0
      %2102 = vmatprep.subr.mxu0 0.0
      %2103 = vmatpush1.msra.mxu0 0.0
      %2104 = vmatprep.subr.mxu0 0.0
      %2105 = vmatpush1.msra.mxu0 0.0
      %2106 = vmatprep.subr.mxu0 0.0
      %2107 = vmatpush1.msra.mxu0 0.0
      %2108 = vmatprep.subr.mxu0 0.0
      %2109 = vmatpush1.msra.mxu0 0.0
      %2110 = vmatprep.subr.mxu0 0.0
      %2111 = vmatpush1.msra.mxu0 0.0
      %2112 = vmatprep.subr.mxu0 0.0
      %2113 = vmatpush1.msra.mxu0 0.0
      %2114 = vmatprep.subr.mxu0 0.0
      %2115 = vmatpush1.msra.mxu0 0.0
      %2116 = vmatprep.subr.mxu0 0.0
      %2117 = vmatpush1.msra.mxu0 0.0
      %2118 = vmatprep.subr.mxu0 0.0
      %2119 = vmatpush1.msra.mxu0 0.0
      %2120 = vmatprep.subr.mxu0 0.0
      %2121 = vmatpush1.msra.mxu0 0.0
      %2122 = vmatprep.subr.mxu0 0.0
      %2123 = vmatpush1.msra.mxu0 0.0
      %2124 = vmatprep.subr.mxu0 0.0
      %2125 = vmatpush1.msra.mxu0 0.0
      %2126 = vmatprep.subr.mxu0 0.0
      %2127 = vmatpush1.msra.mxu0 0.0
      %2128 = vmatprep.subr.mxu0 0.0
      %2129 = vmatpush1.msra.mxu0 0.0
      %2130 = vmatprep.subr.mxu0 0.0
      %2131 = vmatpush1.msra.mxu0 0.0
      %2132 = vmatprep.subr.mxu0 0.0
      %2133 = vmatpush1.msra.mxu0 0.0
      %2134 = vmatprep.subr.mxu0 0.0
      %2135 = vmatpush1.msra.mxu0 0.0
      %2136 = vmatprep.mubr.f32.mxu0 0.0
      %2137 = vmatmul.mubr.f32.gmra.mrb[0].mxu0 %v1977
      %v2138 = vpop.f32.mrb[0].mxu0
      %v2139 = vadd.f32 %v1973, %v2138
      %v2140 = vpop.f32.mrb[0].mxu0
      %2141 = vmatprep.mubr.f32.mxu0 0.0
      %2142 = vmatmul.mubr.f32.gmra.mrb[0].mxu0 %v1980
      %v2143 = vpop.f32.mrb[0].mxu0
      %v2144 = vadd.f32 %v1973, %v2143
      %v2145 = vpop.f32.mrb[0].mxu0
      %2146 = vmatprep.mubr.f32.mxu0 0.0
      %2147 = vmatmul.mubr.f32.gmra.mrb[0].mxu0 %v1983
      %v2148 = vpop.f32.mrb[0].mxu0
      %v2149 = vadd.f32 %v1973, %v2148
      %v2150 = vpop.f32.mrb[0].mxu0
      %2151 = vmatprep.mubr.f32.mxu0 0.0
      %2152 = vmatmul.mubr.f32.gmra.mrb[0].mxu0 %v1986
      %v2153 = vpop.f32.mrb[0].mxu0
      %v2154 = vadd.f32 %v1973, %v2153
      %v2155 = vpop.f32.mrb[0].mxu0
      %2156 = vmatprep.mubr.f32.mxu0 0.0
      %2157 = vmatmul.mubr.f32.gmra.mrb[0].mxu0 %v1989
      %v2158 = vpop.f32.mrb[0].mxu0
      %v2159 = vadd.f32 %v1973, %v2158
      %v2160 = vpop.f32.mrb[0].mxu0
      %2161 = vmatprep.mubr.f32.mxu0 0.0
      %2162 = vmatmul.mubr.f32.gmra.mrb[0].mxu0 %v1992
      %v2163 = vpop.f32.mrb[0].mxu0
      %v2164 = vadd.f32 %v1973, %v2163
      %v2165 = vpop.f32.mrb[0].mxu0
      %2166 = vmatprep.mubr.f32.mxu0 0.0
      %2167 = vmatmul.mubr.f32.gmra.mrb[0].mxu0 %v1995
      %v2168 = vpop.f32.mrb[0].mxu0
      %v2169 = vadd.f32 %v1973, %v2168
      %v2170 = vpop.f32.mrb[0].mxu0
      %2171 = vmatprep.mubr.f32.mxu0 0.0
      %2172 = vmatmul.mubr.f32.gmra.mrb[0].mxu0 %v1998
      %v2173 = vpop.f32.mrb[0].mxu0
      %v2174 = vadd.f32 %v1973, %v2173
      %v2175 = vpop.f32.mrb[0].mxu0
      %2176 = vmatprep.mubr.f32.mxu0 0.0
      %2177 = vmatmul.mubr.f32.gmra.mrb[0].mxu0 %v2001
      %v2178 = vpop.f32.mrb[0].mxu0
      %v2179 = vadd.f32 %v1973, %v2178
      %v2180 = vpop.f32.mrb[0].mxu0
      %2181 = vmatprep.mubr.f32.mxu0 0.0
      %2182 = vmatmul.mubr.f32.gmra.mrb[0].mxu0 %v2004
      %v2183 = vpop.f32.mrb[0].mxu0
      %v2184 = vadd.f32 %v1973, %v2183
      %v2185 = vpop.f32.mrb[0].mxu0
      %2186 = vmatprep.mubr.f32.mxu0 0.0
      %2187 = vmatmul.mubr.f32.gmra.mrb[0].mxu0 %v2007
      %v2188 = vpop.f32.mrb[0].mxu0
      %v2189 = vadd.f32 %v1973, %v2188
      %v2190 = vpop.f32.mrb[0].mxu0
      %2191 = vmatprep.mubr.f32.mxu0 0.0
      %2192 = vmatmul.mubr.f32.gmra.mrb[0].mxu0 %v2010
      %v2193 = vpop.f32.mrb[0].mxu0
      %v2194 = vadd.f32 %v1973, %v2193
      %v2195 = vpop.f32.mrb[0].mxu0
      %2196 = vmatprep.mubr.f32.mxu0 0.0
      %2197 = vmatmul.mubr.f32.gmra.mrb[0].mxu0 %v2013
      %v2198 = vpop.f32.mrb[0].mxu0
      %v2199 = vadd.f32 %v1973, %v2198
      %v2200 = vpop.f32.mrb[0].mxu0
      %2201 = vmatprep.mubr.f32.mxu0 0.0
      %2202 = vmatmul.mubr.f32.gmra.mrb[0].mxu0 %v2016
      %v2203 = vpop.f32.mrb[0].mxu0
      %v2204 = vadd.f32 %v1973, %v2203
      %v2205 = vpop.f32.mrb[0].mxu0
      %2206 = vmatprep.mubr.f32.mxu0 0.0
      %2207 = vmatmul.mubr.f32.gmra.mrb[0].mxu0 %v2019
      %v2208 = vpop.f32.mrb[0].mxu0
      %v2209 = vadd.f32 %v1973, %v2208
      %v2210 = vpop.f32.mrb[0].mxu0
      %2211 = vmatprep.mubr.f32.mxu0 0.0
      %2212 = vmatmul.mubr.f32.gmra.mrb[0].mxu0 %v2022
      %v2213 = vpop.f32.mrb[0].mxu0
      %v2214 = vadd.f32 %v1973, %v2213
      %v2215 = vpop.f32.mrb[0].mxu0
      %2216 = vmatprep.mubr.f32.mxu0 0.0
      %2217 = vmatmul.mubr.f32.gmra.mrb[0].mxu0 %v2025
      %v2218 = vpop.f32.mrb[0].mxu0
      %v2219 = vadd.f32 %v1973, %v2218
      %v2220 = vpop.f32.mrb[0].mxu0
      %2221 = vmatprep.mubr.f32.mxu0 0.0
      %2222 = vmatmul.mubr.f32.gmra.mrb[0].mxu0 %v2028
      %v2223 = vpop.f32.mrb[0].mxu0
      %v2224 = vadd.f32 %v1973, %v2223
      %v2225 = vpop.f32.mrb[0].mxu0
      %2226 = vmatprep.mubr.f32.mxu0 0.0
      %2227 = vmatmul.mubr.f32.gmra.mrb[0].mxu0 %v2031
      %v2228 = vpop.f32.mrb[0].mxu0
      %v2229 = vadd.f32 %v1973, %v2228
      %v2230 = vpop.f32.mrb[0].mxu0
      %2231 = vmatprep.mubr.f32.mxu0 0.0
      %2232 = vmatmul.mubr.f32.gmra.mrb[0].mxu0 %v2034
      %v2233 = vpop.f32.mrb[0].mxu0
      %v2234 = vadd.f32 %v1973, %v2233
      %v2235 = vpop.f32.mrb[0].mxu0
      %2236 = vmatprep.mubr.f32.mxu0 0.0
      %2237 = vmatmul.mubr.f32.gmra.mrb[0].mxu0 %v2037
      %v2238 = vpop.f32.mrb[0].mxu0
      %v2239 = vadd.f32 %v1973, %v2238
      %v2240 = vpop.f32.mrb[0].mxu0
      %2241 = vmatprep.mubr.f32.mxu0 0.0
      %2242 = vmatmul.mubr.f32.gmra.mrb[0].mxu0 %v2040
      %v2243 = vpop.f32.mrb[0].mxu0
      %v2244 = vadd.f32 %v1973, %v2243
      %v2245 = vpop.f32.mrb[0].mxu0
      %2246 = vmatprep.mubr.f32.mxu0 0.0
      %2247 = vmatmul.mubr.f32.gmra.mrb[0].mxu0 %v2043
      %v2248 = vpop.f32.mrb[0].mxu0
      %v2249 = vadd.f32 %v1973, %v2248
      %v2250 = vpop.f32.mrb[0].mxu0
      %2251 = vmatprep.mubr.f32.mxu0 0.0
      %2252 = vmatmul.mubr.f32.gmra.mrb[0].mxu0 %v2046
      %v2253 = vpop.f32.mrb[0].mxu0
      %v2254 = vadd.f32 %v1973, %v2253
      %v2255 = vpop.f32.mrb[0].mxu0
      %2256 = vmatprep.mubr.f32.mxu0 0.0
      %2257 = vmatmul.mubr.f32.gmra.mrb[0].mxu0 %v2049
      %v2258 = vpop.f32.mrb[0].mxu0
      %v2259 = vadd.f32 %v1973, %v2258
      %v2260 = vpop.f32.mrb[0].mxu0
      %2261 = vmatprep.mubr.f32.mxu0 0.0
      %2262 = vmatmul.mubr.f32.gmra.mrb[0].mxu0 %v2052
      %v2263 = vpop.f32.mrb[0].mxu0
      %v2264 = vadd.f32 %v1973, %v2263
      %v2265 = vpop.f32.mrb[0].mxu0
      %2266 = vmatprep.mubr.f32.mxu0 0.0
      %2267 = vmatmul.mubr.f32.gmra.mrb[0].mxu0 %v2055
      %v2268 = vpop.f32.mrb[0].mxu0
      %v2269 = vadd.f32 %v1973, %v2268
      %v2270 = vpop.f32.mrb[0].mxu0
      %2271 = vmatprep.mubr.f32.mxu0 0.0
      %2272 = vmatmul.mubr.f32.gmra.mrb[0].mxu0 %v2058
      %v2273 = vpop.f32.mrb[0].mxu0
      %v2274 = vadd.f32 %v1973, %v2273
      %v2275 = vpop.f32.mrb[0].mxu0
      %2276 = vmatprep.mubr.f32.mxu0 0.0
      %2277 = vmatmul.mubr.f32.gmra.mrb[0].mxu0 %v2061
      %v2278 = vpop.f32.mrb[0].mxu0
      %v2279 = vadd.f32 %v1973, %v2278
      %v2280 = vpop.f32.mrb[0].mxu0
      %2281 = vmatprep.mubr.f32.mxu0 0.0
      %2282 = vmatmul.mubr.f32.gmra.mrb[0].mxu0 %v2064
      %v2283 = vpop.f32.mrb[0].mxu0
      %v2284 = vadd.f32 %v1973, %v2283
      %v2285 = vpop.f32.mrb[0].mxu0
      %2286 = vmatprep.mubr.f32.mxu0 0.0
      %2287 = vmatmul.mubr.f32.gmra.mrb[0].mxu0 %v2067
      %v2288 = vpop.f32.mrb[0].mxu0
      %v2289 = vadd.f32 %v1973, %v2288
      %v2290 = vpop.f32.mrb[0].mxu0
      %2291 = vmatprep.mubr.f32.mxu0 0.0
      %2292 = vmatmul.mubr.f32.gmra.mrb[0].mxu0 %v2070
      %v2293 = vpop.f32.mrb[0].mxu0
      %v2294 = vadd.f32 %v1973, %v2293
      %v2295 = vpop.f32.mrb[0].mxu0
      %2296 = vdwg.mxu0
      %v2297 = vld [vmem:[%s3] sm:$0xff]
      %v2298 = vld [vmem:[%s3 + $0x8] sm:$0xff]
      %v2299 = vld [vmem:[%s3 + $0x10] sm:$0xff]
      %v2300 = vld [vmem:[%s3 + $0x18] sm:$0xff]
      %v2301 = vld [vmem:[%s3 + $0x20] sm:$0xff]
      %v2302 = vld [vmem:[%s3 + $0x28] sm:$0xff]
      %v2303 = vld [vmem:[%s3 + $0x30] sm:$0xff]
      %v2304 = vld [vmem:[%s3 + $0x38] sm:$0xff]
      %v2305 = vld [vmem:[%s3 + $0x40] sm:$0xff]
      %v2306 = vld [vmem:[%s4] sm:$0x1]
      %v2313 = vrot.slane %v428, 4
      %v2314 = vrot.slane %v429, 4
      %v2315 = vsel %vm671, %v2313, %v2314
      %v2316 = vrot.slane %v430, 4
      %v2317 = vsel %vm671, %v2314, %v2316
      %v2318 = vrot.slane %v431, 4
      %v2319 = vrot.slane %v432, 4
      %v2320 = vsel %vm671, %v2318, %v2319
      %v2321 = vrot.slane %v433, 4
      %v2322 = vsel %vm671, %v2319, %v2321
      %v2329 = vrot.slane %v494, 4
      %v2330 = vrot.slane %v495, 4
      %v2331 = vsel %vm671, %v2329, %v2330
      %v2332 = vrot.slane %v496, 4
      %v2333 = vsel %vm671, %v2330, %v2332
      %v2334 = vrot.slane %v497, 4
      %v2335 = vrot.slane %v498, 4
      %v2336 = vsel %vm671, %v2334, %v2335
      %v2337 = vrot.slane %v499, 4
      %v2338 = vsel %vm671, %v2335, %v2337
      %2339 = vrot.lane.b32.xlu0 %v2315, 8
      %v2340 = vpop.permute.xlu0 %2339
      %2341 = vrot.lane.b32.xlu0 %v2317, 8
      %v2342 = vpop.permute.xlu0 %2341
      %2343 = vrot.lane.b32.xlu0 %v2320, 8
      %v2344 = vpop.permute.xlu0 %2343
      %2345 = vrot.lane.b32.xlu0 %v2322, 8
      %v2346 = vpop.permute.xlu0 %2345
      %2351 = vrot.lane.b32.xlu0 %v429, 16
      %v2352 = vpop.permute.xlu0 %2351
      %2353 = vrot.lane.b32.xlu0 %v430, 16
      %v2354 = vpop.permute.xlu0 %2353
      %2355 = vrot.lane.b32.xlu0 %v432, 16
      %v2356 = vpop.permute.xlu0 %2355
      %2357 = vrot.lane.b32.xlu0 %v433, 16
      %v2358 = vpop.permute.xlu0 %2357
      %2359 = vrot.lane.b32.xlu0 %v435, 16
      %v2360 = vpop.permute.xlu0 %2359
      %2361 = vrot.lane.b32.xlu0 %v436, 16
      %v2362 = vpop.permute.xlu0 %2361
      %2363 = vrot.lane.b32.xlu0 %v438, 16
      %v2364 = vpop.permute.xlu0 %2363
      %2365 = vrot.lane.b32.xlu0 %v439, 16
      %v2366 = vpop.permute.xlu0 %2365
      %2367 = vrot.lane.b32.xlu0 %v441, 16
      %v2368 = vpop.permute.xlu0 %2367
      %2369 = vrot.lane.b32.xlu0 %v442, 16
      %v2370 = vpop.permute.xlu0 %2369
      %2371 = vrot.lane.b32.xlu0 %v444, 16
      %v2372 = vpop.permute.xlu0 %2371
      %2373 = vrot.lane.b32.xlu0 %v445, 16
      %v2374 = vpop.permute.xlu0 %2373
      %2375 = vrot.lane.b32.xlu0 %v447, 16
      %v2376 = vpop.permute.xlu0 %2375
      %2377 = vrot.lane.b32.xlu0 %v448, 16
      %v2378 = vpop.permute.xlu0 %2377
      %2379 = vrot.lane.b32.xlu0 %v450, 16
      %v2380 = vpop.permute.xlu0 %2379
      %2381 = vrot.lane.b32.xlu0 %v451, 16
      %v2382 = vpop.permute.xlu0 %2381
      %2383 = vrot.lane.b32.xlu0 %v453, 16
      %v2384 = vpop.permute.xlu0 %2383
      %2385 = vrot.lane.b32.xlu0 %v454, 16
      %v2386 = vpop.permute.xlu0 %2385
      %2387 = vrot.lane.b32.xlu0 %v456, 16
      %v2388 = vpop.permute.xlu0 %2387
      %2389 = vrot.lane.b32.xlu0 %v457, 16
      %v2390 = vpop.permute.xlu0 %2389
      %2391 = vrot.lane.b32.xlu0 %v459, 16
      %v2392 = vpop.permute.xlu0 %2391
      %2393 = vrot.lane.b32.xlu0 %v460, 16
      %v2394 = vpop.permute.xlu0 %2393
      %2395 = vrot.lane.b32.xlu0 %v462, 16
      %v2396 = vpop.permute.xlu0 %2395
      %2397 = vrot.lane.b32.xlu0 %v463, 16
      %v2398 = vpop.permute.xlu0 %2397
      %2399 = vrot.lane.b32.xlu0 %v465, 16
      %v2400 = vpop.permute.xlu0 %2399
      %2401 = vrot.lane.b32.xlu0 %v466, 16
      %v2402 = vpop.permute.xlu0 %2401
      %2403 = vrot.lane.b32.xlu0 %v468, 16
      %v2404 = vpop.permute.xlu0 %2403
      %2405 = vrot.lane.b32.xlu0 %v469, 16
      %v2406 = vpop.permute.xlu0 %2405
      %2407 = vrot.lane.b32.xlu0 %v471, 16
      %v2408 = vpop.permute.xlu0 %2407
      %2409 = vrot.lane.b32.xlu0 %v472, 16
      %v2410 = vpop.permute.xlu0 %2409
      %2411 = vrot.lane.b32.xlu0 %v474, 16
      %v2412 = vpop.permute.xlu0 %2411
      %2413 = vrot.lane.b32.xlu0 %v475, 16
      %v2414 = vpop.permute.xlu0 %2413
      %2447 = vrot.lane.b32.xlu0 %v440, 24
      %v2448 = vpop.permute.xlu0 %2447
      %2449 = vrot.lane.b32.xlu0 %v441, 24
      %v2450 = vpop.permute.xlu0 %2449
      %2451 = vrot.lane.b32.xlu0 %v443, 24
      %v2452 = vpop.permute.xlu0 %2451
      %2453 = vrot.lane.b32.xlu0 %v444, 24
      %v2454 = vpop.permute.xlu0 %2453
      %2455 = vrot.lane.b32.xlu0 %v446, 24
      %v2456 = vpop.permute.xlu0 %2455
      %2457 = vrot.lane.b32.xlu0 %v447, 24
      %v2458 = vpop.permute.xlu0 %2457
      %2459 = vrot.lane.b32.xlu0 %v449, 24
      %v2460 = vpop.permute.xlu0 %2459
      %2461 = vrot.lane.b32.xlu0 %v450, 24
      %v2462 = vpop.permute.xlu0 %2461
      %2463 = vrot.lane.b32.xlu0 %v452, 24
      %v2464 = vpop.permute.xlu0 %2463
      %2465 = vrot.lane.b32.xlu0 %v453, 24
      %v2466 = vpop.permute.xlu0 %2465
      %2467 = vrot.lane.b32.xlu0 %v455, 24
      %v2468 = vpop.permute.xlu0 %2467
      %2469 = vrot.lane.b32.xlu0 %v456, 24
      %v2470 = vpop.permute.xlu0 %2469
      %2471 = vrot.lane.b32.xlu0 %v458, 24
      %v2472 = vpop.permute.xlu0 %2471
      %2473 = vrot.lane.b32.xlu0 %v459, 24
      %v2474 = vpop.permute.xlu0 %2473
      %2475 = vrot.lane.b32.xlu0 %v461, 24
      %v2476 = vpop.permute.xlu0 %2475
      %2477 = vrot.lane.b32.xlu0 %v462, 24
      %v2478 = vpop.permute.xlu0 %2477
      %2479 = vrot.lane.b32.xlu0 %v464, 24
      %v2480 = vpop.permute.xlu0 %2479
      %2481 = vrot.lane.b32.xlu0 %v465, 24
      %v2482 = vpop.permute.xlu0 %2481
      %2483 = vrot.lane.b32.xlu0 %v467, 24
      %v2484 = vpop.permute.xlu0 %2483
      %2485 = vrot.lane.b32.xlu0 %v468, 24
      %v2486 = vpop.permute.xlu0 %2485
      %2487 = vrot.lane.b32.xlu0 %v470, 24
      %v2488 = vpop.permute.xlu0 %2487
      %2489 = vrot.lane.b32.xlu0 %v471, 24
      %v2490 = vpop.permute.xlu0 %2489
      %2491 = vrot.lane.b32.xlu0 %v473, 24
      %v2492 = vpop.permute.xlu0 %2491
      %2493 = vrot.lane.b32.xlu0 %v474, 24
      %v2494 = vpop.permute.xlu0 %2493
      %2495 = vrot.lane.b32.xlu0 %v476, 24
      %v2496 = vpop.permute.xlu0 %2495
      %2497 = vrot.lane.b32.xlu0 %v477, 24
      %v2498 = vpop.permute.xlu0 %2497
      %2499 = vrot.lane.b32.xlu0 %v479, 24
      %v2500 = vpop.permute.xlu0 %2499
      %2501 = vrot.lane.b32.xlu0 %v480, 24
      %v2502 = vpop.permute.xlu0 %2501
      %2503 = vrot.lane.b32.xlu0 %v482, 24
      %v2504 = vpop.permute.xlu0 %2503
      %2505 = vrot.lane.b32.xlu0 %v483, 24
      %v2506 = vpop.permute.xlu0 %2505
      %2507 = vrot.lane.b32.xlu0 %v485, 24
      %v2508 = vpop.permute.xlu0 %2507
      %2509 = vrot.lane.b32.xlu0 %v486, 24
      %v2510 = vpop.permute.xlu0 %2509
      %2543 = vrot.lane.b32.xlu0 %v441, 40
      %v2544 = vpop.permute.xlu0 %2543
      %2545 = vrot.lane.b32.xlu0 %v442, 40
      %v2546 = vpop.permute.xlu0 %2545
      %2547 = vrot.lane.b32.xlu0 %v444, 40
      %v2548 = vpop.permute.xlu0 %2547
      %2549 = vrot.lane.b32.xlu0 %v445, 40
      %v2550 = vpop.permute.xlu0 %2549
      %2551 = vrot.lane.b32.xlu0 %v447, 40
      %v2552 = vpop.permute.xlu0 %2551
      %2553 = vrot.lane.b32.xlu0 %v448, 40
      %v2554 = vpop.permute.xlu0 %2553
      %2555 = vrot.lane.b32.xlu0 %v450, 40
      %v2556 = vpop.permute.xlu0 %2555
      %2557 = vrot.lane.b32.xlu0 %v451, 40
      %v2558 = vpop.permute.xlu0 %2557
      %2559 = vrot.lane.b32.xlu0 %v453, 40
      %v2560 = vpop.permute.xlu0 %2559
      %2561 = vrot.lane.b32.xlu0 %v454, 40
      %v2562 = vpop.permute.xlu0 %2561
      %2563 = vrot.lane.b32.xlu0 %v456, 40
      %v2564 = vpop.permute.xlu0 %2563
      %2565 = vrot.lane.b32.xlu0 %v457, 40
      %v2566 = vpop.permute.xlu0 %2565
      %2567 = vrot.lane.b32.xlu0 %v459, 40
      %v2568 = vpop.permute.xlu0 %2567
      %2569 = vrot.lane.b32.xlu0 %v460, 40
      %v2570 = vpop.permute.xlu0 %2569
      %2571 = vrot.lane.b32.xlu0 %v462, 40
      %v2572 = vpop.permute.xlu0 %2571
      %2573 = vrot.lane.b32.xlu0 %v463, 40
      %v2574 = vpop.permute.xlu0 %2573
      %2575 = vrot.lane.b32.xlu0 %v465, 40
      %v2576 = vpop.permute.xlu0 %2575
      %2577 = vrot.lane.b32.xlu0 %v466, 40
      %v2578 = vpop.permute.xlu0 %2577
      %2579 = vrot.lane.b32.xlu0 %v468, 40
      %v2580 = vpop.permute.xlu0 %2579
      %2581 = vrot.lane.b32.xlu0 %v469, 40
      %v2582 = vpop.permute.xlu0 %2581
      %2583 = vrot.lane.b32.xlu0 %v471, 40
      %v2584 = vpop.permute.xlu0 %2583
      %2585 = vrot.lane.b32.xlu0 %v472, 40
      %v2586 = vpop.permute.xlu0 %2585
      %2587 = vrot.lane.b32.xlu0 %v474, 40
      %v2588 = vpop.permute.xlu0 %2587
      %2589 = vrot.lane.b32.xlu0 %v475, 40
      %v2590 = vpop.permute.xlu0 %2589
      %2591 = vrot.lane.b32.xlu0 %v477, 40
      %v2592 = vpop.permute.xlu0 %2591
      %2593 = vrot.lane.b32.xlu0 %v478, 40
      %v2594 = vpop.permute.xlu0 %2593
      %2595 = vrot.lane.b32.xlu0 %v480, 40
      %v2596 = vpop.permute.xlu0 %2595
      %2597 = vrot.lane.b32.xlu0 %v481, 40
      %v2598 = vpop.permute.xlu0 %2597
      %2599 = vrot.lane.b32.xlu0 %v483, 40
      %v2600 = vpop.permute.xlu0 %2599
      %2601 = vrot.lane.b32.xlu0 %v484, 40
      %v2602 = vpop.permute.xlu0 %2601
      %2603 = vrot.lane.b32.xlu0 %v486, 40
      %v2604 = vpop.permute.xlu0 %2603
      %2605 = vrot.lane.b32.xlu0 %v487, 40
      %v2606 = vpop.permute.xlu0 %2605
      %2639 = vrot.lane.b32.xlu0 %v452, 48
      %v2640 = vpop.permute.xlu0 %2639
      %2641 = vrot.lane.b32.xlu0 %v453, 48
      %v2642 = vpop.permute.xlu0 %2641
      %2643 = vrot.lane.b32.xlu0 %v455, 48
      %v2644 = vpop.permute.xlu0 %2643
      %2645 = vrot.lane.b32.xlu0 %v456, 48
      %v2646 = vpop.permute.xlu0 %2645
      %2647 = vrot.lane.b32.xlu0 %v458, 48
      %v2648 = vpop.permute.xlu0 %2647
      %2649 = vrot.lane.b32.xlu0 %v459, 48
      %v2650 = vpop.permute.xlu0 %2649
      %2651 = vrot.lane.b32.xlu0 %v461, 48
      %v2652 = vpop.permute.xlu0 %2651
      %2653 = vrot.lane.b32.xlu0 %v462, 48
      %v2654 = vpop.permute.xlu0 %2653
      %2655 = vrot.lane.b32.xlu0 %v464, 48
      %v2656 = vpop.permute.xlu0 %2655
      %2657 = vrot.lane.b32.xlu0 %v465, 48
      %v2658 = vpop.permute.xlu0 %2657
      %2659 = vrot.lane.b32.xlu0 %v467, 48
      %v2660 = vpop.permute.xlu0 %2659
      %2661 = vrot.lane.b32.xlu0 %v468, 48
      %v2662 = vpop.permute.xlu0 %2661
      %2663 = vrot.lane.b32.xlu0 %v470, 48
      %v2664 = vpop.permute.xlu0 %2663
      %2665 = vrot.lane.b32.xlu0 %v471, 48
      %v2666 = vpop.permute.xlu0 %2665
      %2667 = vrot.lane.b32.xlu0 %v473, 48
      %v2668 = vpop.permute.xlu0 %2667
      %2669 = vrot.lane.b32.xlu0 %v474, 48
      %v2670 = vpop.permute.xlu0 %2669
      %2671 = vrot.lane.b32.xlu0 %v476, 48
      %v2672 = vpop.permute.xlu0 %2671
      %2673 = vrot.lane.b32.xlu0 %v477, 48
      %v2674 = vpop.permute.xlu0 %2673
      %2675 = vrot.lane.b32.xlu0 %v479, 48
      %v2676 = vpop.permute.xlu0 %2675
      %2677 = vrot.lane.b32.xlu0 %v480, 48
      %v2678 = vpop.permute.xlu0 %2677
      %2679 = vrot.lane.b32.xlu0 %v482, 48
      %v2680 = vpop.permute.xlu0 %2679
      %2681 = vrot.lane.b32.xlu0 %v483, 48
      %v2682 = vpop.permute.xlu0 %2681
      %2683 = vrot.lane.b32.xlu0 %v485, 48
      %v2684 = vpop.permute.xlu0 %2683
      %2685 = vrot.lane.b32.xlu0 %v486, 48
      %v2686 = vpop.permute.xlu0 %2685
      %2687 = vrot.lane.b32.xlu0 %v488, 48
      %v2688 = vpop.permute.xlu0 %2687
      %2689 = vrot.lane.b32.xlu0 %v489, 48
      %v2690 = vpop.permute.xlu0 %2689
      %2691 = vrot.lane.b32.xlu0 %v491, 48
      %v2692 = vpop.permute.xlu0 %2691
      %2693 = vrot.lane.b32.xlu0 %v492, 48
      %v2694 = vpop.permute.xlu0 %2693
      %2695 = vrot.lane.b32.xlu0 %v494, 48
      %v2696 = vpop.permute.xlu0 %2695
      %2697 = vrot.lane.b32.xlu0 %v495, 48
      %v2698 = vpop.permute.xlu0 %2697
      %2699 = vrot.lane.b32.xlu0 %v497, 48
      %v2700 = vpop.permute.xlu0 %2699
      %2701 = vrot.lane.b32.xlu0 %v498, 48
      %v2702 = vpop.permute.xlu0 %2701
      %2735 = vrot.lane.b32.xlu0 %v2331, 56
      %v2736 = vpop.permute.xlu0 %2735
      %2737 = vrot.lane.b32.xlu0 %v2333, 56
      %v2738 = vpop.permute.xlu0 %2737
      %2739 = vrot.lane.b32.xlu0 %v2336, 56
      %v2740 = vpop.permute.xlu0 %2739
      %2741 = vrot.lane.b32.xlu0 %v2338, 56
      %v2742 = vpop.permute.xlu0 %2741
      %2747 = vrot.lane.b32.xlu0 %v453, 64
      %v2748 = vpop.permute.xlu0 %2747
      %2749 = vrot.lane.b32.xlu0 %v454, 64
      %v2750 = vpop.permute.xlu0 %2749
      %2751 = vrot.lane.b32.xlu0 %v456, 64
      %v2752 = vpop.permute.xlu0 %2751
      %2753 = vrot.lane.b32.xlu0 %v457, 64
      %v2754 = vpop.permute.xlu0 %2753
      %2755 = vrot.lane.b32.xlu0 %v459, 64
      %v2756 = vpop.permute.xlu0 %2755
      %2757 = vrot.lane.b32.xlu0 %v460, 64
      %v2758 = vpop.permute.xlu0 %2757
      %2759 = vrot.lane.b32.xlu0 %v462, 64
      %v2760 = vpop.permute.xlu0 %2759
      %2761 = vrot.lane.b32.xlu0 %v463, 64
      %v2762 = vpop.permute.xlu0 %2761
      %2763 = vrot.lane.b32.xlu0 %v465, 64
      %v2764 = vpop.permute.xlu0 %2763
      %2765 = vrot.lane.b32.xlu0 %v466, 64
      %v2766 = vpop.permute.xlu0 %2765
      %2767 = vrot.lane.b32.xlu0 %v468, 64
      %v2768 = vpop.permute.xlu0 %2767
      %2769 = vrot.lane.b32.xlu0 %v469, 64
      %v2770 = vpop.permute.xlu0 %2769
      %2771 = vrot.lane.b32.xlu0 %v471, 64
      %v2772 = vpop.permute.xlu0 %2771
      %2773 = vrot.lane.b32.xlu0 %v472, 64
      %v2774 = vpop.permute.xlu0 %2773
      %2775 = vrot.lane.b32.xlu0 %v474, 64
      %v2776 = vpop.permute.xlu0 %2775
      %2777 = vrot.lane.b32.xlu0 %v475, 64
      %v2778 = vpop.permute.xlu0 %2777
      %2779 = vrot.lane.b32.xlu0 %v477, 64
      %v2780 = vpop.permute.xlu0 %2779
      %2781 = vrot.lane.b32.xlu0 %v478, 64
      %v2782 = vpop.permute.xlu0 %2781
      %2783 = vrot.lane.b32.xlu0 %v480, 64
      %v2784 = vpop.permute.xlu0 %2783
      %2785 = vrot.lane.b32.xlu0 %v481, 64
      %v2786 = vpop.permute.xlu0 %2785
      %2787 = vrot.lane.b32.xlu0 %v483, 64
      %v2788 = vpop.permute.xlu0 %2787
      %2789 = vrot.lane.b32.xlu0 %v484, 64
      %v2790 = vpop.permute.xlu0 %2789
      %2791 = vrot.lane.b32.xlu0 %v486, 64
      %v2792 = vpop.permute.xlu0 %2791
      %2793 = vrot.lane.b32.xlu0 %v487, 64
      %v2794 = vpop.permute.xlu0 %2793
      %2795 = vrot.lane.b32.xlu0 %v489, 64
      %v2796 = vpop.permute.xlu0 %2795
      %2797 = vrot.lane.b32.xlu0 %v490, 64
      %v2798 = vpop.permute.xlu0 %2797
      %2799 = vrot.lane.b32.xlu0 %v492, 64
      %v2800 = vpop.permute.xlu0 %2799
      %2801 = vrot.lane.b32.xlu0 %v493, 64
      %v2802 = vpop.permute.xlu0 %2801
      %2803 = vrot.lane.b32.xlu0 %v495, 64
      %v2804 = vpop.permute.xlu0 %2803
      %2805 = vrot.lane.b32.xlu0 %v496, 64
      %v2806 = vpop.permute.xlu0 %2805
      %2807 = vrot.lane.b32.xlu0 %v498, 64
      %v2808 = vpop.permute.xlu0 %2807
      %2809 = vrot.lane.b32.xlu0 %v499, 64
      %v2810 = vpop.permute.xlu0 %2809
      %v2843 = vsel %vm1705, %v428, %v2340
      %v2844 = vsel %vm1705, %v429, %v2342
      %v2845 = vsel %vm1705, %v431, %v2344
      %v2846 = vsel %vm1705, %v432, %v2346
      %v2847 = vsel %vm1705, %v434, %v938
      %v2848 = vsel %vm1705, %v435, %v940
      %v2849 = vsel %vm1705, %v437, %v942
      %v2850 = vsel %vm1705, %v438, %v944
      %v2851 = vsel %vm1705, %v440, %v946
      %v2852 = vsel %vm1705, %v441, %v948
      %v2853 = vsel %vm1705, %v443, %v950
      %v2854 = vsel %vm1705, %v444, %v952
      %v2855 = vsel %vm1705, %v446, %v954
      %v2856 = vsel %vm1705, %v447, %v956
      %v2857 = vsel %vm1705, %v449, %v958
      %v2858 = vsel %vm1705, %v450, %v960
      %v2859 = vsel %vm1705, %v452, %v962
      %v2860 = vsel %vm1705, %v453, %v964
      %v2861 = vsel %vm1705, %v455, %v966
      %v2862 = vsel %vm1705, %v456, %v968
      %v2863 = vsel %vm1705, %v458, %v970
      %v2864 = vsel %vm1705, %v459, %v972
      %v2865 = vsel %vm1705, %v461, %v974
      %v2866 = vsel %vm1705, %v462, %v976
      %v2867 = vsel %vm1705, %v464, %v978
      %v2868 = vsel %vm1705, %v465, %v980
      %v2869 = vsel %vm1705, %v467, %v982
      %v2870 = vsel %vm1705, %v468, %v984
      %v2871 = vsel %vm1705, %v470, %v986
      %v2872 = vsel %vm1705, %v471, %v988
      %v2873 = vsel %vm1705, %v473, %v990
      %v2874 = vsel %vm1705, %v474, %v992
      %v2875 = vsel %vm1738, %v2843, %v2352
      %v2876 = vsel %vm1738, %v2844, %v2354
      %v2877 = vsel %vm1738, %v2845, %v2356
      %v2878 = vsel %vm1738, %v2846, %v2358
      %v2879 = vsel %vm1738, %v2847, %v2360
      %v2880 = vsel %vm1738, %v2848, %v2362
      %v2881 = vsel %vm1738, %v2849, %v2364
      %v2882 = vsel %vm1738, %v2850, %v2366
      %v2883 = vsel %vm1738, %v2851, %v2368
      %v2884 = vsel %vm1738, %v2852, %v2370
      %v2885 = vsel %vm1738, %v2853, %v2372
      %v2886 = vsel %vm1738, %v2854, %v2374
      %v2887 = vsel %vm1738, %v2855, %v2376
      %v2888 = vsel %vm1738, %v2856, %v2378
      %v2889 = vsel %vm1738, %v2857, %v2380
      %v2890 = vsel %vm1738, %v2858, %v2382
      %v2891 = vsel %vm1738, %v2859, %v2384
      %v2892 = vsel %vm1738, %v2860, %v2386
      %v2893 = vsel %vm1738, %v2861, %v2388
      %v2894 = vsel %vm1738, %v2862, %v2390
      %v2895 = vsel %vm1738, %v2863, %v2392
      %v2896 = vsel %vm1738, %v2864, %v2394
      %v2897 = vsel %vm1738, %v2865, %v2396
      %v2898 = vsel %vm1738, %v2866, %v2398
      %v2899 = vsel %vm1738, %v2867, %v2400
      %v2900 = vsel %vm1738, %v2868, %v2402
      %v2901 = vsel %vm1738, %v2869, %v2404
      %v2902 = vsel %vm1738, %v2870, %v2406
      %v2903 = vsel %vm1738, %v2871, %v2408
      %v2904 = vsel %vm1738, %v2872, %v2410
      %v2905 = vsel %vm1738, %v2873, %v2412
      %v2906 = vsel %vm1738, %v2874, %v2414
      %v2907 = vsel %vm1771, %v2875, %v2448
      %v2908 = vsel %vm1771, %v2876, %v2450
      %v2909 = vsel %vm1771, %v2877, %v2452
      %v2910 = vsel %vm1771, %v2878, %v2454
      %v2911 = vsel %vm1771, %v2879, %v2456
      %v2912 = vsel %vm1771, %v2880, %v2458
      %v2913 = vsel %vm1771, %v2881, %v2460
      %v2914 = vsel %vm1771, %v2882, %v2462
      %v2915 = vsel %vm1771, %v2883, %v2464
      %v2916 = vsel %vm1771, %v2884, %v2466
      %v2917 = vsel %vm1771, %v2885, %v2468
      %v2918 = vsel %vm1771, %v2886, %v2470
      %v2919 = vsel %vm1771, %v2887, %v2472
      %v2920 = vsel %vm1771, %v2888, %v2474
      %v2921 = vsel %vm1771, %v2889, %v2476
      %v2922 = vsel %vm1771, %v2890, %v2478
      %v2923 = vsel %vm1771, %v2891, %v2480
      %v2924 = vsel %vm1771, %v2892, %v2482
      %v2925 = vsel %vm1771, %v2893, %v2484
      %v2926 = vsel %vm1771, %v2894, %v2486
      %v2927 = vsel %vm1771, %v2895, %v2488
      %v2928 = vsel %vm1771, %v2896, %v2490
      %v2929 = vsel %vm1771, %v2897, %v2492
      %v2930 = vsel %vm1771, %v2898, %v2494
      %v2931 = vsel %vm1771, %v2899, %v2496
      %v2932 = vsel %vm1771, %v2900, %v2498
      %v2933 = vsel %vm1771, %v2901, %v2500
      %v2934 = vsel %vm1771, %v2902, %v2502
      %v2935 = vsel %vm1771, %v2903, %v2504
      %v2936 = vsel %vm1771, %v2904, %v2506
      %v2937 = vsel %vm1771, %v2905, %v2508
      %v2938 = vsel %vm1771, %v2906, %v2510
      %v2939 = vsel %vm1804, %v2907, %v1226
      %v2940 = vsel %vm1804, %v2908, %v1228
      %v2941 = vsel %vm1804, %v2909, %v1230
      %v2942 = vsel %vm1804, %v2910, %v1232
      %v2943 = vsel %vm1804, %v2911, %v1234
      %v2944 = vsel %vm1804, %v2912, %v1236
      %v2945 = vsel %vm1804, %v2913, %v1238
      %v2946 = vsel %vm1804, %v2914, %v1240
      %v2947 = vsel %vm1804, %v2915, %v1242
      %v2948 = vsel %vm1804, %v2916, %v1244
      %v2949 = vsel %vm1804, %v2917, %v1246
      %v2950 = vsel %vm1804, %v2918, %v1248
      %v2951 = vsel %vm1804, %v2919, %v1250
      %v2952 = vsel %vm1804, %v2920, %v1252
      %v2953 = vsel %vm1804, %v2921, %v1254
      %v2954 = vsel %vm1804, %v2922, %v1256
      %v2955 = vsel %vm1804, %v2923, %v1258
      %v2956 = vsel %vm1804, %v2924, %v1260
      %v2957 = vsel %vm1804, %v2925, %v1262
      %v2958 = vsel %vm1804, %v2926, %v1264
      %v2959 = vsel %vm1804, %v2927, %v1266
      %v2960 = vsel %vm1804, %v2928, %v1268
      %v2961 = vsel %vm1804, %v2929, %v1270
      %v2962 = vsel %vm1804, %v2930, %v1272
      %v2963 = vsel %vm1804, %v2931, %v1274
      %v2964 = vsel %vm1804, %v2932, %v1276
      %v2965 = vsel %vm1804, %v2933, %v1278
      %v2966 = vsel %vm1804, %v2934, %v1280
      %v2967 = vsel %vm1804, %v2935, %v1282
      %v2968 = vsel %vm1804, %v2936, %v1284
      %v2969 = vsel %vm1804, %v2937, %v1286
      %v2970 = vsel %vm1804, %v2938, %v1288
      %v2971 = vsel %vm1837, %v2939, %v2544
      %v2972 = vsel %vm1837, %v2940, %v2546
      %v2973 = vsel %vm1837, %v2941, %v2548
      %v2974 = vsel %vm1837, %v2942, %v2550
      %v2975 = vsel %vm1837, %v2943, %v2552
      %v2976 = vsel %vm1837, %v2944, %v2554
      %v2977 = vsel %vm1837, %v2945, %v2556
      %v2978 = vsel %vm1837, %v2946, %v2558
      %v2979 = vsel %vm1837, %v2947, %v2560
      %v2980 = vsel %vm1837, %v2948, %v2562
      %v2981 = vsel %vm1837, %v2949, %v2564
      %v2982 = vsel %vm1837, %v2950, %v2566
      %v2983 = vsel %vm1837, %v2951, %v2568
      %v2984 = vsel %vm1837, %v2952, %v2570
      %v2985 = vsel %vm1837, %v2953, %v2572
      %v2986 = vsel %vm1837, %v2954, %v2574
      %v2987 = vsel %vm1837, %v2955, %v2576
      %v2988 = vsel %vm1837, %v2956, %v2578
      %v2989 = vsel %vm1837, %v2957, %v2580
      %v2990 = vsel %vm1837, %v2958, %v2582
      %v2991 = vsel %vm1837, %v2959, %v2584
      %v2992 = vsel %vm1837, %v2960, %v2586
      %v2993 = vsel %vm1837, %v2961, %v2588
      %v2994 = vsel %vm1837, %v2962, %v2590
      %v2995 = vsel %vm1837, %v2963, %v2592
      %v2996 = vsel %vm1837, %v2964, %v2594
      %v2997 = vsel %vm1837, %v2965, %v2596
      %v2998 = vsel %vm1837, %v2966, %v2598
      %v2999 = vsel %vm1837, %v2967, %v2600
      %v3000 = vsel %vm1837, %v2968, %v2602
      %v3001 = vsel %vm1837, %v2969, %v2604
      %v3002 = vsel %vm1837, %v2970, %v2606
      %v3003 = vsel %vm1870, %v2971, %v2640
      %v3004 = vsel %vm1870, %v2972, %v2642
      %v3005 = vsel %vm1870, %v2973, %v2644
      %v3006 = vsel %vm1870, %v2974, %v2646
      %v3007 = vsel %vm1870, %v2975, %v2648
      %v3008 = vsel %vm1870, %v2976, %v2650
      %v3009 = vsel %vm1870, %v2977, %v2652
      %v3010 = vsel %vm1870, %v2978, %v2654
      %v3011 = vsel %vm1870, %v2979, %v2656
      %v3012 = vsel %vm1870, %v2980, %v2658
      %v3013 = vsel %vm1870, %v2981, %v2660
      %v3014 = vsel %vm1870, %v2982, %v2662
      %v3015 = vsel %vm1870, %v2983, %v2664
      %v3016 = vsel %vm1870, %v2984, %v2666
      %v3017 = vsel %vm1870, %v2985, %v2668
      %v3018 = vsel %vm1870, %v2986, %v2670
      %v3019 = vsel %vm1870, %v2987, %v2672
      %v3020 = vsel %vm1870, %v2988, %v2674
      %v3021 = vsel %vm1870, %v2989, %v2676
      %v3022 = vsel %vm1870, %v2990, %v2678
      %v3023 = vsel %vm1870, %v2991, %v2680
      %v3024 = vsel %vm1870, %v2992, %v2682
      %v3025 = vsel %vm1870, %v2993, %v2684
      %v3026 = vsel %vm1870, %v2994, %v2686
      %v3027 = vsel %vm1870, %v2995, %v2688
      %v3028 = vsel %vm1870, %v2996, %v2690
      %v3029 = vsel %vm1870, %v2997, %v2692
      %v3030 = vsel %vm1870, %v2998, %v2694
      %v3031 = vsel %vm1870, %v2999, %v2696
      %v3032 = vsel %vm1870, %v3000, %v2698
      %v3033 = vsel %vm1870, %v3001, %v2700
      %v3034 = vsel %vm1870, %v3002, %v2702
      %v3035 = vsel %vm1903, %v3003, %v1522
      %v3036 = vsel %vm1903, %v3004, %v1524
      %v3037 = vsel %vm1903, %v3005, %v1526
      %v3038 = vsel %vm1903, %v3006, %v1528
      %v3039 = vsel %vm1903, %v3007, %v1530
      %v3040 = vsel %vm1903, %v3008, %v1532
      %v3041 = vsel %vm1903, %v3009, %v1534
      %v3042 = vsel %vm1903, %v3010, %v1536
      %v3043 = vsel %vm1903, %v3011, %v1538
      %v3044 = vsel %vm1903, %v3012, %v1540
      %v3045 = vsel %vm1903, %v3013, %v1542
      %v3046 = vsel %vm1903, %v3014, %v1544
      %v3047 = vsel %vm1903, %v3015, %v1546
      %v3048 = vsel %vm1903, %v3016, %v1548
      %v3049 = vsel %vm1903, %v3017, %v1550
      %v3050 = vsel %vm1903, %v3018, %v1552
      %v3051 = vsel %vm1903, %v3019, %v1554
      %v3052 = vsel %vm1903, %v3020, %v1556
      %v3053 = vsel %vm1903, %v3021, %v1558
      %v3054 = vsel %vm1903, %v3022, %v1560
      %v3055 = vsel %vm1903, %v3023, %v1562
      %v3056 = vsel %vm1903, %v3024, %v1564
      %v3057 = vsel %vm1903, %v3025, %v1566
      %v3058 = vsel %vm1903, %v3026, %v1568
      %v3059 = vsel %vm1903, %v3027, %v1570
      %v3060 = vsel %vm1903, %v3028, %v1572
      %v3061 = vsel %vm1903, %v3029, %v1574
      %v3062 = vsel %vm1903, %v3030, %v1576
      %v3063 = vsel %vm1903, %v3031, %v2736
      %v3064 = vsel %vm1903, %v3032, %v2738
      %v3065 = vsel %vm1903, %v3033, %v2740
      %v3066 = vsel %vm1903, %v3034, %v2742
      %v3067 = vsel %vm1936, %v3035, %v2748
      %v3068 = vsel %vm1936, %v3036, %v2750
      %v3069 = vsel %vm1936, %v3037, %v2752
      %v3070 = vsel %vm1936, %v3038, %v2754
      %v3071 = vsel %vm1936, %v3039, %v2756
      %v3072 = vsel %vm1936, %v3040, %v2758
      %v3073 = vsel %vm1936, %v3041, %v2760
      %v3074 = vsel %vm1936, %v3042, %v2762
      %v3075 = vsel %vm1936, %v3043, %v2764
      %v3076 = vsel %vm1936, %v3044, %v2766
      %v3077 = vsel %vm1936, %v3045, %v2768
      %v3078 = vsel %vm1936, %v3046, %v2770
      %v3079 = vsel %vm1936, %v3047, %v2772
      %v3080 = vsel %vm1936, %v3048, %v2774
      %v3081 = vsel %vm1936, %v3049, %v2776
      %v3082 = vsel %vm1936, %v3050, %v2778
      %v3083 = vsel %vm1936, %v3051, %v2780
      %v3084 = vsel %vm1936, %v3052, %v2782
      %v3085 = vsel %vm1936, %v3053, %v2784
      %v3086 = vsel %vm1936, %v3054, %v2786
      %v3087 = vsel %vm1936, %v3055, %v2788
      %v3088 = vsel %vm1936, %v3056, %v2790
      %v3089 = vsel %vm1936, %v3057, %v2792
      %v3090 = vsel %vm1936, %v3058, %v2794
      %v3091 = vsel %vm1936, %v3059, %v2796
      %v3092 = vsel %vm1936, %v3060, %v2798
      %v3093 = vsel %vm1936, %v3061, %v2800
      %v3094 = vsel %vm1936, %v3062, %v2802
      %v3095 = vsel %vm1936, %v3063, %v2804
      %v3096 = vsel %vm1936, %v3064, %v2806
      %v3097 = vsel %vm1936, %v3065, %v2808
      %v3098 = vsel %vm1936, %v3066, %v2810
      %v3100 = vlaneseq
      %v3101 = vshrl.u32 %v3100, 7
      %v3102 = vsub.s32 0, %v3101
      %v3103 = vrot.slane %v2306, %v3102
      %v3106 = vsel %vm1975, %v3067, 0
      %v3109 = vsel %vm1975, %v3068, 0
      %v3112 = vsel %vm1975, %v3069, 0
      %v3115 = vsel %vm1975, %v3070, 0
      %v3118 = vsel %vm1975, %v3071, 0
      %v3121 = vsel %vm1975, %v3072, 0
      %v3124 = vsel %vm1975, %v3073, 0
      %v3127 = vsel %vm1975, %v3074, 0
      %v3130 = vsel %vm1975, %v3075, 0
      %v3133 = vsel %vm1975, %v3076, 0
      %v3136 = vsel %vm1975, %v3077, 0
      %v3139 = vsel %vm1975, %v3078, 0
      %v3142 = vsel %vm1975, %v3079, 0
      %v3145 = vsel %vm1975, %v3080, 0
      %v3148 = vsel %vm1975, %v3081, 0
      %v3151 = vsel %vm1975, %v3082, 0
      %v3154 = vsel %vm1975, %v3083, 0
      %v3157 = vsel %vm1975, %v3084, 0
      %v3160 = vsel %vm1975, %v3085, 0
      %v3163 = vsel %vm1975, %v3086, 0
      %v3166 = vsel %vm1975, %v3087, 0
      %v3169 = vsel %vm1975, %v3088, 0
      %v3172 = vsel %vm1975, %v3089, 0
      %v3175 = vsel %vm1975, %v3090, 0
      %v3178 = vsel %vm1975, %v3091, 0
      %v3181 = vsel %vm1975, %v3092, 0
      %v3184 = vsel %vm1975, %v3093, 0
      %v3187 = vsel %vm1975, %v3094, 0
      %v3190 = vsel %vm1975, %v3095, 0
      %v3193 = vsel %vm1975, %v3096, 0
      %v3196 = vsel %vm1975, %v3097, 0
      %v3199 = vsel %vm1975, %v3098, 0
      %3201 = vmatprep.subr.mxu0 0.0
      %3202 = vmatpush1.msra.mxu0 %v2297
      %3203 = vmatprep.subr.mxu0 0.0
      %3204 = vmatpush1.msra.mxu0 %v2298
      %3205 = vmatprep.subr.mxu0 0.0
      %3206 = vmatpush1.msra.mxu0 %v2299
      %3207 = vmatprep.subr.mxu0 0.0
      %3208 = vmatpush1.msra.mxu0 %v2300
      %3209 = vmatprep.subr.mxu0 0.0
      %3210 = vmatpush1.msra.mxu0 %v2301
      %3211 = vmatprep.subr.mxu0 0.0
      %3212 = vmatpush1.msra.mxu0 %v2302
      %3213 = vmatprep.subr.mxu0 0.0
      %3214 = vmatpush1.msra.mxu0 %v2303
      %3215 = vmatprep.subr.mxu0 0.0
      %3216 = vmatpush1.msra.mxu0 %v2304
      %3217 = vmatprep.subr.mxu0 0.0
      %3218 = vmatpush1.msra.mxu0 %v2305
      %3219 = vmatprep.subr.mxu0 0.0
      %3220 = vmatpush1.msra.mxu0 0.0
      %3221 = vmatprep.subr.mxu0 0.0
      %3222 = vmatpush1.msra.mxu0 0.0
      %3223 = vmatprep.subr.mxu0 0.0
      %3224 = vmatpush1.msra.mxu0 0.0
      %3225 = vmatprep.subr.mxu0 0.0
      %3226 = vmatpush1.msra.mxu0 0.0
      %3227 = vmatprep.subr.mxu0 0.0
      %3228 = vmatpush1.msra.mxu0 0.0
      %3229 = vmatprep.subr.mxu0 0.0
      %3230 = vmatpush1.msra.mxu0 0.0
      %3231 = vmatprep.subr.mxu0 0.0
      %3232 = vmatpush1.msra.mxu0 0.0
      %3233 = vmatprep.subr.mxu0 0.0
      %3234 = vmatpush1.msra.mxu0 0.0
      %3235 = vmatprep.subr.mxu0 0.0
      %3236 = vmatpush1.msra.mxu0 0.0
      %3237 = vmatprep.subr.mxu0 0.0
      %3238 = vmatpush1.msra.mxu0 0.0
      %3239 = vmatprep.subr.mxu0 0.0
      %3240 = vmatpush1.msra.mxu0 0.0
      %3241 = vmatprep.subr.mxu0 0.0
      %3242 = vmatpush1.msra.mxu0 0.0
      %3243 = vmatprep.subr.mxu0 0.0
      %3244 = vmatpush1.msra.mxu0 0.0
      %3245 = vmatprep.subr.mxu0 0.0
      %3246 = vmatpush1.msra.mxu0 0.0
      %3247 = vmatprep.subr.mxu0 0.0
      %3248 = vmatpush1.msra.mxu0 0.0
      %3249 = vmatprep.subr.mxu0 0.0
      %3250 = vmatpush1.msra.mxu0 0.0
      %3251 = vmatprep.subr.mxu0 0.0
      %3252 = vmatpush1.msra.mxu0 0.0
      %3253 = vmatprep.subr.mxu0 0.0
      %3254 = vmatpush1.msra.mxu0 0.0
      %3255 = vmatprep.subr.mxu0 0.0
      %3256 = vmatpush1.msra.mxu0 0.0
      %3257 = vmatprep.subr.mxu0 0.0
      %3258 = vmatpush1.msra.mxu0 0.0
      %3259 = vmatprep.subr.mxu0 0.0
      %3260 = vmatpush1.msra.mxu0 0.0
      %3261 = vmatprep.subr.mxu0 0.0
      %3262 = vmatpush1.msra.mxu0 0.0
      %3263 = vmatprep.subr.mxu0 0.0
      %3264 = vmatpush1.msra.mxu0 0.0
      %3265 = vmatprep.mubr.f32.mxu0 0.0
      %3266 = vmatmul.mubr.f32.gmra.mrb[0].mxu0 %v3106
      %v3267 = vpop.f32.mrb[0].mxu0
      %v3268 = vadd.f32 %v3103, %v3267
      %v3269 = vpop.f32.mrb[0].mxu0
      %3270 = vmatprep.mubr.f32.mxu0 0.0
      %3271 = vmatmul.mubr.f32.gmra.mrb[0].mxu0 %v3109
      %v3272 = vpop.f32.mrb[0].mxu0
      %v3273 = vadd.f32 %v3103, %v3272
      %v3274 = vpop.f32.mrb[0].mxu0
      %3275 = vmatprep.mubr.f32.mxu0 0.0
      %3276 = vmatmul.mubr.f32.gmra.mrb[0].mxu0 %v3112
      %v3277 = vpop.f32.mrb[0].mxu0
      %v3278 = vadd.f32 %v3103, %v3277
      %v3279 = vpop.f32.mrb[0].mxu0
      %3280 = vmatprep.mubr.f32.mxu0 0.0
      %3281 = vmatmul.mubr.f32.gmra.mrb[0].mxu0 %v3115
      %v3282 = vpop.f32.mrb[0].mxu0
      %v3283 = vadd.f32 %v3103, %v3282
      %v3284 = vpop.f32.mrb[0].mxu0
      %3285 = vmatprep.mubr.f32.mxu0 0.0
      %3286 = vmatmul.mubr.f32.gmra.mrb[0].mxu0 %v3118
      %v3287 = vpop.f32.mrb[0].mxu0
      %v3288 = vadd.f32 %v3103, %v3287
      %v3289 = vpop.f32.mrb[0].mxu0
      %3290 = vmatprep.mubr.f32.mxu0 0.0
      %3291 = vmatmul.mubr.f32.gmra.mrb[0].mxu0 %v3121
      %v3292 = vpop.f32.mrb[0].mxu0
      %v3293 = vadd.f32 %v3103, %v3292
      %v3294 = vpop.f32.mrb[0].mxu0
      %3295 = vmatprep.mubr.f32.mxu0 0.0
      %3296 = vmatmul.mubr.f32.gmra.mrb[0].mxu0 %v3124
      %v3297 = vpop.f32.mrb[0].mxu0
      %v3298 = vadd.f32 %v3103, %v3297
      %v3299 = vpop.f32.mrb[0].mxu0
      %3300 = vmatprep.mubr.f32.mxu0 0.0
      %3301 = vmatmul.mubr.f32.gmra.mrb[0].mxu0 %v3127
      %v3302 = vpop.f32.mrb[0].mxu0
      %v3303 = vadd.f32 %v3103, %v3302
      %v3304 = vpop.f32.mrb[0].mxu0
      %3305 = vmatprep.mubr.f32.mxu0 0.0
      %3306 = vmatmul.mubr.f32.gmra.mrb[0].mxu0 %v3130
      %v3307 = vpop.f32.mrb[0].mxu0
      %v3308 = vadd.f32 %v3103, %v3307
      %v3309 = vpop.f32.mrb[0].mxu0
      %3310 = vmatprep.mubr.f32.mxu0 0.0
      %3311 = vmatmul.mubr.f32.gmra.mrb[0].mxu0 %v3133
      %v3312 = vpop.f32.mrb[0].mxu0
      %v3313 = vadd.f32 %v3103, %v3312
      %v3314 = vpop.f32.mrb[0].mxu0
      %3315 = vmatprep.mubr.f32.mxu0 0.0
      %3316 = vmatmul.mubr.f32.gmra.mrb[0].mxu0 %v3136
      %v3317 = vpop.f32.mrb[0].mxu0
      %v3318 = vadd.f32 %v3103, %v3317
      %v3319 = vpop.f32.mrb[0].mxu0
      %3320 = vmatprep.mubr.f32.mxu0 0.0
      %3321 = vmatmul.mubr.f32.gmra.mrb[0].mxu0 %v3139
      %v3322 = vpop.f32.mrb[0].mxu0
      %v3323 = vadd.f32 %v3103, %v3322
      %v3324 = vpop.f32.mrb[0].mxu0
      %3325 = vmatprep.mubr.f32.mxu0 0.0
      %3326 = vmatmul.mubr.f32.gmra.mrb[0].mxu0 %v3142
      %v3327 = vpop.f32.mrb[0].mxu0
      %v3328 = vadd.f32 %v3103, %v3327
      %v3329 = vpop.f32.mrb[0].mxu0
      %3330 = vmatprep.mubr.f32.mxu0 0.0
      %3331 = vmatmul.mubr.f32.gmra.mrb[0].mxu0 %v3145
      %v3332 = vpop.f32.mrb[0].mxu0
      %v3333 = vadd.f32 %v3103, %v3332
      %v3334 = vpop.f32.mrb[0].mxu0
      %3335 = vmatprep.mubr.f32.mxu0 0.0
      %3336 = vmatmul.mubr.f32.gmra.mrb[0].mxu0 %v3148
      %v3337 = vpop.f32.mrb[0].mxu0
      %v3338 = vadd.f32 %v3103, %v3337
      %v3339 = vpop.f32.mrb[0].mxu0
      %3340 = vmatprep.mubr.f32.mxu0 0.0
      %3341 = vmatmul.mubr.f32.gmra.mrb[0].mxu0 %v3151
      %v3342 = vpop.f32.mrb[0].mxu0
      %v3343 = vadd.f32 %v3103, %v3342
      %v3344 = vpop.f32.mrb[0].mxu0
      %3345 = vmatprep.mubr.f32.mxu0 0.0
      %3346 = vmatmul.mubr.f32.gmra.mrb[0].mxu0 %v3154
      %v3347 = vpop.f32.mrb[0].mxu0
      %v3348 = vadd.f32 %v3103, %v3347
      %v3349 = vpop.f32.mrb[0].mxu0
      %3350 = vmatprep.mubr.f32.mxu0 0.0
      %3351 = vmatmul.mubr.f32.gmra.mrb[0].mxu0 %v3157
      %v3352 = vpop.f32.mrb[0].mxu0
      %v3353 = vadd.f32 %v3103, %v3352
      %v3354 = vpop.f32.mrb[0].mxu0
      %3355 = vmatprep.mubr.f32.mxu0 0.0
      %3356 = vmatmul.mubr.f32.gmra.mrb[0].mxu0 %v3160
      %v3357 = vpop.f32.mrb[0].mxu0
      %v3358 = vadd.f32 %v3103, %v3357
      %v3359 = vpop.f32.mrb[0].mxu0
      %3360 = vmatprep.mubr.f32.mxu0 0.0
      %3361 = vmatmul.mubr.f32.gmra.mrb[0].mxu0 %v3163
      %v3362 = vpop.f32.mrb[0].mxu0
      %v3363 = vadd.f32 %v3103, %v3362
      %v3364 = vpop.f32.mrb[0].mxu0
      %3365 = vmatprep.mubr.f32.mxu0 0.0
      %3366 = vmatmul.mubr.f32.gmra.mrb[0].mxu0 %v3166
      %v3367 = vpop.f32.mrb[0].mxu0
      %v3368 = vadd.f32 %v3103, %v3367
      %v3369 = vpop.f32.mrb[0].mxu0
      %3370 = vmatprep.mubr.f32.mxu0 0.0
      %3371 = vmatmul.mubr.f32.gmra.mrb[0].mxu0 %v3169
      %v3372 = vpop.f32.mrb[0].mxu0
      %v3373 = vadd.f32 %v3103, %v3372
      %v3374 = vpop.f32.mrb[0].mxu0
      %3375 = vmatprep.mubr.f32.mxu0 0.0
      %3376 = vmatmul.mubr.f32.gmra.mrb[0].mxu0 %v3172
      %v3377 = vpop.f32.mrb[0].mxu0
      %v3378 = vadd.f32 %v3103, %v3377
      %v3379 = vpop.f32.mrb[0].mxu0
      %3380 = vmatprep.mubr.f32.mxu0 0.0
      %3381 = vmatmul.mubr.f32.gmra.mrb[0].mxu0 %v3175
      %v3382 = vpop.f32.mrb[0].mxu0
      %v3383 = vadd.f32 %v3103, %v3382
      %v3384 = vpop.f32.mrb[0].mxu0
      %3385 = vmatprep.mubr.f32.mxu0 0.0
      %3386 = vmatmul.mubr.f32.gmra.mrb[0].mxu0 %v3178
      %v3387 = vpop.f32.mrb[0].mxu0
      %v3388 = vadd.f32 %v3103, %v3387
      %v3389 = vpop.f32.mrb[0].mxu0
      %3390 = vmatprep.mubr.f32.mxu0 0.0
      %3391 = vmatmul.mubr.f32.gmra.mrb[0].mxu0 %v3181
      %v3392 = vpop.f32.mrb[0].mxu0
      %v3393 = vadd.f32 %v3103, %v3392
      %v3394 = vpop.f32.mrb[0].mxu0
      %3395 = vmatprep.mubr.f32.mxu0 0.0
      %3396 = vmatmul.mubr.f32.gmra.mrb[0].mxu0 %v3184
      %v3397 = vpop.f32.mrb[0].mxu0
      %v3398 = vadd.f32 %v3103, %v3397
      %v3399 = vpop.f32.mrb[0].mxu0
      %3400 = vmatprep.mubr.f32.mxu0 0.0
      %3401 = vmatmul.mubr.f32.gmra.mrb[0].mxu0 %v3187
      %v3402 = vpop.f32.mrb[0].mxu0
      %v3403 = vadd.f32 %v3103, %v3402
      %v3404 = vpop.f32.mrb[0].mxu0
      %3405 = vmatprep.mubr.f32.mxu0 0.0
      %3406 = vmatmul.mubr.f32.gmra.mrb[0].mxu0 %v3190
      %v3407 = vpop.f32.mrb[0].mxu0
      %v3408 = vadd.f32 %v3103, %v3407
      %v3409 = vpop.f32.mrb[0].mxu0
      %3410 = vmatprep.mubr.f32.mxu0 0.0
      %3411 = vmatmul.mubr.f32.gmra.mrb[0].mxu0 %v3193
      %v3412 = vpop.f32.mrb[0].mxu0
      %v3413 = vadd.f32 %v3103, %v3412
      %v3414 = vpop.f32.mrb[0].mxu0
      %3415 = vmatprep.mubr.f32.mxu0 0.0
      %3416 = vmatmul.mubr.f32.gmra.mrb[0].mxu0 %v3196
      %v3417 = vpop.f32.mrb[0].mxu0
      %v3418 = vadd.f32 %v3103, %v3417
      %v3419 = vpop.f32.mrb[0].mxu0
      %3420 = vmatprep.mubr.f32.mxu0 0.0
      %3421 = vmatmul.mubr.f32.gmra.mrb[0].mxu0 %v3199
      %v3422 = vpop.f32.mrb[0].mxu0
      %v3423 = vadd.f32 %v3103, %v3422
      %v3424 = vpop.f32.mrb[0].mxu0
      %3425 = vdwg.mxu0
      %3426 = vst.msk [vmem:[%s411] sm:$0xff] %vm1705, %v2139
      %3427 = vst.msk [vmem:[%s411 + $0x8] sm:$0xff] %vm1705, %v2144
      %3428 = vst.msk [vmem:[%s411 + $0x10] sm:$0xff] %vm1705, %v2149
      %3429 = vst.msk [vmem:[%s411 + $0x18] sm:$0xff] %vm1705, %v2154
      %3430 = vst.msk [vmem:[%s411 + $0x20] sm:$0xff] %vm1705, %v2159
      %3431 = vst.msk [vmem:[%s411 + $0x28] sm:$0xff] %vm1705, %v2164
      %3432 = vst.msk [vmem:[%s411 + $0x30] sm:$0xff] %vm1705, %v2169
      %3433 = vst.msk [vmem:[%s411 + $0x38] sm:$0xff] %vm1705, %v2174
      %3434 = vst.msk [vmem:[%s411 + $0x40] sm:$0xff] %vm1705, %v2179
      %3435 = vst.msk [vmem:[%s411 + $0x48] sm:$0xff] %vm1705, %v2184
      %3436 = vst.msk [vmem:[%s411 + $0x50] sm:$0xff] %vm1705, %v2189
      %3437 = vst.msk [vmem:[%s411 + $0x58] sm:$0xff] %vm1705, %v2194
      %3438 = vst.msk [vmem:[%s411 + $0x60] sm:$0xff] %vm1705, %v2199
      %3439 = vst.msk [vmem:[%s411 + $0x68] sm:$0xff] %vm1705, %v2204
      %3440 = vst.msk [vmem:[%s411 + $0x70] sm:$0xff] %vm1705, %v2209
      %3441 = vst.msk [vmem:[%s411 + $0x78] sm:$0xff] %vm1705, %v2214
      %3442 = vst.msk [vmem:[%s411 + $0x80] sm:$0xff] %vm1705, %v2219
      %3443 = vst.msk [vmem:[%s411 + $0x88] sm:$0xff] %vm1705, %v2224
      %3444 = vst.msk [vmem:[%s411 + $0x90] sm:$0xff] %vm1705, %v2229
      %3445 = vst.msk [vmem:[%s411 + $0x98] sm:$0xff] %vm1705, %v2234
      %3446 = vst.msk [vmem:[%s411 + $0xa0] sm:$0xff] %vm1705, %v2239
      %3447 = vst.msk [vmem:[%s411 + $0xa8] sm:$0xff] %vm1705, %v2244
      %3448 = vst.msk [vmem:[%s411 + $0xb0] sm:$0xff] %vm1705, %v2249
      %3449 = vst.msk [vmem:[%s411 + $0xb8] sm:$0xff] %vm1705, %v2254
      %3450 = vst.msk [vmem:[%s411 + $0xc0] sm:$0xff] %vm1705, %v2259
      %3451 = vst.msk [vmem:[%s411 + $0xc8] sm:$0xff] %vm1705, %v2264
      %3452 = vst.msk [vmem:[%s411 + $0xd0] sm:$0xff] %vm1705, %v2269
      %3453 = vst.msk [vmem:[%s411 + $0xd8] sm:$0xff] %vm1705, %v2274
      %3454 = vst.msk [vmem:[%s411 + $0xe0] sm:$0xff] %vm1705, %v2279
      %3455 = vst.msk [vmem:[%s411 + $0xe8] sm:$0xff] %vm1705, %v2284
      %3456 = vst.msk [vmem:[%s411 + $0xf0] sm:$0xff] %vm1705, %v2289
      %3457 = vst.msk [vmem:[%s411 + $0xf8] sm:$0xff] %vm1705, %v2294
      %3458 = vst.msk [vmem:[%s416] sm:$0xff] %vm1705, %v3268
      %3459 = vst.msk [vmem:[%s416 + $0x8] sm:$0xff] %vm1705, %v3273
      %3460 = vst.msk [vmem:[%s416 + $0x10] sm:$0xff] %vm1705, %v3278
      %3461 = vst.msk [vmem:[%s416 + $0x18] sm:$0xff] %vm1705, %v3283
      %3462 = vst.msk [vmem:[%s416 + $0x20] sm:$0xff] %vm1705, %v3288
      %3463 = vst.msk [vmem:[%s416 + $0x28] sm:$0xff] %vm1705, %v3293
      %3464 = vst.msk [vmem:[%s416 + $0x30] sm:$0xff] %vm1705, %v3298
      %3465 = vst.msk [vmem:[%s416 + $0x38] sm:$0xff] %vm1705, %v3303
      %3466 = vst.msk [vmem:[%s416 + $0x40] sm:$0xff] %vm1705, %v3308
      %3467 = vst.msk [vmem:[%s416 + $0x48] sm:$0xff] %vm1705, %v3313
      %3468 = vst.msk [vmem:[%s416 + $0x50] sm:$0xff] %vm1705, %v3318
      %3469 = vst.msk [vmem:[%s416 + $0x58] sm:$0xff] %vm1705, %v3323
      %3470 = vst.msk [vmem:[%s416 + $0x60] sm:$0xff] %vm1705, %v3328
      %3471 = vst.msk [vmem:[%s416 + $0x68] sm:$0xff] %vm1705, %v3333
      %3472 = vst.msk [vmem:[%s416 + $0x70] sm:$0xff] %vm1705, %v3338
      %3473 = vst.msk [vmem:[%s416 + $0x78] sm:$0xff] %vm1705, %v3343
      %3474 = vst.msk [vmem:[%s416 + $0x80] sm:$0xff] %vm1705, %v3348
      %3475 = vst.msk [vmem:[%s416 + $0x88] sm:$0xff] %vm1705, %v3353
      %3476 = vst.msk [vmem:[%s416 + $0x90] sm:$0xff] %vm1705, %v3358
      %3477 = vst.msk [vmem:[%s416 + $0x98] sm:$0xff] %vm1705, %v3363
      %3478 = vst.msk [vmem:[%s416 + $0xa0] sm:$0xff] %vm1705, %v3368
      %3479 = vst.msk [vmem:[%s416 + $0xa8] sm:$0xff] %vm1705, %v3373
      %3480 = vst.msk [vmem:[%s416 + $0xb0] sm:$0xff] %vm1705, %v3378
      %3481 = vst.msk [vmem:[%s416 + $0xb8] sm:$0xff] %vm1705, %v3383
      %3482 = vst.msk [vmem:[%s416 + $0xc0] sm:$0xff] %vm1705, %v3388
      %3483 = vst.msk [vmem:[%s416 + $0xc8] sm:$0xff] %vm1705, %v3393
      %3484 = vst.msk [vmem:[%s416 + $0xd0] sm:$0xff] %vm1705, %v3398
      %3485 = vst.msk [vmem:[%s416 + $0xd8] sm:$0xff] %vm1705, %v3403
      %3486 = vst.msk [vmem:[%s416 + $0xe0] sm:$0xff] %vm1705, %v3408
      %3487 = vst.msk [vmem:[%s416 + $0xe8] sm:$0xff] %vm1705, %v3413
      %3488 = vst.msk [vmem:[%s416 + $0xf0] sm:$0xff] %vm1705, %v3418
      %3489 = vst.msk [vmem:[%s416 + $0xf8] sm:$0xff] %vm1705, %v3423
      %v3490 = vsel %vm1705, %v2139, 0.0
      %v3491 = vsel %vm1705, %v2144, 0.0
      %v3492 = vadd.f32 %v3490, %v3491
      %v3493 = vsel %vm1705, %v2149, 0.0
      %v3494 = vadd.f32 %v3492, %v3493
      %v3495 = vsel %vm1705, %v2154, 0.0
      %v3496 = vadd.f32 %v3494, %v3495
      %v3497 = vsel %vm1705, %v2159, 0.0
      %v3498 = vadd.f32 %v3496, %v3497
      %v3499 = vsel %vm1705, %v2164, 0.0
      %v3500 = vadd.f32 %v3498, %v3499
      %v3501 = vsel %vm1705, %v2169, 0.0
      %v3502 = vadd.f32 %v3500, %v3501
      %v3503 = vsel %vm1705, %v2174, 0.0
      %v3504 = vadd.f32 %v3502, %v3503
      %v3505 = vsel %vm1705, %v2179, 0.0
      %v3506 = vadd.f32 %v3504, %v3505
      %v3507 = vsel %vm1705, %v2184, 0.0
      %v3508 = vadd.f32 %v3506, %v3507
      %v3509 = vsel %vm1705, %v2189, 0.0
      %v3510 = vadd.f32 %v3508, %v3509
      %v3511 = vsel %vm1705, %v2194, 0.0
      %v3512 = vadd.f32 %v3510, %v3511
      %v3513 = vsel %vm1705, %v2199, 0.0
      %v3514 = vadd.f32 %v3512, %v3513
      %v3515 = vsel %vm1705, %v2204, 0.0
      %v3516 = vadd.f32 %v3514, %v3515
      %v3517 = vsel %vm1705, %v2209, 0.0
      %v3518 = vadd.f32 %v3516, %v3517
      %v3519 = vsel %vm1705, %v2214, 0.0
      %v3520 = vadd.f32 %v3518, %v3519
      %v3521 = vsel %vm1705, %v2219, 0.0
      %v3522 = vadd.f32 %v3520, %v3521
      %v3523 = vsel %vm1705, %v2224, 0.0
      %v3524 = vadd.f32 %v3522, %v3523
      %v3525 = vsel %vm1705, %v2229, 0.0
      %v3526 = vadd.f32 %v3524, %v3525
      %v3527 = vsel %vm1705, %v2234, 0.0
      %v3528 = vadd.f32 %v3526, %v3527
      %v3529 = vsel %vm1705, %v2239, 0.0
      %v3530 = vadd.f32 %v3528, %v3529
      %v3531 = vsel %vm1705, %v2244, 0.0
      %v3532 = vadd.f32 %v3530, %v3531
      %v3533 = vsel %vm1705, %v2249, 0.0
      %v3534 = vadd.f32 %v3532, %v3533
      %v3535 = vsel %vm1705, %v2254, 0.0
      %v3536 = vadd.f32 %v3534, %v3535
      %v3537 = vsel %vm1705, %v2259, 0.0
      %v3538 = vadd.f32 %v3536, %v3537
      %v3539 = vsel %vm1705, %v2264, 0.0
      %v3540 = vadd.f32 %v3538, %v3539
      %v3541 = vsel %vm1705, %v2269, 0.0
      %v3542 = vadd.f32 %v3540, %v3541
      %v3543 = vsel %vm1705, %v2274, 0.0
      %v3544 = vadd.f32 %v3542, %v3543
      %v3545 = vsel %vm1705, %v2279, 0.0
      %v3546 = vadd.f32 %v3544, %v3545
      %v3547 = vsel %vm1705, %v2284, 0.0
      %v3548 = vadd.f32 %v3546, %v3547
      %v3549 = vsel %vm1705, %v2289, 0.0
      %v3550 = vadd.f32 %v3548, %v3549
      %v3551 = vsel %vm1705, %v2294, 0.0
      %v3552 = vadd.f32 %v3550, %v3551
      %v3553 = vrot.slane %v3552, 4
      %v3554 = vadd.f32 %v3552, %v3553
      %v3555 = vrot.slane %v3554, 2
      %v3556 = vadd.f32 %v3554, %v3555
      %v3557 = vrot.slane %v3556, 1
      %v3558 = vadd.f32 %v3556, %v3557
      %v3559 = vmul.f32 %v2139, %v2139
      %v3560 = vmul.f32 %v2144, %v2144
      %v3561 = vmul.f32 %v2149, %v2149
      %v3562 = vmul.f32 %v2154, %v2154
      %v3563 = vmul.f32 %v2159, %v2159
      %v3564 = vmul.f32 %v2164, %v2164
      %v3565 = vmul.f32 %v2169, %v2169
      %v3566 = vmul.f32 %v2174, %v2174
      %v3567 = vmul.f32 %v2179, %v2179
      %v3568 = vmul.f32 %v2184, %v2184
      %v3569 = vmul.f32 %v2189, %v2189
      %v3570 = vmul.f32 %v2194, %v2194
      %v3571 = vmul.f32 %v2199, %v2199
      %v3572 = vmul.f32 %v2204, %v2204
      %v3573 = vmul.f32 %v2209, %v2209
      %v3574 = vmul.f32 %v2214, %v2214
      %v3575 = vmul.f32 %v2219, %v2219
      %v3576 = vmul.f32 %v2224, %v2224
      %v3577 = vmul.f32 %v2229, %v2229
      %v3578 = vmul.f32 %v2234, %v2234
      %v3579 = vmul.f32 %v2239, %v2239
      %v3580 = vmul.f32 %v2244, %v2244
      %v3581 = vmul.f32 %v2249, %v2249
      %v3582 = vmul.f32 %v2254, %v2254
      %v3583 = vmul.f32 %v2259, %v2259
      %v3584 = vmul.f32 %v2264, %v2264
      %v3585 = vmul.f32 %v2269, %v2269
      %v3586 = vmul.f32 %v2274, %v2274
      %v3587 = vmul.f32 %v2279, %v2279
      %v3588 = vmul.f32 %v2284, %v2284
      %v3589 = vmul.f32 %v2289, %v2289
      %v3590 = vmul.f32 %v2294, %v2294
      %v3591 = vsel %vm1705, %v3559, 0.0
      %v3592 = vsel %vm1705, %v3560, 0.0
      %v3593 = vadd.f32 %v3591, %v3592
      %v3594 = vsel %vm1705, %v3561, 0.0
      %v3595 = vadd.f32 %v3593, %v3594
      %v3596 = vsel %vm1705, %v3562, 0.0
      %v3597 = vadd.f32 %v3595, %v3596
      %v3598 = vsel %vm1705, %v3563, 0.0
      %v3599 = vadd.f32 %v3597, %v3598
      %v3600 = vsel %vm1705, %v3564, 0.0
      %v3601 = vadd.f32 %v3599, %v3600
      %v3602 = vsel %vm1705, %v3565, 0.0
      %v3603 = vadd.f32 %v3601, %v3602
      %v3604 = vsel %vm1705, %v3566, 0.0
      %v3605 = vadd.f32 %v3603, %v3604
      %v3606 = vsel %vm1705, %v3567, 0.0
      %v3607 = vadd.f32 %v3605, %v3606
      %v3608 = vsel %vm1705, %v3568, 0.0
      %v3609 = vadd.f32 %v3607, %v3608
      %v3610 = vsel %vm1705, %v3569, 0.0
      %v3611 = vadd.f32 %v3609, %v3610
      %v3612 = vsel %vm1705, %v3570, 0.0
      %v3613 = vadd.f32 %v3611, %v3612
      %v3614 = vsel %vm1705, %v3571, 0.0
      %v3615 = vadd.f32 %v3613, %v3614
      %v3616 = vsel %vm1705, %v3572, 0.0
      %v3617 = vadd.f32 %v3615, %v3616
      %v3618 = vsel %vm1705, %v3573, 0.0
      %v3619 = vadd.f32 %v3617, %v3618
      %v3620 = vsel %vm1705, %v3574, 0.0
      %v3621 = vadd.f32 %v3619, %v3620
      %v3622 = vsel %vm1705, %v3575, 0.0
      %v3623 = vadd.f32 %v3621, %v3622
      %v3624 = vsel %vm1705, %v3576, 0.0
      %v3625 = vadd.f32 %v3623, %v3624
      %v3626 = vsel %vm1705, %v3577, 0.0
      %v3627 = vadd.f32 %v3625, %v3626
      %v3628 = vsel %vm1705, %v3578, 0.0
      %v3629 = vadd.f32 %v3627, %v3628
      %v3630 = vsel %vm1705, %v3579, 0.0
      %v3631 = vadd.f32 %v3629, %v3630
      %v3632 = vsel %vm1705, %v3580, 0.0
      %v3633 = vadd.f32 %v3631, %v3632
      %v3634 = vsel %vm1705, %v3581, 0.0
      %v3635 = vadd.f32 %v3633, %v3634
      %v3636 = vsel %vm1705, %v3582, 0.0
      %v3637 = vadd.f32 %v3635, %v3636
      %v3638 = vsel %vm1705, %v3583, 0.0
      %v3639 = vadd.f32 %v3637, %v3638
      %v3640 = vsel %vm1705, %v3584, 0.0
      %v3641 = vadd.f32 %v3639, %v3640
      %v3642 = vsel %vm1705, %v3585, 0.0
      %v3643 = vadd.f32 %v3641, %v3642
      %v3644 = vsel %vm1705, %v3586, 0.0
      %v3645 = vadd.f32 %v3643, %v3644
      %v3646 = vsel %vm1705, %v3587, 0.0
      %v3647 = vadd.f32 %v3645, %v3646
      %v3648 = vsel %vm1705, %v3588, 0.0
      %v3649 = vadd.f32 %v3647, %v3648
      %v3650 = vsel %vm1705, %v3589, 0.0
      %v3651 = vadd.f32 %v3649, %v3650
      %v3652 = vsel %vm1705, %v3590, 0.0
      %v3653 = vadd.f32 %v3651, %v3652
      %v3654 = vrot.slane %v3653, 4
      %v3655 = vadd.f32 %v3653, %v3654
      %v3656 = vrot.slane %v3655, 2
      %v3657 = vadd.f32 %v3655, %v3656
      %v3658 = vrot.slane %v3657, 1
      %v3659 = vadd.f32 %v3657, %v3658
      %vm3660 = vcmask 1040384
      %v3661 = vsel %vm3660, %v3558, %v3659
      %vm3662 = vcmask 58368
      %3663 = vst.msk [vmem:[%s423] sm:$0x3] %vm3662, %v3661
      %v3664 = vsel %vm1705, %v3268, 0.0
      %v3665 = vsel %vm1705, %v3273, 0.0
      %v3666 = vadd.f32 %v3664, %v3665
      %v3667 = vsel %vm1705, %v3278, 0.0
      %v3668 = vadd.f32 %v3666, %v3667
      %v3669 = vsel %vm1705, %v3283, 0.0
      %v3670 = vadd.f32 %v3668, %v3669
      %v3671 = vsel %vm1705, %v3288, 0.0
      %v3672 = vadd.f32 %v3670, %v3671
      %v3673 = vsel %vm1705, %v3293, 0.0
      %v3674 = vadd.f32 %v3672, %v3673
      %v3675 = vsel %vm1705, %v3298, 0.0
      %v3676 = vadd.f32 %v3674, %v3675
      %v3677 = vsel %vm1705, %v3303, 0.0
      %v3678 = vadd.f32 %v3676, %v3677
      %v3679 = vsel %vm1705, %v3308, 0.0
      %v3680 = vadd.f32 %v3678, %v3679
      %v3681 = vsel %vm1705, %v3313, 0.0
      %v3682 = vadd.f32 %v3680, %v3681
      %v3683 = vsel %vm1705, %v3318, 0.0
      %v3684 = vadd.f32 %v3682, %v3683
      %v3685 = vsel %vm1705, %v3323, 0.0
      %v3686 = vadd.f32 %v3684, %v3685
      %v3687 = vsel %vm1705, %v3328, 0.0
      %v3688 = vadd.f32 %v3686, %v3687
      %v3689 = vsel %vm1705, %v3333, 0.0
      %v3690 = vadd.f32 %v3688, %v3689
      %v3691 = vsel %vm1705, %v3338, 0.0
      %v3692 = vadd.f32 %v3690, %v3691
      %v3693 = vsel %vm1705, %v3343, 0.0
      %v3694 = vadd.f32 %v3692, %v3693
      %v3695 = vsel %vm1705, %v3348, 0.0
      %v3696 = vadd.f32 %v3694, %v3695
      %v3697 = vsel %vm1705, %v3353, 0.0
      %v3698 = vadd.f32 %v3696, %v3697
      %v3699 = vsel %vm1705, %v3358, 0.0
      %v3700 = vadd.f32 %v3698, %v3699
      %v3701 = vsel %vm1705, %v3363, 0.0
      %v3702 = vadd.f32 %v3700, %v3701
      %v3703 = vsel %vm1705, %v3368, 0.0
      %v3704 = vadd.f32 %v3702, %v3703
      %v3705 = vsel %vm1705, %v3373, 0.0
      %v3706 = vadd.f32 %v3704, %v3705
      %v3707 = vsel %vm1705, %v3378, 0.0
      %v3708 = vadd.f32 %v3706, %v3707
      %v3709 = vsel %vm1705, %v3383, 0.0
      %v3710 = vadd.f32 %v3708, %v3709
      %v3711 = vsel %vm1705, %v3388, 0.0
      %v3712 = vadd.f32 %v3710, %v3711
      %v3713 = vsel %vm1705, %v3393, 0.0
      %v3714 = vadd.f32 %v3712, %v3713
      %v3715 = vsel %vm1705, %v3398, 0.0
      %v3716 = vadd.f32 %v3714, %v3715
      %v3717 = vsel %vm1705, %v3403, 0.0
      %v3718 = vadd.f32 %v3716, %v3717
      %v3719 = vsel %vm1705, %v3408, 0.0
      %v3720 = vadd.f32 %v3718, %v3719
      %v3721 = vsel %vm1705, %v3413, 0.0
      %v3722 = vadd.f32 %v3720, %v3721
      %v3723 = vsel %vm1705, %v3418, 0.0
      %v3724 = vadd.f32 %v3722, %v3723
      %v3725 = vsel %vm1705, %v3423, 0.0
      %v3726 = vadd.f32 %v3724, %v3725
      %v3727 = vrot.slane %v3726, 4
      %v3728 = vadd.f32 %v3726, %v3727
      %v3729 = vrot.slane %v3728, 2
      %v3730 = vadd.f32 %v3728, %v3729
      %v3731 = vrot.slane %v3730, 1
      %v3732 = vadd.f32 %v3730, %v3731
      %v3733 = vmul.f32 %v3268, %v3268
      %v3734 = vmul.f32 %v3273, %v3273
      %v3735 = vmul.f32 %v3278, %v3278
      %v3736 = vmul.f32 %v3283, %v3283
      %v3737 = vmul.f32 %v3288, %v3288
      %v3738 = vmul.f32 %v3293, %v3293
      %v3739 = vmul.f32 %v3298, %v3298
      %v3740 = vmul.f32 %v3303, %v3303
      %v3741 = vmul.f32 %v3308, %v3308
      %v3742 = vmul.f32 %v3313, %v3313
      %v3743 = vmul.f32 %v3318, %v3318
      %v3744 = vmul.f32 %v3323, %v3323
      %v3745 = vmul.f32 %v3328, %v3328
      %v3746 = vmul.f32 %v3333, %v3333
      %v3747 = vmul.f32 %v3338, %v3338
      %v3748 = vmul.f32 %v3343, %v3343
      %v3749 = vmul.f32 %v3348, %v3348
      %v3750 = vmul.f32 %v3353, %v3353
      %v3751 = vmul.f32 %v3358, %v3358
      %v3752 = vmul.f32 %v3363, %v3363
      %v3753 = vmul.f32 %v3368, %v3368
      %v3754 = vmul.f32 %v3373, %v3373
      %v3755 = vmul.f32 %v3378, %v3378
      %v3756 = vmul.f32 %v3383, %v3383
      %v3757 = vmul.f32 %v3388, %v3388
      %v3758 = vmul.f32 %v3393, %v3393
      %v3759 = vmul.f32 %v3398, %v3398
      %v3760 = vmul.f32 %v3403, %v3403
      %v3761 = vmul.f32 %v3408, %v3408
      %v3762 = vmul.f32 %v3413, %v3413
      %v3763 = vmul.f32 %v3418, %v3418
      %v3764 = vmul.f32 %v3423, %v3423
      %v3765 = vsel %vm1705, %v3733, 0.0
      %v3766 = vsel %vm1705, %v3734, 0.0
      %v3767 = vadd.f32 %v3765, %v3766
      %v3768 = vsel %vm1705, %v3735, 0.0
      %v3769 = vadd.f32 %v3767, %v3768
      %v3770 = vsel %vm1705, %v3736, 0.0
      %v3771 = vadd.f32 %v3769, %v3770
      %v3772 = vsel %vm1705, %v3737, 0.0
      %v3773 = vadd.f32 %v3771, %v3772
      %v3774 = vsel %vm1705, %v3738, 0.0
      %v3775 = vadd.f32 %v3773, %v3774
      %v3776 = vsel %vm1705, %v3739, 0.0
      %v3777 = vadd.f32 %v3775, %v3776
      %v3778 = vsel %vm1705, %v3740, 0.0
      %v3779 = vadd.f32 %v3777, %v3778
      %v3780 = vsel %vm1705, %v3741, 0.0
      %v3781 = vadd.f32 %v3779, %v3780
      %v3782 = vsel %vm1705, %v3742, 0.0
      %v3783 = vadd.f32 %v3781, %v3782
      %v3784 = vsel %vm1705, %v3743, 0.0
      %v3785 = vadd.f32 %v3783, %v3784
      %v3786 = vsel %vm1705, %v3744, 0.0
      %v3787 = vadd.f32 %v3785, %v3786
      %v3788 = vsel %vm1705, %v3745, 0.0
      %v3789 = vadd.f32 %v3787, %v3788
      %v3790 = vsel %vm1705, %v3746, 0.0
      %v3791 = vadd.f32 %v3789, %v3790
      %v3792 = vsel %vm1705, %v3747, 0.0
      %v3793 = vadd.f32 %v3791, %v3792
      %v3794 = vsel %vm1705, %v3748, 0.0
      %v3795 = vadd.f32 %v3793, %v3794
      %v3796 = vsel %vm1705, %v3749, 0.0
      %v3797 = vadd.f32 %v3795, %v3796
      %v3798 = vsel %vm1705, %v3750, 0.0
      %v3799 = vadd.f32 %v3797, %v3798
      %v3800 = vsel %vm1705, %v3751, 0.0
      %v3801 = vadd.f32 %v3799, %v3800
      %v3802 = vsel %vm1705, %v3752, 0.0
      %v3803 = vadd.f32 %v3801, %v3802
      %v3804 = vsel %vm1705, %v3753, 0.0
      %v3805 = vadd.f32 %v3803, %v3804
      %v3806 = vsel %vm1705, %v3754, 0.0
      %v3807 = vadd.f32 %v3805, %v3806
      %v3808 = vsel %vm1705, %v3755, 0.0
      %v3809 = vadd.f32 %v3807, %v3808
      %v3810 = vsel %vm1705, %v3756, 0.0
      %v3811 = vadd.f32 %v3809, %v3810
      %v3812 = vsel %vm1705, %v3757, 0.0
      %v3813 = vadd.f32 %v3811, %v3812
      %v3814 = vsel %vm1705, %v3758, 0.0
      %v3815 = vadd.f32 %v3813, %v3814
      %v3816 = vsel %vm1705, %v3759, 0.0
      %v3817 = vadd.f32 %v3815, %v3816
      %v3818 = vsel %vm1705, %v3760, 0.0
      %v3819 = vadd.f32 %v3817, %v3818
      %v3820 = vsel %vm1705, %v3761, 0.0
      %v3821 = vadd.f32 %v3819, %v3820
      %v3822 = vsel %vm1705, %v3762, 0.0
      %v3823 = vadd.f32 %v3821, %v3822
      %v3824 = vsel %vm1705, %v3763, 0.0
      %v3825 = vadd.f32 %v3823, %v3824
      %v3826 = vsel %vm1705, %v3764, 0.0
      %v3827 = vadd.f32 %v3825, %v3826
      %v3828 = vrot.slane %v3827, 4
      %v3829 = vadd.f32 %v3827, %v3828
      %v3830 = vrot.slane %v3829, 2
      %v3831 = vadd.f32 %v3829, %v3830
      %v3832 = vrot.slane %v3831, 1
      %v3833 = vadd.f32 %v3831, %v3832
      %v3834 = vsel %vm3660, %v3732, %v3833
      %3835 = vst.msk [vmem:[%s427] sm:$0x3] %vm3662, %v3834
      %v3836 = vsel %vm1705, %v684, 0.0
      %v3837 = vsel %vm1705, %v686, 0.0
      %v3838 = vadd.f32 %v3836, %v3837
      %v3839 = vsel %vm1705, %v689, 0.0
      %v3840 = vadd.f32 %v3838, %v3839
      %v3841 = vsel %vm1705, %v691, 0.0
      %v3842 = vadd.f32 %v3840, %v3841
      %v3843 = vsel %vm1705, %v694, 0.0
      %v3844 = vadd.f32 %v3842, %v3843
      %v3845 = vsel %vm1705, %v696, 0.0
      %v3846 = vadd.f32 %v3844, %v3845
      %v3847 = vsel %vm1705, %v699, 0.0
      %v3848 = vadd.f32 %v3846, %v3847
      %v3849 = vsel %vm1705, %v701, 0.0
      %v3850 = vadd.f32 %v3848, %v3849
      %v3851 = vsel %vm1705, %v704, 0.0
      %v3852 = vadd.f32 %v3850, %v3851
      %v3853 = vsel %vm1705, %v706, 0.0
      %v3854 = vadd.f32 %v3852, %v3853
      %v3855 = vsel %vm1705, %v709, 0.0
      %v3856 = vadd.f32 %v3854, %v3855
      %v3857 = vsel %vm1705, %v711, 0.0
      %v3858 = vadd.f32 %v3856, %v3857
      %v3859 = vsel %vm1705, %v714, 0.0
      %v3860 = vadd.f32 %v3858, %v3859
      %v3861 = vsel %vm1705, %v716, 0.0
      %v3862 = vadd.f32 %v3860, %v3861
      %v3863 = vsel %vm1705, %v719, 0.0
      %v3864 = vadd.f32 %v3862, %v3863
      %v3865 = vsel %vm1705, %v721, 0.0
      %v3866 = vadd.f32 %v3864, %v3865
      %v3867 = vsel %vm1705, %v724, 0.0
      %v3868 = vadd.f32 %v3866, %v3867
      %v3869 = vsel %vm1705, %v726, 0.0
      %v3870 = vadd.f32 %v3868, %v3869
      %v3871 = vsel %vm1705, %v729, 0.0
      %v3872 = vadd.f32 %v3870, %v3871
      %v3873 = vsel %vm1705, %v731, 0.0
      %v3874 = vadd.f32 %v3872, %v3873
      %v3875 = vsel %vm1705, %v734, 0.0
      %v3876 = vadd.f32 %v3874, %v3875
      %v3877 = vsel %vm1705, %v736, 0.0
      %v3878 = vadd.f32 %v3876, %v3877
      %v3879 = vsel %vm1705, %v739, 0.0
      %v3880 = vadd.f32 %v3878, %v3879
      %v3881 = vsel %vm1705, %v741, 0.0
      %v3882 = vadd.f32 %v3880, %v3881
      %v3883 = vsel %vm1705, %v744, 0.0
      %v3884 = vadd.f32 %v3882, %v3883
      %v3885 = vsel %vm1705, %v746, 0.0
      %v3886 = vadd.f32 %v3884, %v3885
      %v3887 = vsel %vm1705, %v749, 0.0
      %v3888 = vadd.f32 %v3886, %v3887
      %v3889 = vsel %vm1705, %v751, 0.0
      %v3890 = vadd.f32 %v3888, %v3889
      %v3891 = vsel %vm1705, %v851, 0.0
      %v3892 = vadd.f32 %v3890, %v3891
      %v3893 = vsel %vm1705, %v853, 0.0
      %v3894 = vadd.f32 %v3892, %v3893
      %v3895 = vsel %vm1705, %v856, 0.0
      %v3896 = vadd.f32 %v3894, %v3895
      %v3897 = vsel %vm1705, %v858, 0.0
      %v3898 = vadd.f32 %v3896, %v3897
      %v3899 = vrot.slane %v3898, 4
      %v3900 = vadd.f32 %v3898, %v3899
      %v3901 = vrot.slane %v3900, 2
      %v3902 = vadd.f32 %v3900, %v3901
      %v3903 = vrot.slane %v3902, 1
      %v3904 = vadd.f32 %v3902, %v3903
      %v3905 = vrcp.pop 256.0
      %v3906 = vmul.f32 %v3904, %v3905
      %v3907 = vld [vmem:[%s5] sm:$0xff]
      %v3908 = vld [vmem:[%s6] sm:$0x1]
      %v3910 = vsel %vm1705, %v3906, 0
      %3912 = vmatprep.subr.mxu0 0.0
      %3913 = vmatpush1.msra.mxu0 %v3907
      %3914 = vmatprep.subr.mxu0 0.0
      %3915 = vmatpush1.msra.mxu0 0.0
      %3916 = vmatprep.subr.mxu0 0.0
      %3917 = vmatpush1.msra.mxu0 0.0
      %3918 = vmatprep.subr.mxu0 0.0
      %3919 = vmatpush1.msra.mxu0 0.0
      %3920 = vmatprep.subr.mxu0 0.0
      %3921 = vmatpush1.msra.mxu0 0.0
      %3922 = vmatprep.subr.mxu0 0.0
      %3923 = vmatpush1.msra.mxu0 0.0
      %3924 = vmatprep.subr.mxu0 0.0
      %3925 = vmatpush1.msra.mxu0 0.0
      %3926 = vmatprep.subr.mxu0 0.0
      %3927 = vmatpush1.msra.mxu0 0.0
      %3928 = vmatprep.subr.mxu0 0.0
      %3929 = vmatpush1.msra.mxu0 0.0
      %3930 = vmatprep.subr.mxu0 0.0
      %3931 = vmatpush1.msra.mxu0 0.0
      %3932 = vmatprep.subr.mxu0 0.0
      %3933 = vmatpush1.msra.mxu0 0.0
      %3934 = vmatprep.subr.mxu0 0.0
      %3935 = vmatpush1.msra.mxu0 0.0
      %3936 = vmatprep.subr.mxu0 0.0
      %3937 = vmatpush1.msra.mxu0 0.0
      %3938 = vmatprep.subr.mxu0 0.0
      %3939 = vmatpush1.msra.mxu0 0.0
      %3940 = vmatprep.subr.mxu0 0.0
      %3941 = vmatpush1.msra.mxu0 0.0
      %3942 = vmatprep.subr.mxu0 0.0
      %3943 = vmatpush1.msra.mxu0 0.0
      %3944 = vmatprep.subr.mxu0 0.0
      %3945 = vmatpush1.msra.mxu0 0.0
      %3946 = vmatprep.subr.mxu0 0.0
      %3947 = vmatpush1.msra.mxu0 0.0
      %3948 = vmatprep.subr.mxu0 0.0
      %3949 = vmatpush1.msra.mxu0 0.0
      %3950 = vmatprep.subr.mxu0 0.0
      %3951 = vmatpush1.msra.mxu0 0.0
      %3952 = vmatprep.subr.mxu0 0.0
      %3953 = vmatpush1.msra.mxu0 0.0
      %3954 = vmatprep.subr.mxu0 0.0
      %3955 = vmatpush1.msra.mxu0 0.0
      %3956 = vmatprep.subr.mxu0 0.0
      %3957 = vmatpush1.msra.mxu0 0.0
      %3958 = vmatprep.subr.mxu0 0.0
      %3959 = vmatpush1.msra.mxu0 0.0
      %3960 = vmatprep.subr.mxu0 0.0
      %3961 = vmatpush1.msra.mxu0 0.0
      %3962 = vmatprep.subr.mxu0 0.0
      %3963 = vmatpush1.msra.mxu0 0.0
      %3964 = vmatprep.subr.mxu0 0.0
      %3965 = vmatpush1.msra.mxu0 0.0
      %3966 = vmatprep.subr.mxu0 0.0
      %3967 = vmatpush1.msra.mxu0 0.0
      %3968 = vmatprep.subr.mxu0 0.0
      %3969 = vmatpush1.msra.mxu0 0.0
      %3970 = vmatprep.subr.mxu0 0.0
      %3971 = vmatpush1.msra.mxu0 0.0
      %3972 = vmatprep.subr.mxu0 0.0
      %3973 = vmatpush1.msra.mxu0 0.0
      %3974 = vmatprep.subr.mxu0 0.0
      %3975 = vmatpush1.msra.mxu0 0.0
      %3976 = vmatprep.mubr.f32.mxu0 0.0
      %3977 = vmatmul.mubr.f32.gmra.mrb[0].mxu0 %v3910
      %v3978 = vpop.f32.mrb[0].mxu0
      %v3979 = vadd.f32 %v3908, %v3978
      %v3980 = vpop.f32.mrb[0].mxu0
      %3981 = vdwg.mxu0
      %vm3982 = vcmask 57344
      %3983 = vst.msk [vmem:[%s419] sm:$0x1] %vm3982, %v3979
      %p3984 = scmp.lt.s32.totalorder %s23, 1
      %s3985 = scalar_select %p3984, %s23, 1
      %s3986 = smul.addr %s3985, 32
      %s3987 = smul.addr %s3986, 8
      %s3988 = scalar_lea.vmem %s7, %s3987
      %p3989 = scmp.lt.s32.totalorder %s23, 1
      %s3990 = scalar_select %p3989, %s23, 1
      %s3991 = smul.addr %s3990, 32
      %s3992 = smul.addr %s3991, 8
      %s3993 = scalar_lea.vmem %s8, %s3992
      %p3994 = scmp.lt.s32.totalorder %s23, 1
      %s3995 = scalar_select %p3994, %s23, 1
      %s3996 = scalar_lea.vmem %s9, %s3995
      %p3997 = scmp.lt.s32.totalorder %s23, 1
      %s3998 = scalar_select %p3997, %s23, 1
      %s3999 = smul.addr %s3998, 2
      %s4000 = scalar_lea.vmem %s10, %s3999
      %p4001 = scmp.lt.s32.totalorder %s23, 1
      %s4002 = scalar_select %p4001, %s23, 1
      %s4003 = smul.addr %s4002, 2
      %s4004 = scalar_lea.vmem %s11, %s4003
      // Predicated region
      $region49: #{aspp_forward.3} parent=47 // pred_check
        %p4005 = pneg %p193
      $region50: #{aspp_forward.3} parent=47 // pred_check_branch
        %4007 = sbr.rel (%p4005) target = $region52
      $region51: #{aspp_forward.3} parent=47 // pred_region
        _
      $region52: #{aspp_forward.3} parent=47 // pred_fallthru
        _
      // Predicated region
      $region53: #{aspp_forward.3} parent=47 // pred_check
        %p4008 = pneg %p219
      $region54: #{aspp_forward.3} parent=47 // pred_check_branch
        %4010 = sbr.rel (%p4008) target = $region56
      $region55: #{aspp_forward.3} parent=47 // pred_region
        _
      $region56: #{aspp_forward.3} parent=47 // pred_fallthru
        _
      // Predicated region
      $region57: #{aspp_forward.3} parent=47 // pred_check
        %p4011 = pneg %p245
      $region58: #{aspp_forward.3} parent=47 // pred_check_branch
        %4013 = sbr.rel (%p4011) target = $region60
      $region59: #{aspp_forward.3} parent=47 // pred_region
        _
      $region60: #{aspp_forward.3} parent=47 // pred_fallthru
        _
      // Predicated region
      $region61: #{aspp_forward.3} parent=47 // pred_check
        %p4014 = pneg %p271
      $region62: #{aspp_forward.3} parent=47 // pred_check_branch
        %4016 = sbr.rel (%p4014) target = $region64
      $region63: #{aspp_forward.3} parent=47 // pred_region
        _
      $region64: #{aspp_forward.3} parent=47 // pred_fallthru
        _
      // Predicated region
      $region65: #{aspp_forward.3} parent=47 // pred_check
        %p4017 = pneg %p297
      $region66: #{aspp_forward.3} parent=47 // pred_check_branch
        %4019 = sbr.rel (%p4017) target = $region68
      $region67: #{aspp_forward.3} parent=47 // pred_region
        _
      $region68: #{aspp_forward.3} parent=47 // pred_fallthru
        _
    $region48: #{aspp_forward.3} parent=5 // pred_fallthru
      _
    %p4020 = scmp.le.s32.totalorder 2, %s18
    // Predicated region
    $region69: #{aspp_forward.3} parent=5 // pred_check
      %p4021 = pneg %p4020
    $region70: #{aspp_forward.3} parent=5 // pred_check_branch
      %4023 = sbr.rel (%p4021) target = $region72
    $region71: #{aspp_forward.3} parent=5 // pred_region
      %s4024 = ssub.s32 %s18, 2
      // Predicated region
      $region73: #{aspp_forward.3} parent=71 // pred_check
        %p4025 = pneg %p199
      $region74: #{aspp_forward.3} parent=71 // pred_check_branch
        %4027 = sbr.rel (%p4025) target = $region76
      $region75: #{aspp_forward.3} parent=71 // pred_region
        %p4028 = scmp.lt.s32.totalorder %s24, 1
        %s4029 = scalar_select %p4028, %s24, 1
        %s4030 = smul.addr %s4029, 32
        %s4031 = smul.addr %s4030, 8
        %s4032 = scalar_lea.vmem %s7, %s4031
      $region76: #{aspp_forward.3} parent=71 // pred_fallthru
        _
      // Predicated region
      $region77: #{aspp_forward.3} parent=71 // pred_check
        %p4033 = pneg %p225
      $region78: #{aspp_forward.3} parent=71 // pred_check_branch
        %4035 = sbr.rel (%p4033) target = $region80
      $region79: #{aspp_forward.3} parent=71 // pred_region
        %p4036 = scmp.lt.s32.totalorder %s24, 1
        %s4037 = scalar_select %p4036, %s24, 1
        %s4038 = smul.addr %s4037, 32
        %s4039 = smul.addr %s4038, 8
        %s4040 = scalar_lea.vmem %s8, %s4039
      $region80: #{aspp_forward.3} parent=71 // pred_fallthru
        _
      // Predicated region
      $region81: #{aspp_forward.3} parent=71 // pred_check
        %p4041 = pneg %p251
      $region82: #{aspp_forward.3} parent=71 // pred_check_branch
        %4043 = sbr.rel (%p4041) target = $region84
      $region83: #{aspp_forward.3} parent=71 // pred_region
        %p4044 = scmp.lt.s32.totalorder %s24, 1
        %s4045 = scalar_select %p4044, %s24, 1
        %s4046 = scalar_lea.vmem %s9, %s4045
      $region84: #{aspp_forward.3} parent=71 // pred_fallthru
        _
      // Predicated region
      $region85: #{aspp_forward.3} parent=71 // pred_check
        %p4047 = pneg %p277
      $region86: #{aspp_forward.3} parent=71 // pred_check_branch
        %4049 = sbr.rel (%p4047) target = $region88
      $region87: #{aspp_forward.3} parent=71 // pred_region
        %p4050 = scmp.lt.s32.totalorder %s24, 1
        %s4051 = scalar_select %p4050, %s24, 1
        %s4052 = smul.addr %s4051, 2
        %s4053 = scalar_lea.vmem %s10, %s4052
      $region88: #{aspp_forward.3} parent=71 // pred_fallthru
        _
      // Predicated region
      $region89: #{aspp_forward.3} parent=71 // pred_check
        %p4054 = pneg %p303
      $region90: #{aspp_forward.3} parent=71 // pred_check_branch
        %4056 = sbr.rel (%p4054) target = $region92
      $region91: #{aspp_forward.3} parent=71 // pred_region
        %p4057 = scmp.lt.s32.totalorder %s24, 1
        %s4058 = scalar_select %p4057, %s24, 1
        %s4059 = smul.addr %s4058, 2
        %s4060 = scalar_lea.vmem %s11, %s4059
      $region92: #{aspp_forward.3} parent=71 // pred_fallthru
        _
    $region72: #{aspp_forward.3} parent=5 // pred_fallthru
      _
  $region6: #{aspp_forward.3} parent=0 // loop_footer
    %s22 = sadd.s32 1, %s18
  $region7: #{aspp_forward.3} parent=0 // loop_footer_branch
    %17 = sbr.rel target = $region3
  $region8: #{aspp_forward.3} parent=0 // loop_exit
    _

</llo_original>
